<compile_context>
chip_gen: v7x
topology: tpu7x:2x2x1
jax: 0.10.0
libtpu: 0.0.40
codegen_flags: <defaults>
</compile_context>

<pallas_src>
import jax
import jax.numpy as jnp
from jax.experimental import pallas as pl
from jax.experimental.pallas import tpu as pltpu

VOCAB = 50
EMB = 105
HID = 179
HID_PAD = 256          # lane-aligned padded hidden size (keeps gate blocks 128-aligned)
OUT_DIM = 1
OUT_PAD = 128          # lane-dense padded output width
SEQ = 8
BATCH = 2


def _lstm_kernel(tokens_ref, table_ref, whh_ref, wlin_ref, blin_ref, out_ref):
    """tokens_ref: (SEQ, B)          int32  SMEM -- token ids
       table_ref:  (VOCAB, 1, 4*Hp)  f32    VMEM -- emb@W_ih^T + (b_ih+b_hh), gate-padded,
                                                    g-gate columns pre-scaled by 2
       whh_ref:    (Hp, 4*Hp)        bf16   VMEM -- W_hh^T, gate-padded, g columns * 2
       wlin_ref:   (1, Hp)           f32    VMEM -- final Linear weight row (padded)
       blin_ref:   (1, 1)            f32    VMEM -- final Linear bias
       out_ref:    (B, OUT_PAD)      f32    VMEM -- lane-dense output slab (col 0 = result)
    """
    S, B = tokens_ref.shape
    Hp = HID_PAD

    whh = whh_ref[...]                       # hoist recurrent weight load out of the loop

    h = jnp.zeros((B, Hp), jnp.float32)
    c = jnp.zeros((B, Hp), jnp.float32)

    # SEQ=8 recurrence fully unrolled (static Python loop, tiny live state).  The
    # embedding/input-projection gather happens in-kernel: per-token rows of the
    # VMEM-resident gate table indexed by SMEM token ids.
    for t in range(S):
        rows = [table_ref[tokens_ref[t, b]] for b in range(B)]      # each (1, 4*Hp)
        xg_t = jnp.concatenate(rows, axis=0)                        # (B, 4*Hp) f32

        # Only h @ W_hh^T remains on the serial path; bf16 MXU inputs, f32 accumulate.
        gates = xg_t + jnp.dot(h.astype(jnp.bfloat16), whh,
                               preferred_element_type=jnp.float32)  # (B, 4*Hp) f32

        # One sigmoid pass over the whole slab; g-gate pre-activations were doubled
        # offline so tanh(z_g) == 2*sigmoid(2*z_g) - 1.
        s = jax.nn.sigmoid(gates)
        i_g = s[:, 0 * Hp:1 * Hp]
        f_g = s[:, 1 * Hp:2 * Hp]
        g_g = 2.0 * s[:, 2 * Hp:3 * Hp] - 1.0
        o_g = s[:, 3 * Hp:4 * Hp]
        c = f_g * c + i_g * g_g
        h = o_g * jnp.tanh(c)

    # Final Linear(HID -> 1): VPU multiply + cross-lane reduce; lane-dense store.
    out = jnp.sum(h * wlin_ref[...], axis=-1, keepdims=True) + blin_ref[...]
    out_ref[...] = jnp.broadcast_to(out, out_ref.shape)


def lstm_model_forward(tokens, params):
    """tokens: (SEQ, BATCH) int32 -> (BATCH, OUT_DIM) f32 (seq-first, PyTorch default)."""
    S, B = tokens.shape
    Hp = HID_PAD

    out_padded = pl.pallas_call(
        _lstm_kernel,
        out_shape=jax.ShapeDtypeStruct((B, OUT_PAD), jnp.float32),
        # No grid: single invocation, full arrays resident; avoids useless
        # double-buffering / pipeline bookkeeping for a grid=(1,) launch.
        in_specs=[
            pl.BlockSpec(memory_space=pltpu.MemorySpace.SMEM),   # tokens (int32 scalars)
            pl.BlockSpec(memory_space=pltpu.MemorySpace.VMEM),   # gate table (V,1,4*Hp)
            pl.BlockSpec(memory_space=pltpu.MemorySpace.VMEM),   # W_hh^T (Hp,4*Hp) bf16
            pl.BlockSpec(memory_space=pltpu.MemorySpace.VMEM),   # W_lin row (1,Hp)
            pl.BlockSpec(memory_space=pltpu.MemorySpace.VMEM),   # b_lin (1,1)
        ],
        out_specs=pl.BlockSpec(memory_space=pltpu.MemorySpace.VMEM),
        cost_estimate=pl.CostEstimate(
            flops=2 * S * B * Hp * 4 * Hp,                 # recurrent matmuls (padded)
            transcendentals=S * B * 5 * Hp,                # sigmoid slab + tanh(c)
            bytes_accessed=(VOCAB * 4 * Hp * 4             # gate table
                            + Hp * 4 * Hp * 2              # bf16 W_hh
                            + S * B * 4                    # tokens
                            + Hp * 4 + B * OUT_PAD * 4)),
    )(tokens, params["gate_table_p"], params["whh_p"], params["wlin_p"], params["blin_p"])

    return out_padded[:, :OUT_DIM]


def _prep_gate_matrix(w_gates_by_h, H, Hp, g_scale=1.0):
    """(K, 4*H) gate-major (i,f,g,o) in last dim -> (K, 4*Hp) zero-padded per gate,
    with the g-gate block scaled by g_scale (for the tanh == 2*sigmoid(2x)-1 identity)."""
    K = w_gates_by_h.shape[0]
    w = w_gates_by_h.reshape(K, 4, H)
    w = w.at[:, 2, :].multiply(g_scale)
    w = jnp.pad(w, ((0, 0), (0, 0), (0, Hp - H)))
    return w.reshape(K, 4 * Hp)


def init_params(key):
    k = jax.random.split(key, 7)
    bound = 1.0 / jnp.sqrt(jnp.float32(HID))
    emb = jax.random.normal(k[0], (VOCAB, EMB), jnp.float32)

    # PyTorch LSTM params: weight_ih (4H, E), weight_hh (4H, H), biases (4H,); gate order i,f,g,o.
    w_ih = jax.random.uniform(k[1], (4 * HID, EMB), jnp.float32, -bound, bound)
    w_hh = jax.random.uniform(k[2], (4 * HID, HID), jnp.float32, -bound, bound)
    b_ih = jax.random.uniform(k[3], (4 * HID,), jnp.float32, -bound, bound)
    b_hh = jax.random.uniform(k[4], (4 * HID,), jnp.float32, -bound, bound)
    # Linear(HID, 1)
    w_lin = jax.random.uniform(k[5], (OUT_DIM, HID), jnp.float32, -bound, bound)
    b_lin = jax.random.uniform(k[6], (OUT_DIM,), jnp.float32, -bound, bound)

    # --- kernel layouts ---
    # Per-vocab-row fused input projection + bias: table[v] = emb[v] @ W_ih^T + (b_ih+b_hh).
    # (Embedding lookup, eval-mode dropout, x @ W_ih^T and both biases collapse into one
    #  in-kernel row gather.)  g-gate block pre-scaled by 2 for the sigmoid identity.
    gate_table = _prep_gate_matrix(emb @ w_ih.T + (b_ih + b_hh)[None, :],
                                   HID, HID_PAD, g_scale=2.0)          # (V, 4*Hp)
    gate_table_p = gate_table.reshape(VOCAB, 1, 4 * HID_PAD)           # leading gather axis

    whh_p = _prep_gate_matrix(w_hh.T, HID, HID_PAD, g_scale=2.0)       # (HID, 4*Hp)
    whh_p = jnp.pad(whh_p, ((0, HID_PAD - HID), (0, 0)))               # (Hp, 4*Hp)
    whh_p = whh_p.astype(jnp.bfloat16)                                 # bf16 weights, f32 accum

    wlin_p = jnp.pad(w_lin, ((0, 0), (0, HID_PAD - HID)))              # (1, Hp)
    blin_p = b_lin.reshape(1, 1)                                       # (1, 1)

    return {
        "embedding": emb,
        "w_ih": w_ih, "w_hh": w_hh, "b_ih": b_ih, "b_hh": b_hh,
        "w_lin": w_lin, "b_lin": b_lin,
        "gate_table_p": gate_table_p, "whh_p": whh_p,
        "wlin_p": wlin_p, "blin_p": blin_p,
    }


def reference_forward(tokens, params):
    """Pure-JAX f32 reference mirroring PyTorch semantics (dropout in eval = identity)."""
    x = jnp.take(params["embedding"], tokens, axis=0)   # (S, B, E)

    def step(carry, x_t):
        h, c = carry
        gates = (x_t @ params["w_ih"].T + h @ params["w_hh"].T
                 + params["b_ih"] + params["b_hh"])
        i_g, f_g, g_g, o_g = jnp.split(gates, 4, axis=-1)
        c = jax.nn.sigmoid(f_g) * c + jax.nn.sigmoid(i_g) * jnp.tanh(g_g)
        h = jax.nn.sigmoid(o_g) * jnp.tanh(c)
        return (h, c), None

    h0 = jnp.zeros((tokens.shape[1], HID), jnp.float32)
    (h, _), _ = jax.lax.scan(step, (h0, h0), x)
    return h @ params["w_lin"].T + params["b_lin"]


if __name__ == "__main__":
    key = jax.random.PRNGKey(0)
    pkey, tkey = jax.random.split(key)
    params = init_params(pkey)
    tokens = jax.random.randint(tkey, (SEQ, BATCH), 0, VOCAB, jnp.int32)

    out = jax.block_until_ready(lstm_model_forward(tokens, params))
    ref = jax.block_until_ready(reference_forward(tokens, params))

    assert out.shape == (BATCH, OUT_DIM)
    # Tolerance accounts for bf16 recurrent weights + bf16 h cast (f32 accumulation)
    # and the tanh == 2*sigmoid(2x)-1 rewrite vs. the pure-f32 reference.
    assert jnp.allclose(out, ref, rtol=2e-2, atol=1e-2), (out, ref)
    print("KERNEL_OK")
</pallas_src>

<mosaic_0001>
module attributes {stable_mosaic.version = 11 : i64} {
  func.func @_lstm_kernel(%arg0: memref<8x2xi32, #tpu.memory_space<smem>>, %arg1: memref<50x1x1024xf32, #tpu.memory_space<vmem>>, %arg2: memref<256x1024xbf16, #tpu.memory_space<vmem>>, %arg3: memref<1x256xf32, #tpu.memory_space<vmem>>, %arg4: memref<1x1xf32, #tpu.memory_space<vmem>>, %arg5: memref<2x128xf32, #tpu.memory_space<vmem>>) attributes {dimension_semantics = [], scalar_prefetch = 0 : i64, scratch_operands = 0 : i64, tpu.core_type = #tpu.core_type<tc>} {
    %c0 = arith.constant 0 : index
    %c0_0 = arith.constant 0 : index
    %0 = vector.load %arg2[%c0, %c0_0] : memref<256x1024xbf16, #tpu.memory_space<vmem>>, vector<256x1024xbf16>
    %cst = arith.constant 0.000000e+00 : f32
    %1 = vector.broadcast %cst : f32 to vector<2x256xf32>
    %cst_1 = arith.constant 0.000000e+00 : f32
    %2 = vector.broadcast %cst_1 : f32 to vector<2x256xf32>
    %c0_2 = arith.constant 0 : index
    %c0_3 = arith.constant 0 : index
    %3 = memref.load %arg0[%c0_2, %c0_3] : memref<8x2xi32, #tpu.memory_space<smem>>
    %4 = arith.index_cast %3 : i32 to index
    %c0_4 = arith.constant 0 : index
    %c0_5 = arith.constant 0 : index
    %5 = vector.load %arg1[%4, %c0_4, %c0_5] : memref<50x1x1024xf32, #tpu.memory_space<vmem>>, vector<1x1x1024xf32>
    %6 = vector.shape_cast %5 : vector<1x1x1024xf32> to vector<1x1024xf32>
    %c0_6 = arith.constant 0 : index
    %c1 = arith.constant 1 : index
    %7 = memref.load %arg0[%c0_6, %c1] : memref<8x2xi32, #tpu.memory_space<smem>>
    %8 = arith.index_cast %7 : i32 to index
    %c0_7 = arith.constant 0 : index
    %c0_8 = arith.constant 0 : index
    %9 = vector.load %arg1[%8, %c0_7, %c0_8] : memref<50x1x1024xf32, #tpu.memory_space<vmem>>, vector<1x1x1024xf32>
    %10 = vector.shape_cast %9 : vector<1x1x1024xf32> to vector<1x1024xf32>
    %11 = tpu.concatenate %6, %10 in 0 : vector<1x1024xf32>, vector<1x1024xf32> -> vector<2x1024xf32>
    %12 = arith.truncf %1 : vector<2x256xf32> to vector<2x256xbf16>
    %cst_9 = arith.constant dense<0.000000e+00> : vector<2x1024xf32>
    %13 = tpu.matmul %12, %0, %cst_9 {dimension_numbers = #tpu.dot_dimension_numbers<[1], [0], [0], [1], [0, 0, 1, 1], [], []>} : vector<2x256xbf16>, vector<256x1024xbf16>, vector<2x1024xf32> -> vector<2x1024xf32>
    %14 = arith.addf %11, %13 : vector<2x1024xf32>
    %15 = arith.negf %14 : vector<2x1024xf32>
    %16 = math.exp %15 : vector<2x1024xf32>
    %cst_10 = arith.constant 1.000000e+00 : f32
    %17 = vector.broadcast %cst_10 : f32 to vector<2x1024xf32>
    %18 = arith.addf %17, %16 : vector<2x1024xf32>
    %19 = arith.divf %17, %18 : vector<2x1024xf32>
    %20 = vector.extract_strided_slice %19 {offsets = [0, 0], sizes = [2, 256], strides = [1, 1]} : vector<2x1024xf32> to vector<2x256xf32>
    %21 = vector.extract_strided_slice %19 {offsets = [0, 256], sizes = [2, 256], strides = [1, 1]} : vector<2x1024xf32> to vector<2x256xf32>
    %22 = vector.extract_strided_slice %19 {offsets = [0, 512], sizes = [2, 256], strides = [1, 1]} : vector<2x1024xf32> to vector<2x256xf32>
    %cst_11 = arith.constant 2.000000e+00 : f32
    %23 = vector.broadcast %cst_11 : f32 to vector<2x256xf32>
    %24 = arith.mulf %23, %22 : vector<2x256xf32>
    %cst_12 = arith.constant 1.000000e+00 : f32
    %25 = vector.broadcast %cst_12 : f32 to vector<2x256xf32>
    %26 = arith.subf %24, %25 : vector<2x256xf32>
    %27 = vector.extract_strided_slice %19 {offsets = [0, 768], sizes = [2, 256], strides = [1, 1]} : vector<2x1024xf32> to vector<2x256xf32>
    %28 = arith.mulf %21, %2 : vector<2x256xf32>
    %29 = arith.mulf %20, %26 : vector<2x256xf32>
    %30 = arith.addf %28, %29 : vector<2x256xf32>
    %31 = math.tanh %30 : vector<2x256xf32>
    %32 = arith.mulf %27, %31 : vector<2x256xf32>
    %c1_13 = arith.constant 1 : index
    %c0_14 = arith.constant 0 : index
    %33 = memref.load %arg0[%c1_13, %c0_14] : memref<8x2xi32, #tpu.memory_space<smem>>
    %34 = arith.index_cast %33 : i32 to index
    %c0_15 = arith.constant 0 : index
    %c0_16 = arith.constant 0 : index
    %35 = vector.load %arg1[%34, %c0_15, %c0_16] : memref<50x1x1024xf32, #tpu.memory_space<vmem>>, vector<1x1x1024xf32>
    %36 = vector.shape_cast %35 : vector<1x1x1024xf32> to vector<1x1024xf32>
    %c1_17 = arith.constant 1 : index
    %c1_18 = arith.constant 1 : index
    %37 = memref.load %arg0[%c1_17, %c1_18] : memref<8x2xi32, #tpu.memory_space<smem>>
    %38 = arith.index_cast %37 : i32 to index
    %c0_19 = arith.constant 0 : index
    %c0_20 = arith.constant 0 : index
    %39 = vector.load %arg1[%38, %c0_19, %c0_20] : memref<50x1x1024xf32, #tpu.memory_space<vmem>>, vector<1x1x1024xf32>
    %40 = vector.shape_cast %39 : vector<1x1x1024xf32> to vector<1x1024xf32>
    %41 = tpu.concatenate %36, %40 in 0 : vector<1x1024xf32>, vector<1x1024xf32> -> vector<2x1024xf32>
    %42 = arith.truncf %32 : vector<2x256xf32> to vector<2x256xbf16>
    %cst_21 = arith.constant dense<0.000000e+00> : vector<2x1024xf32>
    %43 = tpu.matmul %42, %0, %cst_21 {dimension_numbers = #tpu.dot_dimension_numbers<[1], [0], [0], [1], [0, 0, 1, 1], [], []>} : vector<2x256xbf16>, vector<256x1024xbf16>, vector<2x1024xf32> -> vector<2x1024xf32>
    %44 = arith.addf %41, %43 : vector<2x1024xf32>
    %45 = arith.negf %44 : vector<2x1024xf32>
    %46 = math.exp %45 : vector<2x1024xf32>
    %cst_22 = arith.constant 1.000000e+00 : f32
    %47 = vector.broadcast %cst_22 : f32 to vector<2x1024xf32>
    %48 = arith.addf %47, %46 : vector<2x1024xf32>
    %49 = arith.divf %47, %48 : vector<2x1024xf32>
    %50 = vector.extract_strided_slice %49 {offsets = [0, 0], sizes = [2, 256], strides = [1, 1]} : vector<2x1024xf32> to vector<2x256xf32>
    %51 = vector.extract_strided_slice %49 {offsets = [0, 256], sizes = [2, 256], strides = [1, 1]} : vector<2x1024xf32> to vector<2x256xf32>
    %52 = vector.extract_strided_slice %49 {offsets = [0, 512], sizes = [2, 256], strides = [1, 1]} : vector<2x1024xf32> to vector<2x256xf32>
    %cst_23 = arith.constant 2.000000e+00 : f32
    %53 = vector.broadcast %cst_23 : f32 to vector<2x256xf32>
    %54 = arith.mulf %53, %52 : vector<2x256xf32>
    %cst_24 = arith.constant 1.000000e+00 : f32
    %55 = vector.broadcast %cst_24 : f32 to vector<2x256xf32>
    %56 = arith.subf %54, %55 : vector<2x256xf32>
    %57 = vector.extract_strided_slice %49 {offsets = [0, 768], sizes = [2, 256], strides = [1, 1]} : vector<2x1024xf32> to vector<2x256xf32>
    %58 = arith.mulf %51, %30 : vector<2x256xf32>
    %59 = arith.mulf %50, %56 : vector<2x256xf32>
    %60 = arith.addf %58, %59 : vector<2x256xf32>
    %61 = math.tanh %60 : vector<2x256xf32>
    %62 = arith.mulf %57, %61 : vector<2x256xf32>
    %c2 = arith.constant 2 : index
    %c0_25 = arith.constant 0 : index
    %63 = memref.load %arg0[%c2, %c0_25] : memref<8x2xi32, #tpu.memory_space<smem>>
    %64 = arith.index_cast %63 : i32 to index
    %c0_26 = arith.constant 0 : index
    %c0_27 = arith.constant 0 : index
    %65 = vector.load %arg1[%64, %c0_26, %c0_27] : memref<50x1x1024xf32, #tpu.memory_space<vmem>>, vector<1x1x1024xf32>
    %66 = vector.shape_cast %65 : vector<1x1x1024xf32> to vector<1x1024xf32>
    %c2_28 = arith.constant 2 : index
    %c1_29 = arith.constant 1 : index
    %67 = memref.load %arg0[%c2_28, %c1_29] : memref<8x2xi32, #tpu.memory_space<smem>>
    %68 = arith.index_cast %67 : i32 to index
    %c0_30 = arith.constant 0 : index
    %c0_31 = arith.constant 0 : index
    %69 = vector.load %arg1[%68, %c0_30, %c0_31] : memref<50x1x1024xf32, #tpu.memory_space<vmem>>, vector<1x1x1024xf32>
    %70 = vector.shape_cast %69 : vector<1x1x1024xf32> to vector<1x1024xf32>
    %71 = tpu.concatenate %66, %70 in 0 : vector<1x1024xf32>, vector<1x1024xf32> -> vector<2x1024xf32>
    %72 = arith.truncf %62 : vector<2x256xf32> to vector<2x256xbf16>
    %cst_32 = arith.constant dense<0.000000e+00> : vector<2x1024xf32>
    %73 = tpu.matmul %72, %0, %cst_32 {dimension_numbers = #tpu.dot_dimension_numbers<[1], [0], [0], [1], [0, 0, 1, 1], [], []>} : vector<2x256xbf16>, vector<256x1024xbf16>, vector<2x1024xf32> -> vector<2x1024xf32>
    %74 = arith.addf %71, %73 : vector<2x1024xf32>
    %75 = arith.negf %74 : vector<2x1024xf32>
    %76 = math.exp %75 : vector<2x1024xf32>
    %cst_33 = arith.constant 1.000000e+00 : f32
    %77 = vector.broadcast %cst_33 : f32 to vector<2x1024xf32>
    %78 = arith.addf %77, %76 : vector<2x1024xf32>
    %79 = arith.divf %77, %78 : vector<2x1024xf32>
    %80 = vector.extract_strided_slice %79 {offsets = [0, 0], sizes = [2, 256], strides = [1, 1]} : vector<2x1024xf32> to vector<2x256xf32>
    %81 = vector.extract_strided_slice %79 {offsets = [0, 256], sizes = [2, 256], strides = [1, 1]} : vector<2x1024xf32> to vector<2x256xf32>
    %82 = vector.extract_strided_slice %79 {offsets = [0, 512], sizes = [2, 256], strides = [1, 1]} : vector<2x1024xf32> to vector<2x256xf32>
    %cst_34 = arith.constant 2.000000e+00 : f32
    %83 = vector.broadcast %cst_34 : f32 to vector<2x256xf32>
    %84 = arith.mulf %83, %82 : vector<2x256xf32>
    %cst_35 = arith.constant 1.000000e+00 : f32
    %85 = vector.broadcast %cst_35 : f32 to vector<2x256xf32>
    %86 = arith.subf %84, %85 : vector<2x256xf32>
    %87 = vector.extract_strided_slice %79 {offsets = [0, 768], sizes = [2, 256], strides = [1, 1]} : vector<2x1024xf32> to vector<2x256xf32>
    %88 = arith.mulf %81, %60 : vector<2x256xf32>
    %89 = arith.mulf %80, %86 : vector<2x256xf32>
    %90 = arith.addf %88, %89 : vector<2x256xf32>
    %91 = math.tanh %90 : vector<2x256xf32>
    %92 = arith.mulf %87, %91 : vector<2x256xf32>
    %c3 = arith.constant 3 : index
    %c0_36 = arith.constant 0 : index
    %93 = memref.load %arg0[%c3, %c0_36] : memref<8x2xi32, #tpu.memory_space<smem>>
    %94 = arith.index_cast %93 : i32 to index
    %c0_37 = arith.constant 0 : index
    %c0_38 = arith.constant 0 : index
    %95 = vector.load %arg1[%94, %c0_37, %c0_38] : memref<50x1x1024xf32, #tpu.memory_space<vmem>>, vector<1x1x1024xf32>
    %96 = vector.shape_cast %95 : vector<1x1x1024xf32> to vector<1x1024xf32>
    %c3_39 = arith.constant 3 : index
    %c1_40 = arith.constant 1 : index
    %97 = memref.load %arg0[%c3_39, %c1_40] : memref<8x2xi32, #tpu.memory_space<smem>>
    %98 = arith.index_cast %97 : i32 to index
    %c0_41 = arith.constant 0 : index
    %c0_42 = arith.constant 0 : index
    %99 = vector.load %arg1[%98, %c0_41, %c0_42] : memref<50x1x1024xf32, #tpu.memory_space<vmem>>, vector<1x1x1024xf32>
    %100 = vector.shape_cast %99 : vector<1x1x1024xf32> to vector<1x1024xf32>
    %101 = tpu.concatenate %96, %100 in 0 : vector<1x1024xf32>, vector<1x1024xf32> -> vector<2x1024xf32>
    %102 = arith.truncf %92 : vector<2x256xf32> to vector<2x256xbf16>
    %cst_43 = arith.constant dense<0.000000e+00> : vector<2x1024xf32>
    %103 = tpu.matmul %102, %0, %cst_43 {dimension_numbers = #tpu.dot_dimension_numbers<[1], [0], [0], [1], [0, 0, 1, 1], [], []>} : vector<2x256xbf16>, vector<256x1024xbf16>, vector<2x1024xf32> -> vector<2x1024xf32>
    %104 = arith.addf %101, %103 : vector<2x1024xf32>
    %105 = arith.negf %104 : vector<2x1024xf32>
    %106 = math.exp %105 : vector<2x1024xf32>
    %cst_44 = arith.constant 1.000000e+00 : f32
    %107 = vector.broadcast %cst_44 : f32 to vector<2x1024xf32>
    %108 = arith.addf %107, %106 : vector<2x1024xf32>
    %109 = arith.divf %107, %108 : vector<2x1024xf32>
    %110 = vector.extract_strided_slice %109 {offsets = [0, 0], sizes = [2, 256], strides = [1, 1]} : vector<2x1024xf32> to vector<2x256xf32>
    %111 = vector.extract_strided_slice %109 {offsets = [0, 256], sizes = [2, 256], strides = [1, 1]} : vector<2x1024xf32> to vector<2x256xf32>
    %112 = vector.extract_strided_slice %109 {offsets = [0, 512], sizes = [2, 256], strides = [1, 1]} : vector<2x1024xf32> to vector<2x256xf32>
    %cst_45 = arith.constant 2.000000e+00 : f32
    %113 = vector.broadcast %cst_45 : f32 to vector<2x256xf32>
    %114 = arith.mulf %113, %112 : vector<2x256xf32>
    %cst_46 = arith.constant 1.000000e+00 : f32
    %115 = vector.broadcast %cst_46 : f32 to vector<2x256xf32>
    %116 = arith.subf %114, %115 : vector<2x256xf32>
    %117 = vector.extract_strided_slice %109 {offsets = [0, 768], sizes = [2, 256], strides = [1, 1]} : vector<2x1024xf32> to vector<2x256xf32>
    %118 = arith.mulf %111, %90 : vector<2x256xf32>
    %119 = arith.mulf %110, %116 : vector<2x256xf32>
    %120 = arith.addf %118, %119 : vector<2x256xf32>
    %121 = math.tanh %120 : vector<2x256xf32>
    %122 = arith.mulf %117, %121 : vector<2x256xf32>
    %c4 = arith.constant 4 : index
    %c0_47 = arith.constant 0 : index
    %123 = memref.load %arg0[%c4, %c0_47] : memref<8x2xi32, #tpu.memory_space<smem>>
    %124 = arith.index_cast %123 : i32 to index
    %c0_48 = arith.constant 0 : index
    %c0_49 = arith.constant 0 : index
    %125 = vector.load %arg1[%124, %c0_48, %c0_49] : memref<50x1x1024xf32, #tpu.memory_space<vmem>>, vector<1x1x1024xf32>
    %126 = vector.shape_cast %125 : vector<1x1x1024xf32> to vector<1x1024xf32>
    %c4_50 = arith.constant 4 : index
    %c1_51 = arith.constant 1 : index
    %127 = memref.load %arg0[%c4_50, %c1_51] : memref<8x2xi32, #tpu.memory_space<smem>>
    %128 = arith.index_cast %127 : i32 to index
    %c0_52 = arith.constant 0 : index
    %c0_53 = arith.constant 0 : index
    %129 = vector.load %arg1[%128, %c0_52, %c0_53] : memref<50x1x1024xf32, #tpu.memory_space<vmem>>, vector<1x1x1024xf32>
    %130 = vector.shape_cast %129 : vector<1x1x1024xf32> to vector<1x1024xf32>
    %131 = tpu.concatenate %126, %130 in 0 : vector<1x1024xf32>, vector<1x1024xf32> -> vector<2x1024xf32>
    %132 = arith.truncf %122 : vector<2x256xf32> to vector<2x256xbf16>
    %cst_54 = arith.constant dense<0.000000e+00> : vector<2x1024xf32>
    %133 = tpu.matmul %132, %0, %cst_54 {dimension_numbers = #tpu.dot_dimension_numbers<[1], [0], [0], [1], [0, 0, 1, 1], [], []>} : vector<2x256xbf16>, vector<256x1024xbf16>, vector<2x1024xf32> -> vector<2x1024xf32>
    %134 = arith.addf %131, %133 : vector<2x1024xf32>
    %135 = arith.negf %134 : vector<2x1024xf32>
    %136 = math.exp %135 : vector<2x1024xf32>
    %cst_55 = arith.constant 1.000000e+00 : f32
    %137 = vector.broadcast %cst_55 : f32 to vector<2x1024xf32>
    %138 = arith.addf %137, %136 : vector<2x1024xf32>
    %139 = arith.divf %137, %138 : vector<2x1024xf32>
    %140 = vector.extract_strided_slice %139 {offsets = [0, 0], sizes = [2, 256], strides = [1, 1]} : vector<2x1024xf32> to vector<2x256xf32>
    %141 = vector.extract_strided_slice %139 {offsets = [0, 256], sizes = [2, 256], strides = [1, 1]} : vector<2x1024xf32> to vector<2x256xf32>
    %142 = vector.extract_strided_slice %139 {offsets = [0, 512], sizes = [2, 256], strides = [1, 1]} : vector<2x1024xf32> to vector<2x256xf32>
    %cst_56 = arith.constant 2.000000e+00 : f32
    %143 = vector.broadcast %cst_56 : f32 to vector<2x256xf32>
    %144 = arith.mulf %143, %142 : vector<2x256xf32>
    %cst_57 = arith.constant 1.000000e+00 : f32
    %145 = vector.broadcast %cst_57 : f32 to vector<2x256xf32>
    %146 = arith.subf %144, %145 : vector<2x256xf32>
    %147 = vector.extract_strided_slice %139 {offsets = [0, 768], sizes = [2, 256], strides = [1, 1]} : vector<2x1024xf32> to vector<2x256xf32>
    %148 = arith.mulf %141, %120 : vector<2x256xf32>
    %149 = arith.mulf %140, %146 : vector<2x256xf32>
    %150 = arith.addf %148, %149 : vector<2x256xf32>
    %151 = math.tanh %150 : vector<2x256xf32>
    %152 = arith.mulf %147, %151 : vector<2x256xf32>
    %c5 = arith.constant 5 : index
    %c0_58 = arith.constant 0 : index
    %153 = memref.load %arg0[%c5, %c0_58] : memref<8x2xi32, #tpu.memory_space<smem>>
    %154 = arith.index_cast %153 : i32 to index
    %c0_59 = arith.constant 0 : index
    %c0_60 = arith.constant 0 : index
    %155 = vector.load %arg1[%154, %c0_59, %c0_60] : memref<50x1x1024xf32, #tpu.memory_space<vmem>>, vector<1x1x1024xf32>
    %156 = vector.shape_cast %155 : vector<1x1x1024xf32> to vector<1x1024xf32>
    %c5_61 = arith.constant 5 : index
    %c1_62 = arith.constant 1 : index
    %157 = memref.load %arg0[%c5_61, %c1_62] : memref<8x2xi32, #tpu.memory_space<smem>>
    %158 = arith.index_cast %157 : i32 to index
    %c0_63 = arith.constant 0 : index
    %c0_64 = arith.constant 0 : index
    %159 = vector.load %arg1[%158, %c0_63, %c0_64] : memref<50x1x1024xf32, #tpu.memory_space<vmem>>, vector<1x1x1024xf32>
    %160 = vector.shape_cast %159 : vector<1x1x1024xf32> to vector<1x1024xf32>
    %161 = tpu.concatenate %156, %160 in 0 : vector<1x1024xf32>, vector<1x1024xf32> -> vector<2x1024xf32>
    %162 = arith.truncf %152 : vector<2x256xf32> to vector<2x256xbf16>
    %cst_65 = arith.constant dense<0.000000e+00> : vector<2x1024xf32>
    %163 = tpu.matmul %162, %0, %cst_65 {dimension_numbers = #tpu.dot_dimension_numbers<[1], [0], [0], [1], [0, 0, 1, 1], [], []>} : vector<2x256xbf16>, vector<256x1024xbf16>, vector<2x1024xf32> -> vector<2x1024xf32>
    %164 = arith.addf %161, %163 : vector<2x1024xf32>
    %165 = arith.negf %164 : vector<2x1024xf32>
    %166 = math.exp %165 : vector<2x1024xf32>
    %cst_66 = arith.constant 1.000000e+00 : f32
    %167 = vector.broadcast %cst_66 : f32 to vector<2x1024xf32>
    %168 = arith.addf %167, %166 : vector<2x1024xf32>
    %169 = arith.divf %167, %168 : vector<2x1024xf32>
    %170 = vector.extract_strided_slice %169 {offsets = [0, 0], sizes = [2, 256], strides = [1, 1]} : vector<2x1024xf32> to vector<2x256xf32>
    %171 = vector.extract_strided_slice %169 {offsets = [0, 256], sizes = [2, 256], strides = [1, 1]} : vector<2x1024xf32> to vector<2x256xf32>
    %172 = vector.extract_strided_slice %169 {offsets = [0, 512], sizes = [2, 256], strides = [1, 1]} : vector<2x1024xf32> to vector<2x256xf32>
    %cst_67 = arith.constant 2.000000e+00 : f32
    %173 = vector.broadcast %cst_67 : f32 to vector<2x256xf32>
    %174 = arith.mulf %173, %172 : vector<2x256xf32>
    %cst_68 = arith.constant 1.000000e+00 : f32
    %175 = vector.broadcast %cst_68 : f32 to vector<2x256xf32>
    %176 = arith.subf %174, %175 : vector<2x256xf32>
    %177 = vector.extract_strided_slice %169 {offsets = [0, 768], sizes = [2, 256], strides = [1, 1]} : vector<2x1024xf32> to vector<2x256xf32>
    %178 = arith.mulf %171, %150 : vector<2x256xf32>
    %179 = arith.mulf %170, %176 : vector<2x256xf32>
    %180 = arith.addf %178, %179 : vector<2x256xf32>
    %181 = math.tanh %180 : vector<2x256xf32>
    %182 = arith.mulf %177, %181 : vector<2x256xf32>
    %c6 = arith.constant 6 : index
    %c0_69 = arith.constant 0 : index
    %183 = memref.load %arg0[%c6, %c0_69] : memref<8x2xi32, #tpu.memory_space<smem>>
    %184 = arith.index_cast %183 : i32 to index
    %c0_70 = arith.constant 0 : index
    %c0_71 = arith.constant 0 : index
    %185 = vector.load %arg1[%184, %c0_70, %c0_71] : memref<50x1x1024xf32, #tpu.memory_space<vmem>>, vector<1x1x1024xf32>
    %186 = vector.shape_cast %185 : vector<1x1x1024xf32> to vector<1x1024xf32>
    %c6_72 = arith.constant 6 : index
    %c1_73 = arith.constant 1 : index
    %187 = memref.load %arg0[%c6_72, %c1_73] : memref<8x2xi32, #tpu.memory_space<smem>>
    %188 = arith.index_cast %187 : i32 to index
    %c0_74 = arith.constant 0 : index
    %c0_75 = arith.constant 0 : index
    %189 = vector.load %arg1[%188, %c0_74, %c0_75] : memref<50x1x1024xf32, #tpu.memory_space<vmem>>, vector<1x1x1024xf32>
    %190 = vector.shape_cast %189 : vector<1x1x1024xf32> to vector<1x1024xf32>
    %191 = tpu.concatenate %186, %190 in 0 : vector<1x1024xf32>, vector<1x1024xf32> -> vector<2x1024xf32>
    %192 = arith.truncf %182 : vector<2x256xf32> to vector<2x256xbf16>
    %cst_76 = arith.constant dense<0.000000e+00> : vector<2x1024xf32>
    %193 = tpu.matmul %192, %0, %cst_76 {dimension_numbers = #tpu.dot_dimension_numbers<[1], [0], [0], [1], [0, 0, 1, 1], [], []>} : vector<2x256xbf16>, vector<256x1024xbf16>, vector<2x1024xf32> -> vector<2x1024xf32>
    %194 = arith.addf %191, %193 : vector<2x1024xf32>
    %195 = arith.negf %194 : vector<2x1024xf32>
    %196 = math.exp %195 : vector<2x1024xf32>
    %cst_77 = arith.constant 1.000000e+00 : f32
    %197 = vector.broadcast %cst_77 : f32 to vector<2x1024xf32>
    %198 = arith.addf %197, %196 : vector<2x1024xf32>
    %199 = arith.divf %197, %198 : vector<2x1024xf32>
    %200 = vector.extract_strided_slice %199 {offsets = [0, 0], sizes = [2, 256], strides = [1, 1]} : vector<2x1024xf32> to vector<2x256xf32>
    %201 = vector.extract_strided_slice %199 {offsets = [0, 256], sizes = [2, 256], strides = [1, 1]} : vector<2x1024xf32> to vector<2x256xf32>
    %202 = vector.extract_strided_slice %199 {offsets = [0, 512], sizes = [2, 256], strides = [1, 1]} : vector<2x1024xf32> to vector<2x256xf32>
    %cst_78 = arith.constant 2.000000e+00 : f32
    %203 = vector.broadcast %cst_78 : f32 to vector<2x256xf32>
    %204 = arith.mulf %203, %202 : vector<2x256xf32>
    %cst_79 = arith.constant 1.000000e+00 : f32
    %205 = vector.broadcast %cst_79 : f32 to vector<2x256xf32>
    %206 = arith.subf %204, %205 : vector<2x256xf32>
    %207 = vector.extract_strided_slice %199 {offsets = [0, 768], sizes = [2, 256], strides = [1, 1]} : vector<2x1024xf32> to vector<2x256xf32>
    %208 = arith.mulf %201, %180 : vector<2x256xf32>
    %209 = arith.mulf %200, %206 : vector<2x256xf32>
    %210 = arith.addf %208, %209 : vector<2x256xf32>
    %211 = math.tanh %210 : vector<2x256xf32>
    %212 = arith.mulf %207, %211 : vector<2x256xf32>
    %c7 = arith.constant 7 : index
    %c0_80 = arith.constant 0 : index
    %213 = memref.load %arg0[%c7, %c0_80] : memref<8x2xi32, #tpu.memory_space<smem>>
    %214 = arith.index_cast %213 : i32 to index
    %c0_81 = arith.constant 0 : index
    %c0_82 = arith.constant 0 : index
    %215 = vector.load %arg1[%214, %c0_81, %c0_82] : memref<50x1x1024xf32, #tpu.memory_space<vmem>>, vector<1x1x1024xf32>
    %216 = vector.shape_cast %215 : vector<1x1x1024xf32> to vector<1x1024xf32>
    %c7_83 = arith.constant 7 : index
    %c1_84 = arith.constant 1 : index
    %217 = memref.load %arg0[%c7_83, %c1_84] : memref<8x2xi32, #tpu.memory_space<smem>>
    %218 = arith.index_cast %217 : i32 to index
    %c0_85 = arith.constant 0 : index
    %c0_86 = arith.constant 0 : index
    %219 = vector.load %arg1[%218, %c0_85, %c0_86] : memref<50x1x1024xf32, #tpu.memory_space<vmem>>, vector<1x1x1024xf32>
    %220 = vector.shape_cast %219 : vector<1x1x1024xf32> to vector<1x1024xf32>
    %221 = tpu.concatenate %216, %220 in 0 : vector<1x1024xf32>, vector<1x1024xf32> -> vector<2x1024xf32>
    %222 = arith.truncf %212 : vector<2x256xf32> to vector<2x256xbf16>
    %cst_87 = arith.constant dense<0.000000e+00> : vector<2x1024xf32>
    %223 = tpu.matmul %222, %0, %cst_87 {dimension_numbers = #tpu.dot_dimension_numbers<[1], [0], [0], [1], [0, 0, 1, 1], [], []>} : vector<2x256xbf16>, vector<256x1024xbf16>, vector<2x1024xf32> -> vector<2x1024xf32>
    %224 = arith.addf %221, %223 : vector<2x1024xf32>
    %225 = arith.negf %224 : vector<2x1024xf32>
    %226 = math.exp %225 : vector<2x1024xf32>
    %cst_88 = arith.constant 1.000000e+00 : f32
    %227 = vector.broadcast %cst_88 : f32 to vector<2x1024xf32>
    %228 = arith.addf %227, %226 : vector<2x1024xf32>
    %229 = arith.divf %227, %228 : vector<2x1024xf32>
    %230 = vector.extract_strided_slice %229 {offsets = [0, 0], sizes = [2, 256], strides = [1, 1]} : vector<2x1024xf32> to vector<2x256xf32>
    %231 = vector.extract_strided_slice %229 {offsets = [0, 256], sizes = [2, 256], strides = [1, 1]} : vector<2x1024xf32> to vector<2x256xf32>
    %232 = vector.extract_strided_slice %229 {offsets = [0, 512], sizes = [2, 256], strides = [1, 1]} : vector<2x1024xf32> to vector<2x256xf32>
    %cst_89 = arith.constant 2.000000e+00 : f32
    %233 = vector.broadcast %cst_89 : f32 to vector<2x256xf32>
    %234 = arith.mulf %233, %232 : vector<2x256xf32>
    %cst_90 = arith.constant 1.000000e+00 : f32
    %235 = vector.broadcast %cst_90 : f32 to vector<2x256xf32>
    %236 = arith.subf %234, %235 : vector<2x256xf32>
    %237 = vector.extract_strided_slice %229 {offsets = [0, 768], sizes = [2, 256], strides = [1, 1]} : vector<2x1024xf32> to vector<2x256xf32>
    %238 = arith.mulf %231, %210 : vector<2x256xf32>
    %239 = arith.mulf %230, %236 : vector<2x256xf32>
    %240 = arith.addf %238, %239 : vector<2x256xf32>
    %241 = math.tanh %240 : vector<2x256xf32>
    %242 = arith.mulf %237, %241 : vector<2x256xf32>
    %c0_91 = arith.constant 0 : index
    %c0_92 = arith.constant 0 : index
    %243 = vector.load %arg3[%c0_91, %c0_92] : memref<1x256xf32, #tpu.memory_space<vmem>>, vector<1x256xf32>
    %244 = vector.broadcast %243 : vector<1x256xf32> to vector<2x256xf32>
    %245 = arith.mulf %242, %244 : vector<2x256xf32>
    %cst_93 = arith.constant dense<0.000000e+00> : vector<2xf32>
    %246 = vector.multi_reduction <add>, %245, %cst_93 [1] : vector<2x256xf32> to vector<2xf32>
    %247 = vector.shape_cast %246 : vector<2xf32> to vector<2x1xf32>
    %c0_94 = arith.constant 0 : index
    %c0_95 = arith.constant 0 : index
    %248 = vector.load %arg4[%c0_94, %c0_95] : memref<1x1xf32, #tpu.memory_space<vmem>>, vector<1x1xf32>
    %249 = vector.broadcast %248 : vector<1x1xf32> to vector<2x1xf32>
    %250 = arith.addf %247, %249 : vector<2x1xf32>
    %251 = vector.shape_cast %250 : vector<2x1xf32> to vector<2x1xf32>
    %252 = vector.broadcast %251 : vector<2x1xf32> to vector<2x128xf32>
    %c0_96 = arith.constant 0 : index
    %c0_97 = arith.constant 0 : index
    %253 = vector.load %arg5[%c0_96, %c0_97] : memref<2x128xf32, #tpu.memory_space<vmem>>, vector<2x128xf32>
    tpu.vector_store %arg5[%c0_96, %c0_97], %252 {strides = array<i32>} : memref<2x128xf32, #tpu.memory_space<vmem>>, vector<2x128xf32>,
    return
  }
}

</mosaic_0001>

<llo_original>
// kernel: tpu_custom_call.1
$region0: #{tpu_custom_call.1}
  #allocation0 [shape = 'u32[]', space=smem, size = 0x4, offset = 0x4, fixed_abs, tag = 'smem constant byte address 0x4 - core index']
  #allocation1 [shape = 'u32[144,128]{1,0:T(1,128)}', space=vmem, size = 0x12000, scoped, tag = 'internal scratch']
  #allocation2 [shape = 'f32[1,1]{1,0:T(1,128)S(1)}', space=vmem, size = 0x200, scoped, tag = 'scoped memory for tpu_custom_call.1']
  %s0 = inlined_call_operand.vmem [shape: s32[8,2], index: 0, kind: input, shape index: {}]
  %s1 = inlined_call_operand.hbm [shape: f32[50,1,1024], index: 1, kind: input, shape index: {}]
  %s2 = inlined_call_operand.hbm [shape: bf16[256,1024], index: 2, kind: input, shape index: {}]
  %s3 = inlined_call_operand.vmem [shape: f32[1,256], index: 3, kind: input, shape index: {}]
  %s4 = inlined_call_operand.<no memory space> [shape: f32[1,1], index: 4, kind: input, shape index: {}]
  %s5 = inlined_call_operand.hbm [shape: f32[2,128], index: 5, kind: output, shape index: {}]
  %s6 = sld [smem:[#allocation0]]
  $region42: #{tpu_custom_call.1} parent=0
    _
  %s8 = ssub.s32 1, %s6
  %s9 = scalar_select 0, %s8, %s6
  %v10 = vstv %s4
  %11 = vst [vmem:[#allocation2] sm:$0x1] %v10
  $region1: #{tpu_custom_call.1} parent=0
    #allocation3 [shape = 'u8[4096]{0}', space=smem, size = 0x1000, scoped, tag = 'input window, operand 0, single buffered']
    #allocation4 [shape = 's32[1]{0}', space=sflag, size = 0x4, scoped, tag = 'scoped memory for tpu_custom_call.1']
    #allocation5 [shape = 's32[1]{0}', space=sflag, size = 0x4, scoped, tag = 'scoped memory for tpu_custom_call.1']
    #allocation6 [shape = 's32[1]{0}', space=sflag, size = 0x4, scoped, tag = 'scoped memory for tpu_custom_call.1']
    #allocation7 [shape = 'u8[204800]{0}', space=vmem, size = 0x32000, scoped, tag = 'input window, operand 1, single buffered']
    #allocation8 [shape = 'u8[524288]{0}', space=vmem, size = 0x80000, scoped, tag = 'input window, operand 2, single buffered']
    #allocation9 [shape = 's32[1]{0}', space=sflag, size = 0x4, scoped, tag = 'scoped memory for tpu_custom_call.1']
    #allocation10 [shape = 'u8[1024]{0}', space=vmem, size = 0x400, scoped, tag = 'output window, operand 0, single buffered']
    %12 = vsyncpa [#allocation6], 0
    %13 = vsyncpa [#allocation4], 0
    %14 = vsyncpa [#allocation9], 0
    %15 = vsyncpa [#allocation5], 0
    // Predicated region
    $region2: #{tpu_custom_call.1} parent=1 // pred_check
      _
    $region3: #{tpu_custom_call.1} parent=1 // pred_check_branch
      %17 = sbr.rel (0) target = $region5
    $region4: #{tpu_custom_call.1} parent=1 // pred_region
      %s19 = ssub.s32 128, 128
      %20 = vsyncadd [#allocation6], %s19
      %s22 = sshll.u32 %s0, 4
      %s23 = int_to_ptr.vmem [resolvable:$true] %s22
      %25 = dma.vmem_to_smem %s23, 128, [#allocation3], [#allocation6]
    $region5: #{tpu_custom_call.1} parent=1 // pred_fallthru
      _
    // Predicated region
    $region6: #{tpu_custom_call.1} parent=1 // pred_check
      _
    $region7: #{tpu_custom_call.1} parent=1 // pred_check_branch
      %27 = sbr.rel (0) target = $region9
    $region8: #{tpu_custom_call.1} parent=1 // pred_region
      %s29 = ssub.s32 6400, 6400
      %30 = vsyncadd [#allocation4], %s29
      %s31 = sshll.u32 [#allocation7], 4
      %s32 = int_to_ptr.vmem [resolvable:$true] %s31
      %37 = dma.hbm_to_vmem [thread:$0]  %s1, 6400, %s32, [#allocation4], 128, 128, 8
    $region9: #{tpu_custom_call.1} parent=1 // pred_fallthru
      _
    // Predicated region
    $region10: #{tpu_custom_call.1} parent=1 // pred_check
      _
    $region11: #{tpu_custom_call.1} parent=1 // pred_check_branch
      %39 = sbr.rel (0) target = $region13
    $region12: #{tpu_custom_call.1} parent=1 // pred_region
      %s41 = ssub.s32 16384, 16384
      %42 = vsyncadd [#allocation9], %s41
      %s43 = sshll.u32 [#allocation8], 4
      %s44 = int_to_ptr.vmem [resolvable:$true] %s43
      %49 = dma.hbm_to_vmem [thread:$0]  %s2, 16384, %s44, [#allocation9], 512, 512, 32
    $region13: #{tpu_custom_call.1} parent=1 // pred_fallthru
      _
    // Predicated region
    $region14: #{tpu_custom_call.1} parent=1 // pred_check
      _
    $region15: #{tpu_custom_call.1} parent=1 // pred_check_branch
      %51 = sbr.rel (0) target = $region17
    $region16: #{tpu_custom_call.1} parent=1 // pred_region
      _
    $region17: #{tpu_custom_call.1} parent=1 // pred_fallthru
      _
    // Predicated region
    $region18: #{tpu_custom_call.1} parent=1 // pred_check
      _
    $region19: #{tpu_custom_call.1} parent=1 // pred_check_branch
      %53 = sbr.rel (0) target = $region21
    $region20: #{tpu_custom_call.1} parent=1 // pred_region
      _
    $region21: #{tpu_custom_call.1} parent=1 // pred_fallthru
      _
    // Predicated region
    $region22: #{tpu_custom_call.1} parent=1 // pred_check
      _
    $region23: #{tpu_custom_call.1} parent=1 // pred_check_branch
      %55 = sbr.rel (0) target = $region25
    $region24: #{tpu_custom_call.1} parent=1 // pred_region
      %56 = dma.done [#allocation6], 128
    $region25: #{tpu_custom_call.1} parent=1 // pred_fallthru
      _
    // Predicated region
    $region26: #{tpu_custom_call.1} parent=1 // pred_check
      _
    $region27: #{tpu_custom_call.1} parent=1 // pred_check_branch
      %58 = sbr.rel (0) target = $region29
    $region28: #{tpu_custom_call.1} parent=1 // pred_region
      %59 = dma.done [#allocation4], 6400
    $region29: #{tpu_custom_call.1} parent=1 // pred_fallthru
      _
    // Predicated region
    $region30: #{tpu_custom_call.1} parent=1 // pred_check
      _
    $region31: #{tpu_custom_call.1} parent=1 // pred_check_branch
      %61 = sbr.rel (0) target = $region33
    $region32: #{tpu_custom_call.1} parent=1 // pred_region
      %62 = dma.done [#allocation9], 16384
    $region33: #{tpu_custom_call.1} parent=1 // pred_fallthru
      _
    %63 = sfence
    %v65 = vld [vmem:[#allocation8] sm:$0xff]
    %v66 = vld [vmem:[#allocation8 + $0x8] sm:$0xff]
    %v67 = vld [vmem:[#allocation8 + $0x10] sm:$0xff]
    %v68 = vld [vmem:[#allocation8 + $0x18] sm:$0xff]
    %v69 = vld [vmem:[#allocation8 + $0x20] sm:$0xff]
    %v70 = vld [vmem:[#allocation8 + $0x28] sm:$0xff]
    %v71 = vld [vmem:[#allocation8 + $0x30] sm:$0xff]
    %v72 = vld [vmem:[#allocation8 + $0x38] sm:$0xff]
    %v73 = vld [vmem:[#allocation8 + $0x40] sm:$0xff]
    %v74 = vld [vmem:[#allocation8 + $0x48] sm:$0xff]
    %v75 = vld [vmem:[#allocation8 + $0x50] sm:$0xff]
    %v76 = vld [vmem:[#allocation8 + $0x58] sm:$0xff]
    %v77 = vld [vmem:[#allocation8 + $0x60] sm:$0xff]
    %v78 = vld [vmem:[#allocation8 + $0x68] sm:$0xff]
    %v79 = vld [vmem:[#allocation8 + $0x70] sm:$0xff]
    %v80 = vld [vmem:[#allocation8 + $0x78] sm:$0xff]
    %v81 = vld [vmem:[#allocation8 + $0x80] sm:$0xff]
    %v82 = vld [vmem:[#allocation8 + $0x88] sm:$0xff]
    %v83 = vld [vmem:[#allocation8 + $0x90] sm:$0xff]
    %v84 = vld [vmem:[#allocation8 + $0x98] sm:$0xff]
    %v85 = vld [vmem:[#allocation8 + $0xa0] sm:$0xff]
    %v86 = vld [vmem:[#allocation8 + $0xa8] sm:$0xff]
    %v87 = vld [vmem:[#allocation8 + $0xb0] sm:$0xff]
    %v88 = vld [vmem:[#allocation8 + $0xb8] sm:$0xff]
    %v89 = vld [vmem:[#allocation8 + $0xc0] sm:$0xff]
    %v90 = vld [vmem:[#allocation8 + $0xc8] sm:$0xff]
    %v91 = vld [vmem:[#allocation8 + $0xd0] sm:$0xff]
    %v92 = vld [vmem:[#allocation8 + $0xd8] sm:$0xff]
    %v93 = vld [vmem:[#allocation8 + $0xe0] sm:$0xff]
    %v94 = vld [vmem:[#allocation8 + $0xe8] sm:$0xff]
    %v95 = vld [vmem:[#allocation8 + $0xf0] sm:$0xff]
    %v96 = vld [vmem:[#allocation8 + $0xf8] sm:$0xff]
    %v97 = vld [vmem:[#allocation8 + $0x100] sm:$0xff]
    %v98 = vld [vmem:[#allocation8 + $0x108] sm:$0xff]
    %v99 = vld [vmem:[#allocation8 + $0x110] sm:$0xff]
    %v100 = vld [vmem:[#allocation8 + $0x118] sm:$0xff]
    %v101 = vld [vmem:[#allocation8 + $0x120] sm:$0xff]
    %v102 = vld [vmem:[#allocation8 + $0x128] sm:$0xff]
    %v103 = vld [vmem:[#allocation8 + $0x130] sm:$0xff]
    %v104 = vld [vmem:[#allocation8 + $0x138] sm:$0xff]
    %v105 = vld [vmem:[#allocation8 + $0x140] sm:$0xff]
    %v106 = vld [vmem:[#allocation8 + $0x148] sm:$0xff]
    %v107 = vld [vmem:[#allocation8 + $0x150] sm:$0xff]
    %v108 = vld [vmem:[#allocation8 + $0x158] sm:$0xff]
    %v109 = vld [vmem:[#allocation8 + $0x160] sm:$0xff]
    %v110 = vld [vmem:[#allocation8 + $0x168] sm:$0xff]
    %v111 = vld [vmem:[#allocation8 + $0x170] sm:$0xff]
    %v112 = vld [vmem:[#allocation8 + $0x178] sm:$0xff]
    %v113 = vld [vmem:[#allocation8 + $0x180] sm:$0xff]
    %v114 = vld [vmem:[#allocation8 + $0x188] sm:$0xff]
    %v115 = vld [vmem:[#allocation8 + $0x190] sm:$0xff]
    %v116 = vld [vmem:[#allocation8 + $0x198] sm:$0xff]
    %v117 = vld [vmem:[#allocation8 + $0x1a0] sm:$0xff]
    %v118 = vld [vmem:[#allocation8 + $0x1a8] sm:$0xff]
    %v119 = vld [vmem:[#allocation8 + $0x1b0] sm:$0xff]
    %v120 = vld [vmem:[#allocation8 + $0x1b8] sm:$0xff]
    %v121 = vld [vmem:[#allocation8 + $0x1c0] sm:$0xff]
    %v122 = vld [vmem:[#allocation8 + $0x1c8] sm:$0xff]
    %v123 = vld [vmem:[#allocation8 + $0x1d0] sm:$0xff]
    %v124 = vld [vmem:[#allocation8 + $0x1d8] sm:$0xff]
    %v125 = vld [vmem:[#allocation8 + $0x1e0] sm:$0xff]
    %v126 = vld [vmem:[#allocation8 + $0x1e8] sm:$0xff]
    %v127 = vld [vmem:[#allocation8 + $0x1f0] sm:$0xff]
    %v128 = vld [vmem:[#allocation8 + $0x1f8] sm:$0xff]
    %v129 = vld [vmem:[#allocation8 + $0x200] sm:$0xff]
    %v130 = vld [vmem:[#allocation8 + $0x208] sm:$0xff]
    %v131 = vld [vmem:[#allocation8 + $0x210] sm:$0xff]
    %v132 = vld [vmem:[#allocation8 + $0x218] sm:$0xff]
    %v133 = vld [vmem:[#allocation8 + $0x220] sm:$0xff]
    %v134 = vld [vmem:[#allocation8 + $0x228] sm:$0xff]
    %v135 = vld [vmem:[#allocation8 + $0x230] sm:$0xff]
    %v136 = vld [vmem:[#allocation8 + $0x238] sm:$0xff]
    %v137 = vld [vmem:[#allocation8 + $0x240] sm:$0xff]
    %v138 = vld [vmem:[#allocation8 + $0x248] sm:$0xff]
    %v139 = vld [vmem:[#allocation8 + $0x250] sm:$0xff]
    %v140 = vld [vmem:[#allocation8 + $0x258] sm:$0xff]
    %v141 = vld [vmem:[#allocation8 + $0x260] sm:$0xff]
    %v142 = vld [vmem:[#allocation8 + $0x268] sm:$0xff]
    %v143 = vld [vmem:[#allocation8 + $0x270] sm:$0xff]
    %v144 = vld [vmem:[#allocation8 + $0x278] sm:$0xff]
    %v145 = vld [vmem:[#allocation8 + $0x280] sm:$0xff]
    %v146 = vld [vmem:[#allocation8 + $0x288] sm:$0xff]
    %v147 = vld [vmem:[#allocation8 + $0x290] sm:$0xff]
    %v148 = vld [vmem:[#allocation8 + $0x298] sm:$0xff]
    %v149 = vld [vmem:[#allocation8 + $0x2a0] sm:$0xff]
    %v150 = vld [vmem:[#allocation8 + $0x2a8] sm:$0xff]
    %v151 = vld [vmem:[#allocation8 + $0x2b0] sm:$0xff]
    %v152 = vld [vmem:[#allocation8 + $0x2b8] sm:$0xff]
    %v153 = vld [vmem:[#allocation8 + $0x2c0] sm:$0xff]
    %v154 = vld [vmem:[#allocation8 + $0x2c8] sm:$0xff]
    %v155 = vld [vmem:[#allocation8 + $0x2d0] sm:$0xff]
    %v156 = vld [vmem:[#allocation8 + $0x2d8] sm:$0xff]
    %v157 = vld [vmem:[#allocation8 + $0x2e0] sm:$0xff]
    %v158 = vld [vmem:[#allocation8 + $0x2e8] sm:$0xff]
    %v159 = vld [vmem:[#allocation8 + $0x2f0] sm:$0xff]
    %v160 = vld [vmem:[#allocation8 + $0x2f8] sm:$0xff]
    %v161 = vld [vmem:[#allocation8 + $0x300] sm:$0xff]
    %v162 = vld [vmem:[#allocation8 + $0x308] sm:$0xff]
    %v163 = vld [vmem:[#allocation8 + $0x310] sm:$0xff]
    %v164 = vld [vmem:[#allocation8 + $0x318] sm:$0xff]
    %v165 = vld [vmem:[#allocation8 + $0x320] sm:$0xff]
    %v166 = vld [vmem:[#allocation8 + $0x328] sm:$0xff]
    %v167 = vld [vmem:[#allocation8 + $0x330] sm:$0xff]
    %v168 = vld [vmem:[#allocation8 + $0x338] sm:$0xff]
    %v169 = vld [vmem:[#allocation8 + $0x340] sm:$0xff]
    %v170 = vld [vmem:[#allocation8 + $0x348] sm:$0xff]
    %v171 = vld [vmem:[#allocation8 + $0x350] sm:$0xff]
    %v172 = vld [vmem:[#allocation8 + $0x358] sm:$0xff]
    %v173 = vld [vmem:[#allocation8 + $0x360] sm:$0xff]
    %v174 = vld [vmem:[#allocation8 + $0x368] sm:$0xff]
    %v175 = vld [vmem:[#allocation8 + $0x370] sm:$0xff]
    %v176 = vld [vmem:[#allocation8 + $0x378] sm:$0xff]
    %v177 = vld [vmem:[#allocation8 + $0x380] sm:$0xff]
    %v178 = vld [vmem:[#allocation8 + $0x388] sm:$0xff]
    %v179 = vld [vmem:[#allocation8 + $0x390] sm:$0xff]
    %v180 = vld [vmem:[#allocation8 + $0x398] sm:$0xff]
    %v181 = vld [vmem:[#allocation8 + $0x3a0] sm:$0xff]
    %v182 = vld [vmem:[#allocation8 + $0x3a8] sm:$0xff]
    %v183 = vld [vmem:[#allocation8 + $0x3b0] sm:$0xff]
    %v184 = vld [vmem:[#allocation8 + $0x3b8] sm:$0xff]
    %v185 = vld [vmem:[#allocation8 + $0x3c0] sm:$0xff]
    %v186 = vld [vmem:[#allocation8 + $0x3c8] sm:$0xff]
    %v187 = vld [vmem:[#allocation8 + $0x3d0] sm:$0xff]
    %v188 = vld [vmem:[#allocation8 + $0x3d8] sm:$0xff]
    %v189 = vld [vmem:[#allocation8 + $0x3e0] sm:$0xff]
    %v190 = vld [vmem:[#allocation8 + $0x3e8] sm:$0xff]
    %v191 = vld [vmem:[#allocation8 + $0x3f0] sm:$0xff]
    %v192 = vld [vmem:[#allocation8 + $0x3f8] sm:$0xff]
    %s193 = sld [smem:[#allocation3]]
    %s194 = smul.u32 %s193, 8
    %s195 = scalar_lea.vmem [#allocation7], %s194
    %v196 = vld [vmem:[%s195] sm:$0xff]
    %s197 = sld [smem:[#allocation3 + $0x1]]
    %s198 = smul.u32 %s197, 8
    %s199 = scalar_lea.vmem [#allocation7], %s198
    %v200 = vld [vmem:[%s199] sm:$0xff]
    %v202 = vlaneseq
    %v203 = vshrl.u32 %v202, 7
    %v204 = vsub.s32 0, %v203
    %v205 = vrot.slane %v196, %v204
    %v206 = vlaneseq
    %v207 = vshrl.u32 %v206, 7
    %v208 = vsub.s32 1, %v207
    %v209 = vrot.slane %v196, %v208
    %v210 = vlaneseq
    %v211 = vshrl.u32 %v210, 7
    %v212 = vsub.s32 2, %v211
    %v213 = vrot.slane %v196, %v212
    %v214 = vlaneseq
    %v215 = vshrl.u32 %v214, 7
    %v216 = vsub.s32 3, %v215
    %v217 = vrot.slane %v196, %v216
    %v218 = vlaneseq
    %v219 = vshrl.u32 %v218, 7
    %v220 = vsub.s32 4, %v219
    %v221 = vrot.slane %v196, %v220
    %v222 = vlaneseq
    %v223 = vshrl.u32 %v222, 7
    %v224 = vsub.s32 5, %v223
    %v225 = vrot.slane %v196, %v224
    %v226 = vlaneseq
    %v227 = vshrl.u32 %v226, 7
    %v228 = vsub.s32 6, %v227
    %v229 = vrot.slane %v196, %v228
    %v230 = vlaneseq
    %v231 = vshrl.u32 %v230, 7
    %v232 = vsub.s32 7, %v231
    %v233 = vrot.slane %v196, %v232
    %v243 = vlaneseq
    %v244 = vshrl.u32 %v243, 7
    %v245 = vsub.s32 0, %v244
    %v246 = vrot.slane %v200, %v245
    %v247 = vlaneseq
    %v248 = vshrl.u32 %v247, 7
    %v249 = vsub.s32 1, %v248
    %v250 = vrot.slane %v200, %v249
    %v251 = vlaneseq
    %v252 = vshrl.u32 %v251, 7
    %v253 = vsub.s32 2, %v252
    %v254 = vrot.slane %v200, %v253
    %v255 = vlaneseq
    %v256 = vshrl.u32 %v255, 7
    %v257 = vsub.s32 3, %v256
    %v258 = vrot.slane %v200, %v257
    %v259 = vlaneseq
    %v260 = vshrl.u32 %v259, 7
    %v261 = vsub.s32 4, %v260
    %v262 = vrot.slane %v200, %v261
    %v263 = vlaneseq
    %v264 = vshrl.u32 %v263, 7
    %v265 = vsub.s32 5, %v264
    %v266 = vrot.slane %v200, %v265
    %v267 = vlaneseq
    %v268 = vshrl.u32 %v267, 7
    %v269 = vsub.s32 6, %v268
    %v270 = vrot.slane %v200, %v269
    %v271 = vlaneseq
    %v272 = vshrl.u32 %v271, 7
    %v273 = vsub.s32 7, %v272
    %v274 = vrot.slane %v200, %v273
    %vm283 = vcmask 1040384
    %v284 = vsel %vm283, %v205, %v246
    %v285 = vsel %vm283, %v209, %v250
    %v286 = vsel %vm283, %v213, %v254
    %v287 = vsel %vm283, %v217, %v258
    %v288 = vsel %vm283, %v221, %v262
    %v289 = vsel %vm283, %v225, %v266
    %v290 = vsel %vm283, %v229, %v270
    %v291 = vsel %vm283, %v233, %v274
    %v420 = vunpack.c.l.b16 %v65
    %v421 = vunpack.c.h.b16 %v65
    %v422 = vunpack.c.l.b16 %v66
    %v423 = vunpack.c.h.b16 %v66
    %v424 = vunpack.c.l.b16 %v67
    %v425 = vunpack.c.h.b16 %v67
    %v426 = vunpack.c.l.b16 %v68
    %v427 = vunpack.c.h.b16 %v68
    %v428 = vunpack.c.l.b16 %v69
    %v429 = vunpack.c.h.b16 %v69
    %v430 = vunpack.c.l.b16 %v70
    %v431 = vunpack.c.h.b16 %v70
    %v432 = vunpack.c.l.b16 %v71
    %v433 = vunpack.c.h.b16 %v71
    %v434 = vunpack.c.l.b16 %v72
    %v435 = vunpack.c.h.b16 %v72
    %v436 = vunpack.c.l.b16 %v73
    %v437 = vunpack.c.h.b16 %v73
    %v438 = vunpack.c.l.b16 %v74
    %v439 = vunpack.c.h.b16 %v74
    %v440 = vunpack.c.l.b16 %v75
    %v441 = vunpack.c.h.b16 %v75
    %v442 = vunpack.c.l.b16 %v76
    %v443 = vunpack.c.h.b16 %v76
    %v444 = vunpack.c.l.b16 %v77
    %v445 = vunpack.c.h.b16 %v77
    %v446 = vunpack.c.l.b16 %v78
    %v447 = vunpack.c.h.b16 %v78
    %v448 = vunpack.c.l.b16 %v79
    %v449 = vunpack.c.h.b16 %v79
    %v450 = vunpack.c.l.b16 %v80
    %v451 = vunpack.c.h.b16 %v80
    %v452 = vunpack.c.l.b16 %v81
    %v453 = vunpack.c.h.b16 %v81
    %v454 = vunpack.c.l.b16 %v82
    %v455 = vunpack.c.h.b16 %v82
    %v456 = vunpack.c.l.b16 %v83
    %v457 = vunpack.c.h.b16 %v83
    %v458 = vunpack.c.l.b16 %v84
    %v459 = vunpack.c.h.b16 %v84
    %v460 = vunpack.c.l.b16 %v85
    %v461 = vunpack.c.h.b16 %v85
    %v462 = vunpack.c.l.b16 %v86
    %v463 = vunpack.c.h.b16 %v86
    %v464 = vunpack.c.l.b16 %v87
    %v465 = vunpack.c.h.b16 %v87
    %v466 = vunpack.c.l.b16 %v88
    %v467 = vunpack.c.h.b16 %v88
    %v468 = vunpack.c.l.b16 %v89
    %v469 = vunpack.c.h.b16 %v89
    %v470 = vunpack.c.l.b16 %v90
    %v471 = vunpack.c.h.b16 %v90
    %v472 = vunpack.c.l.b16 %v91
    %v473 = vunpack.c.h.b16 %v91
    %v474 = vunpack.c.l.b16 %v92
    %v475 = vunpack.c.h.b16 %v92
    %v476 = vunpack.c.l.b16 %v93
    %v477 = vunpack.c.h.b16 %v93
    %v478 = vunpack.c.l.b16 %v94
    %v479 = vunpack.c.h.b16 %v94
    %v480 = vunpack.c.l.b16 %v95
    %v481 = vunpack.c.h.b16 %v95
    %v482 = vunpack.c.l.b16 %v96
    %v483 = vunpack.c.h.b16 %v96
    %v484 = vunpack.c.l.b16 %v97
    %v485 = vunpack.c.h.b16 %v97
    %v486 = vunpack.c.l.b16 %v98
    %v487 = vunpack.c.h.b16 %v98
    %v488 = vunpack.c.l.b16 %v99
    %v489 = vunpack.c.h.b16 %v99
    %v490 = vunpack.c.l.b16 %v100
    %v491 = vunpack.c.h.b16 %v100
    %v492 = vunpack.c.l.b16 %v101
    %v493 = vunpack.c.h.b16 %v101
    %v494 = vunpack.c.l.b16 %v102
    %v495 = vunpack.c.h.b16 %v102
    %v496 = vunpack.c.l.b16 %v103
    %v497 = vunpack.c.h.b16 %v103
    %v498 = vunpack.c.l.b16 %v104
    %v499 = vunpack.c.h.b16 %v104
    %v500 = vunpack.c.l.b16 %v105
    %v501 = vunpack.c.h.b16 %v105
    %v502 = vunpack.c.l.b16 %v106
    %v503 = vunpack.c.h.b16 %v106
    %v504 = vunpack.c.l.b16 %v107
    %v505 = vunpack.c.h.b16 %v107
    %v506 = vunpack.c.l.b16 %v108
    %v507 = vunpack.c.h.b16 %v108
    %v508 = vunpack.c.l.b16 %v109
    %v509 = vunpack.c.h.b16 %v109
    %v510 = vunpack.c.l.b16 %v110
    %v511 = vunpack.c.h.b16 %v110
    %v512 = vunpack.c.l.b16 %v111
    %v513 = vunpack.c.h.b16 %v111
    %v514 = vunpack.c.l.b16 %v112
    %v515 = vunpack.c.h.b16 %v112
    %v516 = vunpack.c.l.b16 %v113
    %v517 = vunpack.c.h.b16 %v113
    %v518 = vunpack.c.l.b16 %v114
    %v519 = vunpack.c.h.b16 %v114
    %v520 = vunpack.c.l.b16 %v115
    %v521 = vunpack.c.h.b16 %v115
    %v522 = vunpack.c.l.b16 %v116
    %v523 = vunpack.c.h.b16 %v116
    %v524 = vunpack.c.l.b16 %v117
    %v525 = vunpack.c.h.b16 %v117
    %v526 = vunpack.c.l.b16 %v118
    %v527 = vunpack.c.h.b16 %v118
    %v528 = vunpack.c.l.b16 %v119
    %v529 = vunpack.c.h.b16 %v119
    %v530 = vunpack.c.l.b16 %v120
    %v531 = vunpack.c.h.b16 %v120
    %v532 = vunpack.c.l.b16 %v121
    %v533 = vunpack.c.h.b16 %v121
    %v534 = vunpack.c.l.b16 %v122
    %v535 = vunpack.c.h.b16 %v122
    %v536 = vunpack.c.l.b16 %v123
    %v537 = vunpack.c.h.b16 %v123
    %v538 = vunpack.c.l.b16 %v124
    %v539 = vunpack.c.h.b16 %v124
    %v540 = vunpack.c.l.b16 %v125
    %v541 = vunpack.c.h.b16 %v125
    %v542 = vunpack.c.l.b16 %v126
    %v543 = vunpack.c.h.b16 %v126
    %v544 = vunpack.c.l.b16 %v127
    %v545 = vunpack.c.h.b16 %v127
    %v546 = vunpack.c.l.b16 %v128
    %v547 = vunpack.c.h.b16 %v128
    %v548 = vunpack.c.l.b16 %v129
    %v549 = vunpack.c.h.b16 %v129
    %v550 = vunpack.c.l.b16 %v130
    %v551 = vunpack.c.h.b16 %v130
    %v552 = vunpack.c.l.b16 %v131
    %v553 = vunpack.c.h.b16 %v131
    %v554 = vunpack.c.l.b16 %v132
    %v555 = vunpack.c.h.b16 %v132
    %v556 = vunpack.c.l.b16 %v133
    %v557 = vunpack.c.h.b16 %v133
    %v558 = vunpack.c.l.b16 %v134
    %v559 = vunpack.c.h.b16 %v134
    %v560 = vunpack.c.l.b16 %v135
    %v561 = vunpack.c.h.b16 %v135
    %v562 = vunpack.c.l.b16 %v136
    %v563 = vunpack.c.h.b16 %v136
    %v564 = vunpack.c.l.b16 %v137
    %v565 = vunpack.c.h.b16 %v137
    %v566 = vunpack.c.l.b16 %v138
    %v567 = vunpack.c.h.b16 %v138
    %v568 = vunpack.c.l.b16 %v139
    %v569 = vunpack.c.h.b16 %v139
    %v570 = vunpack.c.l.b16 %v140
    %v571 = vunpack.c.h.b16 %v140
    %v572 = vunpack.c.l.b16 %v141
    %v573 = vunpack.c.h.b16 %v141
    %v574 = vunpack.c.l.b16 %v142
    %v575 = vunpack.c.h.b16 %v142
    %v576 = vunpack.c.l.b16 %v143
    %v577 = vunpack.c.h.b16 %v143
    %v578 = vunpack.c.l.b16 %v144
    %v579 = vunpack.c.h.b16 %v144
    %v580 = vunpack.c.l.b16 %v145
    %v581 = vunpack.c.h.b16 %v145
    %v582 = vunpack.c.l.b16 %v146
    %v583 = vunpack.c.h.b16 %v146
    %v584 = vunpack.c.l.b16 %v147
    %v585 = vunpack.c.h.b16 %v147
    %v586 = vunpack.c.l.b16 %v148
    %v587 = vunpack.c.h.b16 %v148
    %v588 = vunpack.c.l.b16 %v149
    %v589 = vunpack.c.h.b16 %v149
    %v590 = vunpack.c.l.b16 %v150
    %v591 = vunpack.c.h.b16 %v150
    %v592 = vunpack.c.l.b16 %v151
    %v593 = vunpack.c.h.b16 %v151
    %v594 = vunpack.c.l.b16 %v152
    %v595 = vunpack.c.h.b16 %v152
    %v596 = vunpack.c.l.b16 %v153
    %v597 = vunpack.c.h.b16 %v153
    %v598 = vunpack.c.l.b16 %v154
    %v599 = vunpack.c.h.b16 %v154
    %v600 = vunpack.c.l.b16 %v155
    %v601 = vunpack.c.h.b16 %v155
    %v602 = vunpack.c.l.b16 %v156
    %v603 = vunpack.c.h.b16 %v156
    %v604 = vunpack.c.l.b16 %v157
    %v605 = vunpack.c.h.b16 %v157
    %v606 = vunpack.c.l.b16 %v158
    %v607 = vunpack.c.h.b16 %v158
    %v608 = vunpack.c.l.b16 %v159
    %v609 = vunpack.c.h.b16 %v159
    %v610 = vunpack.c.l.b16 %v160
    %v611 = vunpack.c.h.b16 %v160
    %v612 = vunpack.c.l.b16 %v161
    %v613 = vunpack.c.h.b16 %v161
    %v614 = vunpack.c.l.b16 %v162
    %v615 = vunpack.c.h.b16 %v162
    %v616 = vunpack.c.l.b16 %v163
    %v617 = vunpack.c.h.b16 %v163
    %v618 = vunpack.c.l.b16 %v164
    %v619 = vunpack.c.h.b16 %v164
    %v620 = vunpack.c.l.b16 %v165
    %v621 = vunpack.c.h.b16 %v165
    %v622 = vunpack.c.l.b16 %v166
    %v623 = vunpack.c.h.b16 %v166
    %v624 = vunpack.c.l.b16 %v167
    %v625 = vunpack.c.h.b16 %v167
    %v626 = vunpack.c.l.b16 %v168
    %v627 = vunpack.c.h.b16 %v168
    %v628 = vunpack.c.l.b16 %v169
    %v629 = vunpack.c.h.b16 %v169
    %v630 = vunpack.c.l.b16 %v170
    %v631 = vunpack.c.h.b16 %v170
    %v632 = vunpack.c.l.b16 %v171
    %v633 = vunpack.c.h.b16 %v171
    %v634 = vunpack.c.l.b16 %v172
    %v635 = vunpack.c.h.b16 %v172
    %v636 = vunpack.c.l.b16 %v173
    %v637 = vunpack.c.h.b16 %v173
    %v638 = vunpack.c.l.b16 %v174
    %v639 = vunpack.c.h.b16 %v174
    %v640 = vunpack.c.l.b16 %v175
    %v641 = vunpack.c.h.b16 %v175
    %v642 = vunpack.c.l.b16 %v176
    %v643 = vunpack.c.h.b16 %v176
    %v644 = vunpack.c.l.b16 %v177
    %v645 = vunpack.c.h.b16 %v177
    %v646 = vunpack.c.l.b16 %v178
    %v647 = vunpack.c.h.b16 %v178
    %v648 = vunpack.c.l.b16 %v179
    %v649 = vunpack.c.h.b16 %v179
    %v650 = vunpack.c.l.b16 %v180
    %v651 = vunpack.c.h.b16 %v180
    %v652 = vunpack.c.l.b16 %v181
    %v653 = vunpack.c.h.b16 %v181
    %v654 = vunpack.c.l.b16 %v182
    %v655 = vunpack.c.h.b16 %v182
    %v656 = vunpack.c.l.b16 %v183
    %v657 = vunpack.c.h.b16 %v183
    %v658 = vunpack.c.l.b16 %v184
    %v659 = vunpack.c.h.b16 %v184
    %v660 = vunpack.c.l.b16 %v185
    %v661 = vunpack.c.h.b16 %v185
    %v662 = vunpack.c.l.b16 %v186
    %v663 = vunpack.c.h.b16 %v186
    %v664 = vunpack.c.l.b16 %v187
    %v665 = vunpack.c.h.b16 %v187
    %v666 = vunpack.c.l.b16 %v188
    %v667 = vunpack.c.h.b16 %v188
    %v668 = vunpack.c.l.b16 %v189
    %v669 = vunpack.c.h.b16 %v189
    %v670 = vunpack.c.l.b16 %v190
    %v671 = vunpack.c.h.b16 %v190
    %v672 = vunpack.c.l.b16 %v191
    %v673 = vunpack.c.h.b16 %v191
    %v674 = vunpack.c.l.b16 %v192
    %v675 = vunpack.c.h.b16 %v192
    %v676 = vpack.c.b16 %v428, %v420
    %v677 = vpack.c.b16 %v429, %v421
    %v678 = vpack.c.b16 %v430, %v422
    %v679 = vpack.c.b16 %v431, %v423
    %v680 = vpack.c.b16 %v432, %v424
    %v681 = vpack.c.b16 %v433, %v425
    %v682 = vpack.c.b16 %v434, %v426
    %v683 = vpack.c.b16 %v435, %v427
    %v684 = vpack.c.b16 %v444, %v436
    %v685 = vpack.c.b16 %v445, %v437
    %v686 = vpack.c.b16 %v446, %v438
    %v687 = vpack.c.b16 %v447, %v439
    %v688 = vpack.c.b16 %v448, %v440
    %v689 = vpack.c.b16 %v449, %v441
    %v690 = vpack.c.b16 %v450, %v442
    %v691 = vpack.c.b16 %v451, %v443
    %v692 = vpack.c.b16 %v460, %v452
    %v693 = vpack.c.b16 %v461, %v453
    %v694 = vpack.c.b16 %v462, %v454
    %v695 = vpack.c.b16 %v463, %v455
    %v696 = vpack.c.b16 %v464, %v456
    %v697 = vpack.c.b16 %v465, %v457
    %v698 = vpack.c.b16 %v466, %v458
    %v699 = vpack.c.b16 %v467, %v459
    %v700 = vpack.c.b16 %v476, %v468
    %v701 = vpack.c.b16 %v477, %v469
    %v702 = vpack.c.b16 %v478, %v470
    %v703 = vpack.c.b16 %v479, %v471
    %v704 = vpack.c.b16 %v480, %v472
    %v705 = vpack.c.b16 %v481, %v473
    %v706 = vpack.c.b16 %v482, %v474
    %v707 = vpack.c.b16 %v483, %v475
    %v708 = vpack.c.b16 %v492, %v484
    %v709 = vpack.c.b16 %v493, %v485
    %v710 = vpack.c.b16 %v494, %v486
    %v711 = vpack.c.b16 %v495, %v487
    %v712 = vpack.c.b16 %v496, %v488
    %v713 = vpack.c.b16 %v497, %v489
    %v714 = vpack.c.b16 %v498, %v490
    %v715 = vpack.c.b16 %v499, %v491
    %v716 = vpack.c.b16 %v508, %v500
    %v717 = vpack.c.b16 %v509, %v501
    %v718 = vpack.c.b16 %v510, %v502
    %v719 = vpack.c.b16 %v511, %v503
    %v720 = vpack.c.b16 %v512, %v504
    %v721 = vpack.c.b16 %v513, %v505
    %v722 = vpack.c.b16 %v514, %v506
    %v723 = vpack.c.b16 %v515, %v507
    %v724 = vpack.c.b16 %v524, %v516
    %v725 = vpack.c.b16 %v525, %v517
    %v726 = vpack.c.b16 %v526, %v518
    %v727 = vpack.c.b16 %v527, %v519
    %v728 = vpack.c.b16 %v528, %v520
    %v729 = vpack.c.b16 %v529, %v521
    %v730 = vpack.c.b16 %v530, %v522
    %v731 = vpack.c.b16 %v531, %v523
    %v732 = vpack.c.b16 %v540, %v532
    %v733 = vpack.c.b16 %v541, %v533
    %v734 = vpack.c.b16 %v542, %v534
    %v735 = vpack.c.b16 %v543, %v535
    %v736 = vpack.c.b16 %v544, %v536
    %v737 = vpack.c.b16 %v545, %v537
    %v738 = vpack.c.b16 %v546, %v538
    %v739 = vpack.c.b16 %v547, %v539
    %v740 = vpack.c.b16 %v556, %v548
    %v741 = vpack.c.b16 %v557, %v549
    %v742 = vpack.c.b16 %v558, %v550
    %v743 = vpack.c.b16 %v559, %v551
    %v744 = vpack.c.b16 %v560, %v552
    %v745 = vpack.c.b16 %v561, %v553
    %v746 = vpack.c.b16 %v562, %v554
    %v747 = vpack.c.b16 %v563, %v555
    %v748 = vpack.c.b16 %v572, %v564
    %v749 = vpack.c.b16 %v573, %v565
    %v750 = vpack.c.b16 %v574, %v566
    %v751 = vpack.c.b16 %v575, %v567
    %v752 = vpack.c.b16 %v576, %v568
    %v753 = vpack.c.b16 %v577, %v569
    %v754 = vpack.c.b16 %v578, %v570
    %v755 = vpack.c.b16 %v579, %v571
    %v756 = vpack.c.b16 %v588, %v580
    %v757 = vpack.c.b16 %v589, %v581
    %v758 = vpack.c.b16 %v590, %v582
    %v759 = vpack.c.b16 %v591, %v583
    %v760 = vpack.c.b16 %v592, %v584
    %v761 = vpack.c.b16 %v593, %v585
    %v762 = vpack.c.b16 %v594, %v586
    %v763 = vpack.c.b16 %v595, %v587
    %v764 = vpack.c.b16 %v604, %v596
    %v765 = vpack.c.b16 %v605, %v597
    %v766 = vpack.c.b16 %v606, %v598
    %v767 = vpack.c.b16 %v607, %v599
    %v768 = vpack.c.b16 %v608, %v600
    %v769 = vpack.c.b16 %v609, %v601
    %v770 = vpack.c.b16 %v610, %v602
    %v771 = vpack.c.b16 %v611, %v603
    %v772 = vpack.c.b16 %v620, %v612
    %v773 = vpack.c.b16 %v621, %v613
    %v774 = vpack.c.b16 %v622, %v614
    %v775 = vpack.c.b16 %v623, %v615
    %v776 = vpack.c.b16 %v624, %v616
    %v777 = vpack.c.b16 %v625, %v617
    %v778 = vpack.c.b16 %v626, %v618
    %v779 = vpack.c.b16 %v627, %v619
    %v780 = vpack.c.b16 %v636, %v628
    %v781 = vpack.c.b16 %v637, %v629
    %v782 = vpack.c.b16 %v638, %v630
    %v783 = vpack.c.b16 %v639, %v631
    %v784 = vpack.c.b16 %v640, %v632
    %v785 = vpack.c.b16 %v641, %v633
    %v786 = vpack.c.b16 %v642, %v634
    %v787 = vpack.c.b16 %v643, %v635
    %v788 = vpack.c.b16 %v652, %v644
    %v789 = vpack.c.b16 %v653, %v645
    %v790 = vpack.c.b16 %v654, %v646
    %v791 = vpack.c.b16 %v655, %v647
    %v792 = vpack.c.b16 %v656, %v648
    %v793 = vpack.c.b16 %v657, %v649
    %v794 = vpack.c.b16 %v658, %v650
    %v795 = vpack.c.b16 %v659, %v651
    %v796 = vpack.c.b16 %v668, %v660
    %v797 = vpack.c.b16 %v669, %v661
    %v798 = vpack.c.b16 %v670, %v662
    %v799 = vpack.c.b16 %v671, %v663
    %v800 = vpack.c.b16 %v672, %v664
    %v801 = vpack.c.b16 %v673, %v665
    %v802 = vpack.c.b16 %v674, %v666
    %v803 = vpack.c.b16 %v675, %v667
    %932 = vmatprep.subr.bf16.mxu0 %v677
    %933 = vmatpush1.bf16.msra.mxu0 %v676
    %934 = vmatprep.subr.bf16.mxu0 %v685
    %935 = vmatpush1.bf16.msra.mxu0 %v684
    %936 = vmatprep.subr.bf16.mxu0 %v693
    %937 = vmatpush1.bf16.msra.mxu0 %v692
    %938 = vmatprep.subr.bf16.mxu0 %v701
    %939 = vmatpush1.bf16.msra.mxu0 %v700
    %940 = vmatprep.subr.bf16.mxu0 %v709
    %941 = vmatpush1.bf16.msra.mxu0 %v708
    %942 = vmatprep.subr.bf16.mxu0 %v717
    %943 = vmatpush1.bf16.msra.mxu0 %v716
    %944 = vmatprep.subr.bf16.mxu0 %v725
    %945 = vmatpush1.bf16.msra.mxu0 %v724
    %946 = vmatprep.subr.bf16.mxu0 %v733
    %947 = vmatpush1.bf16.msra.mxu0 %v732
    %948 = vmatprep.subr.bf16.mxu0 %v741
    %949 = vmatpush1.bf16.msra.mxu0 %v740
    %950 = vmatprep.subr.bf16.mxu0 %v749
    %951 = vmatpush1.bf16.msra.mxu0 %v748
    %952 = vmatprep.subr.bf16.mxu0 %v757
    %953 = vmatpush1.bf16.msra.mxu0 %v756
    %954 = vmatprep.subr.bf16.mxu0 %v765
    %955 = vmatpush1.bf16.msra.mxu0 %v764
    %956 = vmatprep.subr.bf16.mxu0 %v773
    %957 = vmatpush1.bf16.msra.mxu0 %v772
    %958 = vmatprep.subr.bf16.mxu0 %v781
    %959 = vmatpush1.bf16.msra.mxu0 %v780
    %960 = vmatprep.subr.bf16.mxu0 %v789
    %961 = vmatpush1.bf16.msra.mxu0 %v788
    %962 = vmatprep.subr.bf16.mxu0 %v797
    %963 = vmatpush1.bf16.msra.mxu0 %v796
    %964 = vmatprep.mubr.bf16.mxu0 0
    %965 = vmatmul.mubr.bf16.gmra.mrb[0].mxu0 0
    %v966 = vpop.f32.mrb[0].mxu0
    %v967 = vadd.f32 0.0, %v966
    %v968 = vpop.f32.mrb[0].mxu0
    %v969 = vadd.f32 0.0, %v968
    %v970 = vpop.f32.mrb[0].mxu0
    %v971 = vpop.f32.mrb[0].mxu0
    %972 = vdwg.mxu0
    %973 = vmatprep.subr.bf16.mxu0 %v679
    %974 = vmatpush1.bf16.msra.mxu0 %v678
    %975 = vmatprep.subr.bf16.mxu0 %v687
    %976 = vmatpush1.bf16.msra.mxu0 %v686
    %977 = vmatprep.subr.bf16.mxu0 %v695
    %978 = vmatpush1.bf16.msra.mxu0 %v694
    %979 = vmatprep.subr.bf16.mxu0 %v703
    %980 = vmatpush1.bf16.msra.mxu0 %v702
    %981 = vmatprep.subr.bf16.mxu0 %v711
    %982 = vmatpush1.bf16.msra.mxu0 %v710
    %983 = vmatprep.subr.bf16.mxu0 %v719
    %984 = vmatpush1.bf16.msra.mxu0 %v718
    %985 = vmatprep.subr.bf16.mxu0 %v727
    %986 = vmatpush1.bf16.msra.mxu0 %v726
    %987 = vmatprep.subr.bf16.mxu0 %v735
    %988 = vmatpush1.bf16.msra.mxu0 %v734
    %989 = vmatprep.subr.bf16.mxu0 %v743
    %990 = vmatpush1.bf16.msra.mxu0 %v742
    %991 = vmatprep.subr.bf16.mxu0 %v751
    %992 = vmatpush1.bf16.msra.mxu0 %v750
    %993 = vmatprep.subr.bf16.mxu0 %v759
    %994 = vmatpush1.bf16.msra.mxu0 %v758
    %995 = vmatprep.subr.bf16.mxu0 %v767
    %996 = vmatpush1.bf16.msra.mxu0 %v766
    %997 = vmatprep.subr.bf16.mxu0 %v775
    %998 = vmatpush1.bf16.msra.mxu0 %v774
    %999 = vmatprep.subr.bf16.mxu0 %v783
    %1000 = vmatpush1.bf16.msra.mxu0 %v782
    %1001 = vmatprep.subr.bf16.mxu0 %v791
    %1002 = vmatpush1.bf16.msra.mxu0 %v790
    %1003 = vmatprep.subr.bf16.mxu0 %v799
    %1004 = vmatpush1.bf16.msra.mxu0 %v798
    %1005 = vmatprep.mubr.bf16.mxu0 0
    %1006 = vmatmul.mubr.bf16.gmra.mrb[0].mxu0 0
    %v1007 = vpop.f32.mrb[0].mxu0
    %v1008 = vadd.f32 0.0, %v1007
    %v1009 = vpop.f32.mrb[0].mxu0
    %v1010 = vadd.f32 0.0, %v1009
    %v1011 = vpop.f32.mrb[0].mxu0
    %v1012 = vpop.f32.mrb[0].mxu0
    %1013 = vdwg.mxu0
    %1014 = vmatprep.subr.bf16.mxu0 %v681
    %1015 = vmatpush1.bf16.msra.mxu0 %v680
    %1016 = vmatprep.subr.bf16.mxu0 %v689
    %1017 = vmatpush1.bf16.msra.mxu0 %v688
    %1018 = vmatprep.subr.bf16.mxu0 %v697
    %1019 = vmatpush1.bf16.msra.mxu0 %v696
    %1020 = vmatprep.subr.bf16.mxu0 %v705
    %1021 = vmatpush1.bf16.msra.mxu0 %v704
    %1022 = vmatprep.subr.bf16.mxu0 %v713
    %1023 = vmatpush1.bf16.msra.mxu0 %v712
    %1024 = vmatprep.subr.bf16.mxu0 %v721
    %1025 = vmatpush1.bf16.msra.mxu0 %v720
    %1026 = vmatprep.subr.bf16.mxu0 %v729
    %1027 = vmatpush1.bf16.msra.mxu0 %v728
    %1028 = vmatprep.subr.bf16.mxu0 %v737
    %1029 = vmatpush1.bf16.msra.mxu0 %v736
    %1030 = vmatprep.subr.bf16.mxu0 %v745
    %1031 = vmatpush1.bf16.msra.mxu0 %v744
    %1032 = vmatprep.subr.bf16.mxu0 %v753
    %1033 = vmatpush1.bf16.msra.mxu0 %v752
    %1034 = vmatprep.subr.bf16.mxu0 %v761
    %1035 = vmatpush1.bf16.msra.mxu0 %v760
    %1036 = vmatprep.subr.bf16.mxu0 %v769
    %1037 = vmatpush1.bf16.msra.mxu0 %v768
    %1038 = vmatprep.subr.bf16.mxu0 %v777
    %1039 = vmatpush1.bf16.msra.mxu0 %v776
    %1040 = vmatprep.subr.bf16.mxu0 %v785
    %1041 = vmatpush1.bf16.msra.mxu0 %v784
    %1042 = vmatprep.subr.bf16.mxu0 %v793
    %1043 = vmatpush1.bf16.msra.mxu0 %v792
    %1044 = vmatprep.subr.bf16.mxu0 %v801
    %1045 = vmatpush1.bf16.msra.mxu0 %v800
    %1046 = vmatprep.mubr.bf16.mxu0 0
    %1047 = vmatmul.mubr.bf16.gmra.mrb[0].mxu0 0
    %v1048 = vpop.f32.mrb[0].mxu0
    %v1049 = vadd.f32 0.0, %v1048
    %v1050 = vpop.f32.mrb[0].mxu0
    %v1051 = vadd.f32 0.0, %v1050
    %v1052 = vpop.f32.mrb[0].mxu0
    %v1053 = vpop.f32.mrb[0].mxu0
    %1054 = vdwg.mxu0
    %1055 = vmatprep.subr.bf16.mxu0 %v683
    %1056 = vmatpush1.bf16.msra.mxu0 %v682
    %1057 = vmatprep.subr.bf16.mxu0 %v691
    %1058 = vmatpush1.bf16.msra.mxu0 %v690
    %1059 = vmatprep.subr.bf16.mxu0 %v699
    %1060 = vmatpush1.bf16.msra.mxu0 %v698
    %1061 = vmatprep.subr.bf16.mxu0 %v707
    %1062 = vmatpush1.bf16.msra.mxu0 %v706
    %1063 = vmatprep.subr.bf16.mxu0 %v715
    %1064 = vmatpush1.bf16.msra.mxu0 %v714
    %1065 = vmatprep.subr.bf16.mxu0 %v723
    %1066 = vmatpush1.bf16.msra.mxu0 %v722
    %1067 = vmatprep.subr.bf16.mxu0 %v731
    %1068 = vmatpush1.bf16.msra.mxu0 %v730
    %1069 = vmatprep.subr.bf16.mxu0 %v739
    %1070 = vmatpush1.bf16.msra.mxu0 %v738
    %1071 = vmatprep.subr.bf16.mxu0 %v747
    %1072 = vmatpush1.bf16.msra.mxu0 %v746
    %1073 = vmatprep.subr.bf16.mxu0 %v755
    %1074 = vmatpush1.bf16.msra.mxu0 %v754
    %1075 = vmatprep.subr.bf16.mxu0 %v763
    %1076 = vmatpush1.bf16.msra.mxu0 %v762
    %1077 = vmatprep.subr.bf16.mxu0 %v771
    %1078 = vmatpush1.bf16.msra.mxu0 %v770
    %1079 = vmatprep.subr.bf16.mxu0 %v779
    %1080 = vmatpush1.bf16.msra.mxu0 %v778
    %1081 = vmatprep.subr.bf16.mxu0 %v787
    %1082 = vmatpush1.bf16.msra.mxu0 %v786
    %1083 = vmatprep.subr.bf16.mxu0 %v795
    %1084 = vmatpush1.bf16.msra.mxu0 %v794
    %1085 = vmatprep.subr.bf16.mxu0 %v803
    %1086 = vmatpush1.bf16.msra.mxu0 %v802
    %1087 = vmatprep.mubr.bf16.mxu0 0
    %1088 = vmatmul.mubr.bf16.gmra.mrb[0].mxu0 0
    %v1089 = vpop.f32.mrb[0].mxu0
    %v1090 = vadd.f32 0.0, %v1089
    %v1091 = vpop.f32.mrb[0].mxu0
    %v1092 = vadd.f32 0.0, %v1091
    %v1093 = vpop.f32.mrb[0].mxu0
    %v1094 = vpop.f32.mrb[0].mxu0
    %1095 = vdwg.mxu0
    %v1096 = vadd.f32 %v284, %v967
    %v1097 = vadd.f32 %v285, %v969
    %v1098 = vadd.f32 %v286, %v1008
    %v1099 = vadd.f32 %v287, %v1010
    %v1100 = vadd.f32 %v288, %v1049
    %v1101 = vadd.f32 %v289, %v1051
    %v1102 = vadd.f32 %v290, %v1090
    %v1103 = vadd.f32 %v291, %v1092
    %v1104 = vxor.u32 %v1096, 2147483648
    %v1105 = vxor.u32 %v1097, 2147483648
    %v1106 = vxor.u32 %v1098, 2147483648
    %v1107 = vxor.u32 %v1099, 2147483648
    %v1108 = vxor.u32 %v1100, 2147483648
    %v1109 = vxor.u32 %v1101, 2147483648
    %v1110 = vxor.u32 %v1102, 2147483648
    %v1111 = vxor.u32 %v1103, 2147483648
    %v1112 = vmul.f32 %v1104, 1.442695
    %v1113 = vpow.pop %v1112
    %v1114 = vmul.f32 %v1105, 1.442695
    %v1115 = vpow.pop %v1114
    %v1116 = vmul.f32 %v1106, 1.442695
    %v1117 = vpow.pop %v1116
    %v1118 = vmul.f32 %v1107, 1.442695
    %v1119 = vpow.pop %v1118
    %v1120 = vmul.f32 %v1108, 1.442695
    %v1121 = vpow.pop %v1120
    %v1122 = vmul.f32 %v1109, 1.442695
    %v1123 = vpow.pop %v1122
    %v1124 = vmul.f32 %v1110, 1.442695
    %v1125 = vpow.pop %v1124
    %v1126 = vmul.f32 %v1111, 1.442695
    %v1127 = vpow.pop %v1126
    %v1128 = vadd.f32 %v1113, 1.0
    %v1129 = vadd.f32 %v1115, 1.0
    %v1130 = vadd.f32 %v1117, 1.0
    %v1131 = vadd.f32 %v1119, 1.0
    %v1132 = vadd.f32 %v1121, 1.0
    %v1133 = vadd.f32 %v1123, 1.0
    %v1134 = vadd.f32 %v1125, 1.0
    %v1135 = vadd.f32 %v1127, 1.0
    %v1136 = vrcp.pop %v1128
    %v1137 = vmul.f32 1.0, %v1136
    %v1138 = vrcp.pop %v1129
    %v1139 = vmul.f32 1.0, %v1138
    %v1140 = vrcp.pop %v1130
    %v1141 = vmul.f32 1.0, %v1140
    %v1142 = vrcp.pop %v1131
    %v1143 = vmul.f32 1.0, %v1142
    %v1144 = vrcp.pop %v1132
    %v1145 = vmul.f32 1.0, %v1144
    %v1146 = vrcp.pop %v1133
    %v1147 = vmul.f32 1.0, %v1146
    %v1148 = vrcp.pop %v1134
    %v1149 = vmul.f32 1.0, %v1148
    %v1150 = vrcp.pop %v1135
    %v1151 = vmul.f32 1.0, %v1150
    %v1152 = vmul.f32 %v1145, 2.0
    %v1153 = vmul.f32 %v1147, 2.0
    %v1154 = vsub.f32 %v1152, 1.0
    %v1155 = vsub.f32 %v1153, 1.0
    %v1156 = vmul.f32 %v1141, 0.0
    %v1157 = vmul.f32 %v1143, 0.0
    %v1158 = vmul.f32 %v1137, %v1154
    %v1159 = vmul.f32 %v1139, %v1155
    %v1160 = vadd.f32 %v1156, %v1158
    %v1161 = vadd.f32 %v1157, %v1159
    %v1162 = vtanh.pop %v1160
    %v1163 = vtanh.pop %v1161
    %v1164 = vmul.f32 %v1149, %v1162
    %v1165 = vmul.f32 %v1151, %v1163
    %s1166 = sld [smem:[#allocation3 + $0x80]]
    %s1167 = smul.u32 %s1166, 8
    %s1168 = scalar_lea.vmem [#allocation7], %s1167
    %v1169 = vld [vmem:[%s1168] sm:$0xff]
    %s1170 = sld [smem:[#allocation3 + $0x81]]
    %s1171 = smul.u32 %s1170, 8
    %s1172 = scalar_lea.vmem [#allocation7], %s1171
    %v1173 = vld [vmem:[%s1172] sm:$0xff]
    %v1175 = vlaneseq
    %v1176 = vshrl.u32 %v1175, 7
    %v1177 = vsub.s32 0, %v1176
    %v1178 = vrot.slane %v1169, %v1177
    %v1179 = vlaneseq
    %v1180 = vshrl.u32 %v1179, 7
    %v1181 = vsub.s32 1, %v1180
    %v1182 = vrot.slane %v1169, %v1181
    %v1183 = vlaneseq
    %v1184 = vshrl.u32 %v1183, 7
    %v1185 = vsub.s32 2, %v1184
    %v1186 = vrot.slane %v1169, %v1185
    %v1187 = vlaneseq
    %v1188 = vshrl.u32 %v1187, 7
    %v1189 = vsub.s32 3, %v1188
    %v1190 = vrot.slane %v1169, %v1189
    %v1191 = vlaneseq
    %v1192 = vshrl.u32 %v1191, 7
    %v1193 = vsub.s32 4, %v1192
    %v1194 = vrot.slane %v1169, %v1193
    %v1195 = vlaneseq
    %v1196 = vshrl.u32 %v1195, 7
    %v1197 = vsub.s32 5, %v1196
    %v1198 = vrot.slane %v1169, %v1197
    %v1199 = vlaneseq
    %v1200 = vshrl.u32 %v1199, 7
    %v1201 = vsub.s32 6, %v1200
    %v1202 = vrot.slane %v1169, %v1201
    %v1203 = vlaneseq
    %v1204 = vshrl.u32 %v1203, 7
    %v1205 = vsub.s32 7, %v1204
    %v1206 = vrot.slane %v1169, %v1205
    %v1216 = vlaneseq
    %v1217 = vshrl.u32 %v1216, 7
    %v1218 = vsub.s32 0, %v1217
    %v1219 = vrot.slane %v1173, %v1218
    %v1220 = vlaneseq
    %v1221 = vshrl.u32 %v1220, 7
    %v1222 = vsub.s32 1, %v1221
    %v1223 = vrot.slane %v1173, %v1222
    %v1224 = vlaneseq
    %v1225 = vshrl.u32 %v1224, 7
    %v1226 = vsub.s32 2, %v1225
    %v1227 = vrot.slane %v1173, %v1226
    %v1228 = vlaneseq
    %v1229 = vshrl.u32 %v1228, 7
    %v1230 = vsub.s32 3, %v1229
    %v1231 = vrot.slane %v1173, %v1230
    %v1232 = vlaneseq
    %v1233 = vshrl.u32 %v1232, 7
    %v1234 = vsub.s32 4, %v1233
    %v1235 = vrot.slane %v1173, %v1234
    %v1236 = vlaneseq
    %v1237 = vshrl.u32 %v1236, 7
    %v1238 = vsub.s32 5, %v1237
    %v1239 = vrot.slane %v1173, %v1238
    %v1240 = vlaneseq
    %v1241 = vshrl.u32 %v1240, 7
    %v1242 = vsub.s32 6, %v1241
    %v1243 = vrot.slane %v1173, %v1242
    %v1244 = vlaneseq
    %v1245 = vshrl.u32 %v1244, 7
    %v1246 = vsub.s32 7, %v1245
    %v1247 = vrot.slane %v1173, %v1246
    %v1256 = vsel %vm283, %v1178, %v1219
    %v1257 = vsel %vm283, %v1182, %v1223
    %v1258 = vsel %vm283, %v1186, %v1227
    %v1259 = vsel %vm283, %v1190, %v1231
    %v1260 = vsel %vm283, %v1194, %v1235
    %v1261 = vsel %vm283, %v1198, %v1239
    %v1262 = vsel %vm283, %v1202, %v1243
    %v1263 = vsel %vm283, %v1206, %v1247
    %v1264 = vpack.c.bf16 %v1164, %v1164
    %v1265 = vpack.c.bf16 %v1165, %v1165
    %1266 = vmatprep.subr.bf16.mxu0 %v677
    %1267 = vmatpush1.bf16.msra.mxu0 %v676
    %1268 = vmatprep.subr.bf16.mxu0 %v685
    %1269 = vmatpush1.bf16.msra.mxu0 %v684
    %1270 = vmatprep.subr.bf16.mxu0 %v693
    %1271 = vmatpush1.bf16.msra.mxu0 %v692
    %1272 = vmatprep.subr.bf16.mxu0 %v701
    %1273 = vmatpush1.bf16.msra.mxu0 %v700
    %1274 = vmatprep.subr.bf16.mxu0 %v709
    %1275 = vmatpush1.bf16.msra.mxu0 %v708
    %1276 = vmatprep.subr.bf16.mxu0 %v717
    %1277 = vmatpush1.bf16.msra.mxu0 %v716
    %1278 = vmatprep.subr.bf16.mxu0 %v725
    %1279 = vmatpush1.bf16.msra.mxu0 %v724
    %1280 = vmatprep.subr.bf16.mxu0 %v733
    %1281 = vmatpush1.bf16.msra.mxu0 %v732
    %1282 = vmatprep.subr.bf16.mxu0 %v741
    %1283 = vmatpush1.bf16.msra.mxu0 %v740
    %1284 = vmatprep.subr.bf16.mxu0 %v749
    %1285 = vmatpush1.bf16.msra.mxu0 %v748
    %1286 = vmatprep.subr.bf16.mxu0 %v757
    %1287 = vmatpush1.bf16.msra.mxu0 %v756
    %1288 = vmatprep.subr.bf16.mxu0 %v765
    %1289 = vmatpush1.bf16.msra.mxu0 %v764
    %1290 = vmatprep.subr.bf16.mxu0 %v773
    %1291 = vmatpush1.bf16.msra.mxu0 %v772
    %1292 = vmatprep.subr.bf16.mxu0 %v781
    %1293 = vmatpush1.bf16.msra.mxu0 %v780
    %1294 = vmatprep.subr.bf16.mxu0 %v789
    %1295 = vmatpush1.bf16.msra.mxu0 %v788
    %1296 = vmatprep.subr.bf16.mxu0 %v797
    %1297 = vmatpush1.bf16.msra.mxu0 %v796
    %1298 = vmatprep.mubr.bf16.mxu0 %v1265
    %1299 = vmatmul.mubr.bf16.gmra.mrb[0].mxu0 %v1264
    %v1300 = vpop.f32.mrb[0].mxu0
    %v1301 = vadd.f32 0.0, %v1300
    %v1302 = vpop.f32.mrb[0].mxu0
    %v1303 = vadd.f32 0.0, %v1302
    %v1304 = vpop.f32.mrb[0].mxu0
    %v1305 = vpop.f32.mrb[0].mxu0
    %1306 = vdwg.mxu0
    %1307 = vmatprep.subr.bf16.mxu0 %v679
    %1308 = vmatpush1.bf16.msra.mxu0 %v678
    %1309 = vmatprep.subr.bf16.mxu0 %v687
    %1310 = vmatpush1.bf16.msra.mxu0 %v686
    %1311 = vmatprep.subr.bf16.mxu0 %v695
    %1312 = vmatpush1.bf16.msra.mxu0 %v694
    %1313 = vmatprep.subr.bf16.mxu0 %v703
    %1314 = vmatpush1.bf16.msra.mxu0 %v702
    %1315 = vmatprep.subr.bf16.mxu0 %v711
    %1316 = vmatpush1.bf16.msra.mxu0 %v710
    %1317 = vmatprep.subr.bf16.mxu0 %v719
    %1318 = vmatpush1.bf16.msra.mxu0 %v718
    %1319 = vmatprep.subr.bf16.mxu0 %v727
    %1320 = vmatpush1.bf16.msra.mxu0 %v726
    %1321 = vmatprep.subr.bf16.mxu0 %v735
    %1322 = vmatpush1.bf16.msra.mxu0 %v734
    %1323 = vmatprep.subr.bf16.mxu0 %v743
    %1324 = vmatpush1.bf16.msra.mxu0 %v742
    %1325 = vmatprep.subr.bf16.mxu0 %v751
    %1326 = vmatpush1.bf16.msra.mxu0 %v750
    %1327 = vmatprep.subr.bf16.mxu0 %v759
    %1328 = vmatpush1.bf16.msra.mxu0 %v758
    %1329 = vmatprep.subr.bf16.mxu0 %v767
    %1330 = vmatpush1.bf16.msra.mxu0 %v766
    %1331 = vmatprep.subr.bf16.mxu0 %v775
    %1332 = vmatpush1.bf16.msra.mxu0 %v774
    %1333 = vmatprep.subr.bf16.mxu0 %v783
    %1334 = vmatpush1.bf16.msra.mxu0 %v782
    %1335 = vmatprep.subr.bf16.mxu0 %v791
    %1336 = vmatpush1.bf16.msra.mxu0 %v790
    %1337 = vmatprep.subr.bf16.mxu0 %v799
    %1338 = vmatpush1.bf16.msra.mxu0 %v798
    %1339 = vmatprep.mubr.bf16.mxu0 %v1265
    %1340 = vmatmul.mubr.bf16.gmra.mrb[0].mxu0 %v1264
    %v1341 = vpop.f32.mrb[0].mxu0
    %v1342 = vadd.f32 0.0, %v1341
    %v1343 = vpop.f32.mrb[0].mxu0
    %v1344 = vadd.f32 0.0, %v1343
    %v1345 = vpop.f32.mrb[0].mxu0
    %v1346 = vpop.f32.mrb[0].mxu0
    %1347 = vdwg.mxu0
    %1348 = vmatprep.subr.bf16.mxu0 %v681
    %1349 = vmatpush1.bf16.msra.mxu0 %v680
    %1350 = vmatprep.subr.bf16.mxu0 %v689
    %1351 = vmatpush1.bf16.msra.mxu0 %v688
    %1352 = vmatprep.subr.bf16.mxu0 %v697
    %1353 = vmatpush1.bf16.msra.mxu0 %v696
    %1354 = vmatprep.subr.bf16.mxu0 %v705
    %1355 = vmatpush1.bf16.msra.mxu0 %v704
    %1356 = vmatprep.subr.bf16.mxu0 %v713
    %1357 = vmatpush1.bf16.msra.mxu0 %v712
    %1358 = vmatprep.subr.bf16.mxu0 %v721
    %1359 = vmatpush1.bf16.msra.mxu0 %v720
    %1360 = vmatprep.subr.bf16.mxu0 %v729
    %1361 = vmatpush1.bf16.msra.mxu0 %v728
    %1362 = vmatprep.subr.bf16.mxu0 %v737
    %1363 = vmatpush1.bf16.msra.mxu0 %v736
    %1364 = vmatprep.subr.bf16.mxu0 %v745
    %1365 = vmatpush1.bf16.msra.mxu0 %v744
    %1366 = vmatprep.subr.bf16.mxu0 %v753
    %1367 = vmatpush1.bf16.msra.mxu0 %v752
    %1368 = vmatprep.subr.bf16.mxu0 %v761
    %1369 = vmatpush1.bf16.msra.mxu0 %v760
    %1370 = vmatprep.subr.bf16.mxu0 %v769
    %1371 = vmatpush1.bf16.msra.mxu0 %v768
    %1372 = vmatprep.subr.bf16.mxu0 %v777
    %1373 = vmatpush1.bf16.msra.mxu0 %v776
    %1374 = vmatprep.subr.bf16.mxu0 %v785
    %1375 = vmatpush1.bf16.msra.mxu0 %v784
    %1376 = vmatprep.subr.bf16.mxu0 %v793
    %1377 = vmatpush1.bf16.msra.mxu0 %v792
    %1378 = vmatprep.subr.bf16.mxu0 %v801
    %1379 = vmatpush1.bf16.msra.mxu0 %v800
    %1380 = vmatprep.mubr.bf16.mxu0 %v1265
    %1381 = vmatmul.mubr.bf16.gmra.mrb[0].mxu0 %v1264
    %v1382 = vpop.f32.mrb[0].mxu0
    %v1383 = vadd.f32 0.0, %v1382
    %v1384 = vpop.f32.mrb[0].mxu0
    %v1385 = vadd.f32 0.0, %v1384
    %v1386 = vpop.f32.mrb[0].mxu0
    %v1387 = vpop.f32.mrb[0].mxu0
    %1388 = vdwg.mxu0
    %1389 = vmatprep.subr.bf16.mxu0 %v683
    %1390 = vmatpush1.bf16.msra.mxu0 %v682
    %1391 = vmatprep.subr.bf16.mxu0 %v691
    %1392 = vmatpush1.bf16.msra.mxu0 %v690
    %1393 = vmatprep.subr.bf16.mxu0 %v699
    %1394 = vmatpush1.bf16.msra.mxu0 %v698
    %1395 = vmatprep.subr.bf16.mxu0 %v707
    %1396 = vmatpush1.bf16.msra.mxu0 %v706
    %1397 = vmatprep.subr.bf16.mxu0 %v715
    %1398 = vmatpush1.bf16.msra.mxu0 %v714
    %1399 = vmatprep.subr.bf16.mxu0 %v723
    %1400 = vmatpush1.bf16.msra.mxu0 %v722
    %1401 = vmatprep.subr.bf16.mxu0 %v731
    %1402 = vmatpush1.bf16.msra.mxu0 %v730
    %1403 = vmatprep.subr.bf16.mxu0 %v739
    %1404 = vmatpush1.bf16.msra.mxu0 %v738
    %1405 = vmatprep.subr.bf16.mxu0 %v747
    %1406 = vmatpush1.bf16.msra.mxu0 %v746
    %1407 = vmatprep.subr.bf16.mxu0 %v755
    %1408 = vmatpush1.bf16.msra.mxu0 %v754
    %1409 = vmatprep.subr.bf16.mxu0 %v763
    %1410 = vmatpush1.bf16.msra.mxu0 %v762
    %1411 = vmatprep.subr.bf16.mxu0 %v771
    %1412 = vmatpush1.bf16.msra.mxu0 %v770
    %1413 = vmatprep.subr.bf16.mxu0 %v779
    %1414 = vmatpush1.bf16.msra.mxu0 %v778
    %1415 = vmatprep.subr.bf16.mxu0 %v787
    %1416 = vmatpush1.bf16.msra.mxu0 %v786
    %1417 = vmatprep.subr.bf16.mxu0 %v795
    %1418 = vmatpush1.bf16.msra.mxu0 %v794
    %1419 = vmatprep.subr.bf16.mxu0 %v803
    %1420 = vmatpush1.bf16.msra.mxu0 %v802
    %1421 = vmatprep.mubr.bf16.mxu0 %v1265
    %1422 = vmatmul.mubr.bf16.gmra.mrb[0].mxu0 %v1264
    %v1423 = vpop.f32.mrb[0].mxu0
    %v1424 = vadd.f32 0.0, %v1423
    %v1425 = vpop.f32.mrb[0].mxu0
    %v1426 = vadd.f32 0.0, %v1425
    %v1427 = vpop.f32.mrb[0].mxu0
    %v1428 = vpop.f32.mrb[0].mxu0
    %1429 = vdwg.mxu0
    %v1430 = vadd.f32 %v1256, %v1301
    %v1431 = vadd.f32 %v1257, %v1303
    %v1432 = vadd.f32 %v1258, %v1342
    %v1433 = vadd.f32 %v1259, %v1344
    %v1434 = vadd.f32 %v1260, %v1383
    %v1435 = vadd.f32 %v1261, %v1385
    %v1436 = vadd.f32 %v1262, %v1424
    %v1437 = vadd.f32 %v1263, %v1426
    %v1438 = vxor.u32 %v1430, 2147483648
    %v1439 = vxor.u32 %v1431, 2147483648
    %v1440 = vxor.u32 %v1432, 2147483648
    %v1441 = vxor.u32 %v1433, 2147483648
    %v1442 = vxor.u32 %v1434, 2147483648
    %v1443 = vxor.u32 %v1435, 2147483648
    %v1444 = vxor.u32 %v1436, 2147483648
    %v1445 = vxor.u32 %v1437, 2147483648
    %v1446 = vmul.f32 %v1438, 1.442695
    %v1447 = vpow.pop %v1446
    %v1448 = vmul.f32 %v1439, 1.442695
    %v1449 = vpow.pop %v1448
    %v1450 = vmul.f32 %v1440, 1.442695
    %v1451 = vpow.pop %v1450
    %v1452 = vmul.f32 %v1441, 1.442695
    %v1453 = vpow.pop %v1452
    %v1454 = vmul.f32 %v1442, 1.442695
    %v1455 = vpow.pop %v1454
    %v1456 = vmul.f32 %v1443, 1.442695
    %v1457 = vpow.pop %v1456
    %v1458 = vmul.f32 %v1444, 1.442695
    %v1459 = vpow.pop %v1458
    %v1460 = vmul.f32 %v1445, 1.442695
    %v1461 = vpow.pop %v1460
    %v1462 = vadd.f32 %v1447, 1.0
    %v1463 = vadd.f32 %v1449, 1.0
    %v1464 = vadd.f32 %v1451, 1.0
    %v1465 = vadd.f32 %v1453, 1.0
    %v1466 = vadd.f32 %v1455, 1.0
    %v1467 = vadd.f32 %v1457, 1.0
    %v1468 = vadd.f32 %v1459, 1.0
    %v1469 = vadd.f32 %v1461, 1.0
    %v1470 = vrcp.pop %v1462
    %v1471 = vmul.f32 1.0, %v1470
    %v1472 = vrcp.pop %v1463
    %v1473 = vmul.f32 1.0, %v1472
    %v1474 = vrcp.pop %v1464
    %v1475 = vmul.f32 1.0, %v1474
    %v1476 = vrcp.pop %v1465
    %v1477 = vmul.f32 1.0, %v1476
    %v1478 = vrcp.pop %v1466
    %v1479 = vmul.f32 1.0, %v1478
    %v1480 = vrcp.pop %v1467
    %v1481 = vmul.f32 1.0, %v1480
    %v1482 = vrcp.pop %v1468
    %v1483 = vmul.f32 1.0, %v1482
    %v1484 = vrcp.pop %v1469
    %v1485 = vmul.f32 1.0, %v1484
    %v1486 = vmul.f32 %v1479, 2.0
    %v1487 = vmul.f32 %v1481, 2.0
    %v1488 = vsub.f32 %v1486, 1.0
    %v1489 = vsub.f32 %v1487, 1.0
    %v1490 = vmul.f32 %v1475, %v1160
    %v1491 = vmul.f32 %v1477, %v1161
    %v1492 = vmul.f32 %v1471, %v1488
    %v1493 = vmul.f32 %v1473, %v1489
    %v1494 = vadd.f32 %v1490, %v1492
    %v1495 = vadd.f32 %v1491, %v1493
    %v1496 = vtanh.pop %v1494
    %v1497 = vtanh.pop %v1495
    %v1498 = vmul.f32 %v1483, %v1496
    %v1499 = vmul.f32 %v1485, %v1497
    %s1500 = sld [smem:[#allocation3 + $0x100]]
    %s1501 = smul.u32 %s1500, 8
    %s1502 = scalar_lea.vmem [#allocation7], %s1501
    %v1503 = vld [vmem:[%s1502] sm:$0xff]
    %s1504 = sld [smem:[#allocation3 + $0x101]]
    %s1505 = smul.u32 %s1504, 8
    %s1506 = scalar_lea.vmem [#allocation7], %s1505
    %v1507 = vld [vmem:[%s1506] sm:$0xff]
    %v1509 = vlaneseq
    %v1510 = vshrl.u32 %v1509, 7
    %v1511 = vsub.s32 0, %v1510
    %v1512 = vrot.slane %v1503, %v1511
    %v1513 = vlaneseq
    %v1514 = vshrl.u32 %v1513, 7
    %v1515 = vsub.s32 1, %v1514
    %v1516 = vrot.slane %v1503, %v1515
    %v1517 = vlaneseq
    %v1518 = vshrl.u32 %v1517, 7
    %v1519 = vsub.s32 2, %v1518
    %v1520 = vrot.slane %v1503, %v1519
    %v1521 = vlaneseq
    %v1522 = vshrl.u32 %v1521, 7
    %v1523 = vsub.s32 3, %v1522
    %v1524 = vrot.slane %v1503, %v1523
    %v1525 = vlaneseq
    %v1526 = vshrl.u32 %v1525, 7
    %v1527 = vsub.s32 4, %v1526
    %v1528 = vrot.slane %v1503, %v1527
    %v1529 = vlaneseq
    %v1530 = vshrl.u32 %v1529, 7
    %v1531 = vsub.s32 5, %v1530
    %v1532 = vrot.slane %v1503, %v1531
    %v1533 = vlaneseq
    %v1534 = vshrl.u32 %v1533, 7
    %v1535 = vsub.s32 6, %v1534
    %v1536 = vrot.slane %v1503, %v1535
    %v1537 = vlaneseq
    %v1538 = vshrl.u32 %v1537, 7
    %v1539 = vsub.s32 7, %v1538
    %v1540 = vrot.slane %v1503, %v1539
    %v1550 = vlaneseq
    %v1551 = vshrl.u32 %v1550, 7
    %v1552 = vsub.s32 0, %v1551
    %v1553 = vrot.slane %v1507, %v1552
    %v1554 = vlaneseq
    %v1555 = vshrl.u32 %v1554, 7
    %v1556 = vsub.s32 1, %v1555
    %v1557 = vrot.slane %v1507, %v1556
    %v1558 = vlaneseq
    %v1559 = vshrl.u32 %v1558, 7
    %v1560 = vsub.s32 2, %v1559
    %v1561 = vrot.slane %v1507, %v1560
    %v1562 = vlaneseq
    %v1563 = vshrl.u32 %v1562, 7
    %v1564 = vsub.s32 3, %v1563
    %v1565 = vrot.slane %v1507, %v1564
    %v1566 = vlaneseq
    %v1567 = vshrl.u32 %v1566, 7
    %v1568 = vsub.s32 4, %v1567
    %v1569 = vrot.slane %v1507, %v1568
    %v1570 = vlaneseq
    %v1571 = vshrl.u32 %v1570, 7
    %v1572 = vsub.s32 5, %v1571
    %v1573 = vrot.slane %v1507, %v1572
    %v1574 = vlaneseq
    %v1575 = vshrl.u32 %v1574, 7
    %v1576 = vsub.s32 6, %v1575
    %v1577 = vrot.slane %v1507, %v1576
    %v1578 = vlaneseq
    %v1579 = vshrl.u32 %v1578, 7
    %v1580 = vsub.s32 7, %v1579
    %v1581 = vrot.slane %v1507, %v1580
    %v1590 = vsel %vm283, %v1512, %v1553
    %v1591 = vsel %vm283, %v1516, %v1557
    %v1592 = vsel %vm283, %v1520, %v1561
    %v1593 = vsel %vm283, %v1524, %v1565
    %v1594 = vsel %vm283, %v1528, %v1569
    %v1595 = vsel %vm283, %v1532, %v1573
    %v1596 = vsel %vm283, %v1536, %v1577
    %v1597 = vsel %vm283, %v1540, %v1581
    %v1598 = vpack.c.bf16 %v1498, %v1498
    %v1599 = vpack.c.bf16 %v1499, %v1499
    %1600 = vmatprep.subr.bf16.mxu0 %v677
    %1601 = vmatpush1.bf16.msra.mxu0 %v676
    %1602 = vmatprep.subr.bf16.mxu0 %v685
    %1603 = vmatpush1.bf16.msra.mxu0 %v684
    %1604 = vmatprep.subr.bf16.mxu0 %v693
    %1605 = vmatpush1.bf16.msra.mxu0 %v692
    %1606 = vmatprep.subr.bf16.mxu0 %v701
    %1607 = vmatpush1.bf16.msra.mxu0 %v700
    %1608 = vmatprep.subr.bf16.mxu0 %v709
    %1609 = vmatpush1.bf16.msra.mxu0 %v708
    %1610 = vmatprep.subr.bf16.mxu0 %v717
    %1611 = vmatpush1.bf16.msra.mxu0 %v716
    %1612 = vmatprep.subr.bf16.mxu0 %v725
    %1613 = vmatpush1.bf16.msra.mxu0 %v724
    %1614 = vmatprep.subr.bf16.mxu0 %v733
    %1615 = vmatpush1.bf16.msra.mxu0 %v732
    %1616 = vmatprep.subr.bf16.mxu0 %v741
    %1617 = vmatpush1.bf16.msra.mxu0 %v740
    %1618 = vmatprep.subr.bf16.mxu0 %v749
    %1619 = vmatpush1.bf16.msra.mxu0 %v748
    %1620 = vmatprep.subr.bf16.mxu0 %v757
    %1621 = vmatpush1.bf16.msra.mxu0 %v756
    %1622 = vmatprep.subr.bf16.mxu0 %v765
    %1623 = vmatpush1.bf16.msra.mxu0 %v764
    %1624 = vmatprep.subr.bf16.mxu0 %v773
    %1625 = vmatpush1.bf16.msra.mxu0 %v772
    %1626 = vmatprep.subr.bf16.mxu0 %v781
    %1627 = vmatpush1.bf16.msra.mxu0 %v780
    %1628 = vmatprep.subr.bf16.mxu0 %v789
    %1629 = vmatpush1.bf16.msra.mxu0 %v788
    %1630 = vmatprep.subr.bf16.mxu0 %v797
    %1631 = vmatpush1.bf16.msra.mxu0 %v796
    %1632 = vmatprep.mubr.bf16.mxu0 %v1599
    %1633 = vmatmul.mubr.bf16.gmra.mrb[0].mxu0 %v1598
    %v1634 = vpop.f32.mrb[0].mxu0
    %v1635 = vadd.f32 0.0, %v1634
    %v1636 = vpop.f32.mrb[0].mxu0
    %v1637 = vadd.f32 0.0, %v1636
    %v1638 = vpop.f32.mrb[0].mxu0
    %v1639 = vpop.f32.mrb[0].mxu0
    %1640 = vdwg.mxu0
    %1641 = vmatprep.subr.bf16.mxu0 %v679
    %1642 = vmatpush1.bf16.msra.mxu0 %v678
    %1643 = vmatprep.subr.bf16.mxu0 %v687
    %1644 = vmatpush1.bf16.msra.mxu0 %v686
    %1645 = vmatprep.subr.bf16.mxu0 %v695
    %1646 = vmatpush1.bf16.msra.mxu0 %v694
    %1647 = vmatprep.subr.bf16.mxu0 %v703
    %1648 = vmatpush1.bf16.msra.mxu0 %v702
    %1649 = vmatprep.subr.bf16.mxu0 %v711
    %1650 = vmatpush1.bf16.msra.mxu0 %v710
    %1651 = vmatprep.subr.bf16.mxu0 %v719
    %1652 = vmatpush1.bf16.msra.mxu0 %v718
    %1653 = vmatprep.subr.bf16.mxu0 %v727
    %1654 = vmatpush1.bf16.msra.mxu0 %v726
    %1655 = vmatprep.subr.bf16.mxu0 %v735
    %1656 = vmatpush1.bf16.msra.mxu0 %v734
    %1657 = vmatprep.subr.bf16.mxu0 %v743
    %1658 = vmatpush1.bf16.msra.mxu0 %v742
    %1659 = vmatprep.subr.bf16.mxu0 %v751
    %1660 = vmatpush1.bf16.msra.mxu0 %v750
    %1661 = vmatprep.subr.bf16.mxu0 %v759
    %1662 = vmatpush1.bf16.msra.mxu0 %v758
    %1663 = vmatprep.subr.bf16.mxu0 %v767
    %1664 = vmatpush1.bf16.msra.mxu0 %v766
    %1665 = vmatprep.subr.bf16.mxu0 %v775
    %1666 = vmatpush1.bf16.msra.mxu0 %v774
    %1667 = vmatprep.subr.bf16.mxu0 %v783
    %1668 = vmatpush1.bf16.msra.mxu0 %v782
    %1669 = vmatprep.subr.bf16.mxu0 %v791
    %1670 = vmatpush1.bf16.msra.mxu0 %v790
    %1671 = vmatprep.subr.bf16.mxu0 %v799
    %1672 = vmatpush1.bf16.msra.mxu0 %v798
    %1673 = vmatprep.mubr.bf16.mxu0 %v1599
    %1674 = vmatmul.mubr.bf16.gmra.mrb[0].mxu0 %v1598
    %v1675 = vpop.f32.mrb[0].mxu0
    %v1676 = vadd.f32 0.0, %v1675
    %v1677 = vpop.f32.mrb[0].mxu0
    %v1678 = vadd.f32 0.0, %v1677
    %v1679 = vpop.f32.mrb[0].mxu0
    %v1680 = vpop.f32.mrb[0].mxu0
    %1681 = vdwg.mxu0
    %1682 = vmatprep.subr.bf16.mxu0 %v681
    %1683 = vmatpush1.bf16.msra.mxu0 %v680
    %1684 = vmatprep.subr.bf16.mxu0 %v689
    %1685 = vmatpush1.bf16.msra.mxu0 %v688
    %1686 = vmatprep.subr.bf16.mxu0 %v697
    %1687 = vmatpush1.bf16.msra.mxu0 %v696
    %1688 = vmatprep.subr.bf16.mxu0 %v705
    %1689 = vmatpush1.bf16.msra.mxu0 %v704
    %1690 = vmatprep.subr.bf16.mxu0 %v713
    %1691 = vmatpush1.bf16.msra.mxu0 %v712
    %1692 = vmatprep.subr.bf16.mxu0 %v721
    %1693 = vmatpush1.bf16.msra.mxu0 %v720
    %1694 = vmatprep.subr.bf16.mxu0 %v729
    %1695 = vmatpush1.bf16.msra.mxu0 %v728
    %1696 = vmatprep.subr.bf16.mxu0 %v737
    %1697 = vmatpush1.bf16.msra.mxu0 %v736
    %1698 = vmatprep.subr.bf16.mxu0 %v745
    %1699 = vmatpush1.bf16.msra.mxu0 %v744
    %1700 = vmatprep.subr.bf16.mxu0 %v753
    %1701 = vmatpush1.bf16.msra.mxu0 %v752
    %1702 = vmatprep.subr.bf16.mxu0 %v761
    %1703 = vmatpush1.bf16.msra.mxu0 %v760
    %1704 = vmatprep.subr.bf16.mxu0 %v769
    %1705 = vmatpush1.bf16.msra.mxu0 %v768
    %1706 = vmatprep.subr.bf16.mxu0 %v777
    %1707 = vmatpush1.bf16.msra.mxu0 %v776
    %1708 = vmatprep.subr.bf16.mxu0 %v785
    %1709 = vmatpush1.bf16.msra.mxu0 %v784
    %1710 = vmatprep.subr.bf16.mxu0 %v793
    %1711 = vmatpush1.bf16.msra.mxu0 %v792
    %1712 = vmatprep.subr.bf16.mxu0 %v801
    %1713 = vmatpush1.bf16.msra.mxu0 %v800
    %1714 = vmatprep.mubr.bf16.mxu0 %v1599
    %1715 = vmatmul.mubr.bf16.gmra.mrb[0].mxu0 %v1598
    %v1716 = vpop.f32.mrb[0].mxu0
    %v1717 = vadd.f32 0.0, %v1716
    %v1718 = vpop.f32.mrb[0].mxu0
    %v1719 = vadd.f32 0.0, %v1718
    %v1720 = vpop.f32.mrb[0].mxu0
    %v1721 = vpop.f32.mrb[0].mxu0
    %1722 = vdwg.mxu0
    %1723 = vmatprep.subr.bf16.mxu0 %v683
    %1724 = vmatpush1.bf16.msra.mxu0 %v682
    %1725 = vmatprep.subr.bf16.mxu0 %v691
    %1726 = vmatpush1.bf16.msra.mxu0 %v690
    %1727 = vmatprep.subr.bf16.mxu0 %v699
    %1728 = vmatpush1.bf16.msra.mxu0 %v698
    %1729 = vmatprep.subr.bf16.mxu0 %v707
    %1730 = vmatpush1.bf16.msra.mxu0 %v706
    %1731 = vmatprep.subr.bf16.mxu0 %v715
    %1732 = vmatpush1.bf16.msra.mxu0 %v714
    %1733 = vmatprep.subr.bf16.mxu0 %v723
    %1734 = vmatpush1.bf16.msra.mxu0 %v722
    %1735 = vmatprep.subr.bf16.mxu0 %v731
    %1736 = vmatpush1.bf16.msra.mxu0 %v730
    %1737 = vmatprep.subr.bf16.mxu0 %v739
    %1738 = vmatpush1.bf16.msra.mxu0 %v738
    %1739 = vmatprep.subr.bf16.mxu0 %v747
    %1740 = vmatpush1.bf16.msra.mxu0 %v746
    %1741 = vmatprep.subr.bf16.mxu0 %v755
    %1742 = vmatpush1.bf16.msra.mxu0 %v754
    %1743 = vmatprep.subr.bf16.mxu0 %v763
    %1744 = vmatpush1.bf16.msra.mxu0 %v762
    %1745 = vmatprep.subr.bf16.mxu0 %v771
    %1746 = vmatpush1.bf16.msra.mxu0 %v770
    %1747 = vmatprep.subr.bf16.mxu0 %v779
    %1748 = vmatpush1.bf16.msra.mxu0 %v778
    %1749 = vmatprep.subr.bf16.mxu0 %v787
    %1750 = vmatpush1.bf16.msra.mxu0 %v786
    %1751 = vmatprep.subr.bf16.mxu0 %v795
    %1752 = vmatpush1.bf16.msra.mxu0 %v794
    %1753 = vmatprep.subr.bf16.mxu0 %v803
    %1754 = vmatpush1.bf16.msra.mxu0 %v802
    %1755 = vmatprep.mubr.bf16.mxu0 %v1599
    %1756 = vmatmul.mubr.bf16.gmra.mrb[0].mxu0 %v1598
    %v1757 = vpop.f32.mrb[0].mxu0
    %v1758 = vadd.f32 0.0, %v1757
    %v1759 = vpop.f32.mrb[0].mxu0
    %v1760 = vadd.f32 0.0, %v1759
    %v1761 = vpop.f32.mrb[0].mxu0
    %v1762 = vpop.f32.mrb[0].mxu0
    %1763 = vdwg.mxu0
    %v1764 = vadd.f32 %v1590, %v1635
    %v1765 = vadd.f32 %v1591, %v1637
    %v1766 = vadd.f32 %v1592, %v1676
    %v1767 = vadd.f32 %v1593, %v1678
    %v1768 = vadd.f32 %v1594, %v1717
    %v1769 = vadd.f32 %v1595, %v1719
    %v1770 = vadd.f32 %v1596, %v1758
    %v1771 = vadd.f32 %v1597, %v1760
    %v1772 = vxor.u32 %v1764, 2147483648
    %v1773 = vxor.u32 %v1765, 2147483648
    %v1774 = vxor.u32 %v1766, 2147483648
    %v1775 = vxor.u32 %v1767, 2147483648
    %v1776 = vxor.u32 %v1768, 2147483648
    %v1777 = vxor.u32 %v1769, 2147483648
    %v1778 = vxor.u32 %v1770, 2147483648
    %v1779 = vxor.u32 %v1771, 2147483648
    %v1780 = vmul.f32 %v1772, 1.442695
    %v1781 = vpow.pop %v1780
    %v1782 = vmul.f32 %v1773, 1.442695
    %v1783 = vpow.pop %v1782
    %v1784 = vmul.f32 %v1774, 1.442695
    %v1785 = vpow.pop %v1784
    %v1786 = vmul.f32 %v1775, 1.442695
    %v1787 = vpow.pop %v1786
    %v1788 = vmul.f32 %v1776, 1.442695
    %v1789 = vpow.pop %v1788
    %v1790 = vmul.f32 %v1777, 1.442695
    %v1791 = vpow.pop %v1790
    %v1792 = vmul.f32 %v1778, 1.442695
    %v1793 = vpow.pop %v1792
    %v1794 = vmul.f32 %v1779, 1.442695
    %v1795 = vpow.pop %v1794
    %v1796 = vadd.f32 %v1781, 1.0
    %v1797 = vadd.f32 %v1783, 1.0
    %v1798 = vadd.f32 %v1785, 1.0
    %v1799 = vadd.f32 %v1787, 1.0
    %v1800 = vadd.f32 %v1789, 1.0
    %v1801 = vadd.f32 %v1791, 1.0
    %v1802 = vadd.f32 %v1793, 1.0
    %v1803 = vadd.f32 %v1795, 1.0
    %v1804 = vrcp.pop %v1796
    %v1805 = vmul.f32 1.0, %v1804
    %v1806 = vrcp.pop %v1797
    %v1807 = vmul.f32 1.0, %v1806
    %v1808 = vrcp.pop %v1798
    %v1809 = vmul.f32 1.0, %v1808
    %v1810 = vrcp.pop %v1799
    %v1811 = vmul.f32 1.0, %v1810
    %v1812 = vrcp.pop %v1800
    %v1813 = vmul.f32 1.0, %v1812
    %v1814 = vrcp.pop %v1801
    %v1815 = vmul.f32 1.0, %v1814
    %v1816 = vrcp.pop %v1802
    %v1817 = vmul.f32 1.0, %v1816
    %v1818 = vrcp.pop %v1803
    %v1819 = vmul.f32 1.0, %v1818
    %v1820 = vmul.f32 %v1813, 2.0
    %v1821 = vmul.f32 %v1815, 2.0
    %v1822 = vsub.f32 %v1820, 1.0
    %v1823 = vsub.f32 %v1821, 1.0
    %v1824 = vmul.f32 %v1809, %v1494
    %v1825 = vmul.f32 %v1811, %v1495
    %v1826 = vmul.f32 %v1805, %v1822
    %v1827 = vmul.f32 %v1807, %v1823
    %v1828 = vadd.f32 %v1824, %v1826
    %v1829 = vadd.f32 %v1825, %v1827
    %v1830 = vtanh.pop %v1828
    %v1831 = vtanh.pop %v1829
    %v1832 = vmul.f32 %v1817, %v1830
    %v1833 = vmul.f32 %v1819, %v1831
    %s1834 = sld [smem:[#allocation3 + $0x180]]
    %s1835 = smul.u32 %s1834, 8
    %s1836 = scalar_lea.vmem [#allocation7], %s1835
    %v1837 = vld [vmem:[%s1836] sm:$0xff]
    %s1838 = sld [smem:[#allocation3 + $0x181]]
    %s1839 = smul.u32 %s1838, 8
    %s1840 = scalar_lea.vmem [#allocation7], %s1839
    %v1841 = vld [vmem:[%s1840] sm:$0xff]
    %v1843 = vlaneseq
    %v1844 = vshrl.u32 %v1843, 7
    %v1845 = vsub.s32 0, %v1844
    %v1846 = vrot.slane %v1837, %v1845
    %v1847 = vlaneseq
    %v1848 = vshrl.u32 %v1847, 7
    %v1849 = vsub.s32 1, %v1848
    %v1850 = vrot.slane %v1837, %v1849
    %v1851 = vlaneseq
    %v1852 = vshrl.u32 %v1851, 7
    %v1853 = vsub.s32 2, %v1852
    %v1854 = vrot.slane %v1837, %v1853
    %v1855 = vlaneseq
    %v1856 = vshrl.u32 %v1855, 7
    %v1857 = vsub.s32 3, %v1856
    %v1858 = vrot.slane %v1837, %v1857
    %v1859 = vlaneseq
    %v1860 = vshrl.u32 %v1859, 7
    %v1861 = vsub.s32 4, %v1860
    %v1862 = vrot.slane %v1837, %v1861
    %v1863 = vlaneseq
    %v1864 = vshrl.u32 %v1863, 7
    %v1865 = vsub.s32 5, %v1864
    %v1866 = vrot.slane %v1837, %v1865
    %v1867 = vlaneseq
    %v1868 = vshrl.u32 %v1867, 7
    %v1869 = vsub.s32 6, %v1868
    %v1870 = vrot.slane %v1837, %v1869
    %v1871 = vlaneseq
    %v1872 = vshrl.u32 %v1871, 7
    %v1873 = vsub.s32 7, %v1872
    %v1874 = vrot.slane %v1837, %v1873
    %v1884 = vlaneseq
    %v1885 = vshrl.u32 %v1884, 7
    %v1886 = vsub.s32 0, %v1885
    %v1887 = vrot.slane %v1841, %v1886
    %v1888 = vlaneseq
    %v1889 = vshrl.u32 %v1888, 7
    %v1890 = vsub.s32 1, %v1889
    %v1891 = vrot.slane %v1841, %v1890
    %v1892 = vlaneseq
    %v1893 = vshrl.u32 %v1892, 7
    %v1894 = vsub.s32 2, %v1893
    %v1895 = vrot.slane %v1841, %v1894
    %v1896 = vlaneseq
    %v1897 = vshrl.u32 %v1896, 7
    %v1898 = vsub.s32 3, %v1897
    %v1899 = vrot.slane %v1841, %v1898
    %v1900 = vlaneseq
    %v1901 = vshrl.u32 %v1900, 7
    %v1902 = vsub.s32 4, %v1901
    %v1903 = vrot.slane %v1841, %v1902
    %v1904 = vlaneseq
    %v1905 = vshrl.u32 %v1904, 7
    %v1906 = vsub.s32 5, %v1905
    %v1907 = vrot.slane %v1841, %v1906
    %v1908 = vlaneseq
    %v1909 = vshrl.u32 %v1908, 7
    %v1910 = vsub.s32 6, %v1909
    %v1911 = vrot.slane %v1841, %v1910
    %v1912 = vlaneseq
    %v1913 = vshrl.u32 %v1912, 7
    %v1914 = vsub.s32 7, %v1913
    %v1915 = vrot.slane %v1841, %v1914
    %v1924 = vsel %vm283, %v1846, %v1887
    %v1925 = vsel %vm283, %v1850, %v1891
    %v1926 = vsel %vm283, %v1854, %v1895
    %v1927 = vsel %vm283, %v1858, %v1899
    %v1928 = vsel %vm283, %v1862, %v1903
    %v1929 = vsel %vm283, %v1866, %v1907
    %v1930 = vsel %vm283, %v1870, %v1911
    %v1931 = vsel %vm283, %v1874, %v1915
    %v1932 = vpack.c.bf16 %v1832, %v1832
    %v1933 = vpack.c.bf16 %v1833, %v1833
    %1934 = vmatprep.subr.bf16.mxu0 %v677
    %1935 = vmatpush1.bf16.msra.mxu0 %v676
    %1936 = vmatprep.subr.bf16.mxu0 %v685
    %1937 = vmatpush1.bf16.msra.mxu0 %v684
    %1938 = vmatprep.subr.bf16.mxu0 %v693
    %1939 = vmatpush1.bf16.msra.mxu0 %v692
    %1940 = vmatprep.subr.bf16.mxu0 %v701
    %1941 = vmatpush1.bf16.msra.mxu0 %v700
    %1942 = vmatprep.subr.bf16.mxu0 %v709
    %1943 = vmatpush1.bf16.msra.mxu0 %v708
    %1944 = vmatprep.subr.bf16.mxu0 %v717
    %1945 = vmatpush1.bf16.msra.mxu0 %v716
    %1946 = vmatprep.subr.bf16.mxu0 %v725
    %1947 = vmatpush1.bf16.msra.mxu0 %v724
    %1948 = vmatprep.subr.bf16.mxu0 %v733
    %1949 = vmatpush1.bf16.msra.mxu0 %v732
    %1950 = vmatprep.subr.bf16.mxu0 %v741
    %1951 = vmatpush1.bf16.msra.mxu0 %v740
    %1952 = vmatprep.subr.bf16.mxu0 %v749
    %1953 = vmatpush1.bf16.msra.mxu0 %v748
    %1954 = vmatprep.subr.bf16.mxu0 %v757
    %1955 = vmatpush1.bf16.msra.mxu0 %v756
    %1956 = vmatprep.subr.bf16.mxu0 %v765
    %1957 = vmatpush1.bf16.msra.mxu0 %v764
    %1958 = vmatprep.subr.bf16.mxu0 %v773
    %1959 = vmatpush1.bf16.msra.mxu0 %v772
    %1960 = vmatprep.subr.bf16.mxu0 %v781
    %1961 = vmatpush1.bf16.msra.mxu0 %v780
    %1962 = vmatprep.subr.bf16.mxu0 %v789
    %1963 = vmatpush1.bf16.msra.mxu0 %v788
    %1964 = vmatprep.subr.bf16.mxu0 %v797
    %1965 = vmatpush1.bf16.msra.mxu0 %v796
    %1966 = vmatprep.mubr.bf16.mxu0 %v1933
    %1967 = vmatmul.mubr.bf16.gmra.mrb[0].mxu0 %v1932
    %v1968 = vpop.f32.mrb[0].mxu0
    %v1969 = vadd.f32 0.0, %v1968
    %v1970 = vpop.f32.mrb[0].mxu0
    %v1971 = vadd.f32 0.0, %v1970
    %v1972 = vpop.f32.mrb[0].mxu0
    %v1973 = vpop.f32.mrb[0].mxu0
    %1974 = vdwg.mxu0
    %1975 = vmatprep.subr.bf16.mxu0 %v679
    %1976 = vmatpush1.bf16.msra.mxu0 %v678
    %1977 = vmatprep.subr.bf16.mxu0 %v687
    %1978 = vmatpush1.bf16.msra.mxu0 %v686
    %1979 = vmatprep.subr.bf16.mxu0 %v695
    %1980 = vmatpush1.bf16.msra.mxu0 %v694
    %1981 = vmatprep.subr.bf16.mxu0 %v703
    %1982 = vmatpush1.bf16.msra.mxu0 %v702
    %1983 = vmatprep.subr.bf16.mxu0 %v711
    %1984 = vmatpush1.bf16.msra.mxu0 %v710
    %1985 = vmatprep.subr.bf16.mxu0 %v719
    %1986 = vmatpush1.bf16.msra.mxu0 %v718
    %1987 = vmatprep.subr.bf16.mxu0 %v727
    %1988 = vmatpush1.bf16.msra.mxu0 %v726
    %1989 = vmatprep.subr.bf16.mxu0 %v735
    %1990 = vmatpush1.bf16.msra.mxu0 %v734
    %1991 = vmatprep.subr.bf16.mxu0 %v743
    %1992 = vmatpush1.bf16.msra.mxu0 %v742
    %1993 = vmatprep.subr.bf16.mxu0 %v751
    %1994 = vmatpush1.bf16.msra.mxu0 %v750
    %1995 = vmatprep.subr.bf16.mxu0 %v759
    %1996 = vmatpush1.bf16.msra.mxu0 %v758
    %1997 = vmatprep.subr.bf16.mxu0 %v767
    %1998 = vmatpush1.bf16.msra.mxu0 %v766
    %1999 = vmatprep.subr.bf16.mxu0 %v775
    %2000 = vmatpush1.bf16.msra.mxu0 %v774
    %2001 = vmatprep.subr.bf16.mxu0 %v783
    %2002 = vmatpush1.bf16.msra.mxu0 %v782
    %2003 = vmatprep.subr.bf16.mxu0 %v791
    %2004 = vmatpush1.bf16.msra.mxu0 %v790
    %2005 = vmatprep.subr.bf16.mxu0 %v799
    %2006 = vmatpush1.bf16.msra.mxu0 %v798
    %2007 = vmatprep.mubr.bf16.mxu0 %v1933
    %2008 = vmatmul.mubr.bf16.gmra.mrb[0].mxu0 %v1932
    %v2009 = vpop.f32.mrb[0].mxu0
    %v2010 = vadd.f32 0.0, %v2009
    %v2011 = vpop.f32.mrb[0].mxu0
    %v2012 = vadd.f32 0.0, %v2011
    %v2013 = vpop.f32.mrb[0].mxu0
    %v2014 = vpop.f32.mrb[0].mxu0
    %2015 = vdwg.mxu0
    %2016 = vmatprep.subr.bf16.mxu0 %v681
    %2017 = vmatpush1.bf16.msra.mxu0 %v680
    %2018 = vmatprep.subr.bf16.mxu0 %v689
    %2019 = vmatpush1.bf16.msra.mxu0 %v688
    %2020 = vmatprep.subr.bf16.mxu0 %v697
    %2021 = vmatpush1.bf16.msra.mxu0 %v696
    %2022 = vmatprep.subr.bf16.mxu0 %v705
    %2023 = vmatpush1.bf16.msra.mxu0 %v704
    %2024 = vmatprep.subr.bf16.mxu0 %v713
    %2025 = vmatpush1.bf16.msra.mxu0 %v712
    %2026 = vmatprep.subr.bf16.mxu0 %v721
    %2027 = vmatpush1.bf16.msra.mxu0 %v720
    %2028 = vmatprep.subr.bf16.mxu0 %v729
    %2029 = vmatpush1.bf16.msra.mxu0 %v728
    %2030 = vmatprep.subr.bf16.mxu0 %v737
    %2031 = vmatpush1.bf16.msra.mxu0 %v736
    %2032 = vmatprep.subr.bf16.mxu0 %v745
    %2033 = vmatpush1.bf16.msra.mxu0 %v744
    %2034 = vmatprep.subr.bf16.mxu0 %v753
    %2035 = vmatpush1.bf16.msra.mxu0 %v752
    %2036 = vmatprep.subr.bf16.mxu0 %v761
    %2037 = vmatpush1.bf16.msra.mxu0 %v760
    %2038 = vmatprep.subr.bf16.mxu0 %v769
    %2039 = vmatpush1.bf16.msra.mxu0 %v768
    %2040 = vmatprep.subr.bf16.mxu0 %v777
    %2041 = vmatpush1.bf16.msra.mxu0 %v776
    %2042 = vmatprep.subr.bf16.mxu0 %v785
    %2043 = vmatpush1.bf16.msra.mxu0 %v784
    %2044 = vmatprep.subr.bf16.mxu0 %v793
    %2045 = vmatpush1.bf16.msra.mxu0 %v792
    %2046 = vmatprep.subr.bf16.mxu0 %v801
    %2047 = vmatpush1.bf16.msra.mxu0 %v800
    %2048 = vmatprep.mubr.bf16.mxu0 %v1933
    %2049 = vmatmul.mubr.bf16.gmra.mrb[0].mxu0 %v1932
    %v2050 = vpop.f32.mrb[0].mxu0
    %v2051 = vadd.f32 0.0, %v2050
    %v2052 = vpop.f32.mrb[0].mxu0
    %v2053 = vadd.f32 0.0, %v2052
    %v2054 = vpop.f32.mrb[0].mxu0
    %v2055 = vpop.f32.mrb[0].mxu0
    %2056 = vdwg.mxu0
    %2057 = vmatprep.subr.bf16.mxu0 %v683
    %2058 = vmatpush1.bf16.msra.mxu0 %v682
    %2059 = vmatprep.subr.bf16.mxu0 %v691
    %2060 = vmatpush1.bf16.msra.mxu0 %v690
    %2061 = vmatprep.subr.bf16.mxu0 %v699
    %2062 = vmatpush1.bf16.msra.mxu0 %v698
    %2063 = vmatprep.subr.bf16.mxu0 %v707
    %2064 = vmatpush1.bf16.msra.mxu0 %v706
    %2065 = vmatprep.subr.bf16.mxu0 %v715
    %2066 = vmatpush1.bf16.msra.mxu0 %v714
    %2067 = vmatprep.subr.bf16.mxu0 %v723
    %2068 = vmatpush1.bf16.msra.mxu0 %v722
    %2069 = vmatprep.subr.bf16.mxu0 %v731
    %2070 = vmatpush1.bf16.msra.mxu0 %v730
    %2071 = vmatprep.subr.bf16.mxu0 %v739
    %2072 = vmatpush1.bf16.msra.mxu0 %v738
    %2073 = vmatprep.subr.bf16.mxu0 %v747
    %2074 = vmatpush1.bf16.msra.mxu0 %v746
    %2075 = vmatprep.subr.bf16.mxu0 %v755
    %2076 = vmatpush1.bf16.msra.mxu0 %v754
    %2077 = vmatprep.subr.bf16.mxu0 %v763
    %2078 = vmatpush1.bf16.msra.mxu0 %v762
    %2079 = vmatprep.subr.bf16.mxu0 %v771
    %2080 = vmatpush1.bf16.msra.mxu0 %v770
    %2081 = vmatprep.subr.bf16.mxu0 %v779
    %2082 = vmatpush1.bf16.msra.mxu0 %v778
    %2083 = vmatprep.subr.bf16.mxu0 %v787
    %2084 = vmatpush1.bf16.msra.mxu0 %v786
    %2085 = vmatprep.subr.bf16.mxu0 %v795
    %2086 = vmatpush1.bf16.msra.mxu0 %v794
    %2087 = vmatprep.subr.bf16.mxu0 %v803
    %2088 = vmatpush1.bf16.msra.mxu0 %v802
    %2089 = vmatprep.mubr.bf16.mxu0 %v1933
    %2090 = vmatmul.mubr.bf16.gmra.mrb[0].mxu0 %v1932
    %v2091 = vpop.f32.mrb[0].mxu0
    %v2092 = vadd.f32 0.0, %v2091
    %v2093 = vpop.f32.mrb[0].mxu0
    %v2094 = vadd.f32 0.0, %v2093
    %v2095 = vpop.f32.mrb[0].mxu0
    %v2096 = vpop.f32.mrb[0].mxu0
    %2097 = vdwg.mxu0
    %v2098 = vadd.f32 %v1924, %v1969
    %v2099 = vadd.f32 %v1925, %v1971
    %v2100 = vadd.f32 %v1926, %v2010
    %v2101 = vadd.f32 %v1927, %v2012
    %v2102 = vadd.f32 %v1928, %v2051
    %v2103 = vadd.f32 %v1929, %v2053
    %v2104 = vadd.f32 %v1930, %v2092
    %v2105 = vadd.f32 %v1931, %v2094
    %v2106 = vxor.u32 %v2098, 2147483648
    %v2107 = vxor.u32 %v2099, 2147483648
    %v2108 = vxor.u32 %v2100, 2147483648
    %v2109 = vxor.u32 %v2101, 2147483648
    %v2110 = vxor.u32 %v2102, 2147483648
    %v2111 = vxor.u32 %v2103, 2147483648
    %v2112 = vxor.u32 %v2104, 2147483648
    %v2113 = vxor.u32 %v2105, 2147483648
    %v2114 = vmul.f32 %v2106, 1.442695
    %v2115 = vpow.pop %v2114
    %v2116 = vmul.f32 %v2107, 1.442695
    %v2117 = vpow.pop %v2116
    %v2118 = vmul.f32 %v2108, 1.442695
    %v2119 = vpow.pop %v2118
    %v2120 = vmul.f32 %v2109, 1.442695
    %v2121 = vpow.pop %v2120
    %v2122 = vmul.f32 %v2110, 1.442695
    %v2123 = vpow.pop %v2122
    %v2124 = vmul.f32 %v2111, 1.442695
    %v2125 = vpow.pop %v2124
    %v2126 = vmul.f32 %v2112, 1.442695
    %v2127 = vpow.pop %v2126
    %v2128 = vmul.f32 %v2113, 1.442695
    %v2129 = vpow.pop %v2128
    %v2130 = vadd.f32 %v2115, 1.0
    %v2131 = vadd.f32 %v2117, 1.0
    %v2132 = vadd.f32 %v2119, 1.0
    %v2133 = vadd.f32 %v2121, 1.0
    %v2134 = vadd.f32 %v2123, 1.0
    %v2135 = vadd.f32 %v2125, 1.0
    %v2136 = vadd.f32 %v2127, 1.0
    %v2137 = vadd.f32 %v2129, 1.0
    %v2138 = vrcp.pop %v2130
    %v2139 = vmul.f32 1.0, %v2138
    %v2140 = vrcp.pop %v2131
    %v2141 = vmul.f32 1.0, %v2140
    %v2142 = vrcp.pop %v2132
    %v2143 = vmul.f32 1.0, %v2142
    %v2144 = vrcp.pop %v2133
    %v2145 = vmul.f32 1.0, %v2144
    %v2146 = vrcp.pop %v2134
    %v2147 = vmul.f32 1.0, %v2146
    %v2148 = vrcp.pop %v2135
    %v2149 = vmul.f32 1.0, %v2148
    %v2150 = vrcp.pop %v2136
    %v2151 = vmul.f32 1.0, %v2150
    %v2152 = vrcp.pop %v2137
    %v2153 = vmul.f32 1.0, %v2152
    %v2154 = vmul.f32 %v2147, 2.0
    %v2155 = vmul.f32 %v2149, 2.0
    %v2156 = vsub.f32 %v2154, 1.0
    %v2157 = vsub.f32 %v2155, 1.0
    %v2158 = vmul.f32 %v2143, %v1828
    %v2159 = vmul.f32 %v2145, %v1829
    %v2160 = vmul.f32 %v2139, %v2156
    %v2161 = vmul.f32 %v2141, %v2157
    %v2162 = vadd.f32 %v2158, %v2160
    %v2163 = vadd.f32 %v2159, %v2161
    %v2164 = vtanh.pop %v2162
    %v2165 = vtanh.pop %v2163
    %v2166 = vmul.f32 %v2151, %v2164
    %v2167 = vmul.f32 %v2153, %v2165
    %s2168 = sld [smem:[#allocation3 + $0x200]]
    %s2169 = smul.u32 %s2168, 8
    %s2170 = scalar_lea.vmem [#allocation7], %s2169
    %v2171 = vld [vmem:[%s2170] sm:$0xff]
    %s2172 = sld [smem:[#allocation3 + $0x201]]
    %s2173 = smul.u32 %s2172, 8
    %s2174 = scalar_lea.vmem [#allocation7], %s2173
    %v2175 = vld [vmem:[%s2174] sm:$0xff]
    %v2177 = vlaneseq
    %v2178 = vshrl.u32 %v2177, 7
    %v2179 = vsub.s32 0, %v2178
    %v2180 = vrot.slane %v2171, %v2179
    %v2181 = vlaneseq
    %v2182 = vshrl.u32 %v2181, 7
    %v2183 = vsub.s32 1, %v2182
    %v2184 = vrot.slane %v2171, %v2183
    %v2185 = vlaneseq
    %v2186 = vshrl.u32 %v2185, 7
    %v2187 = vsub.s32 2, %v2186
    %v2188 = vrot.slane %v2171, %v2187
    %v2189 = vlaneseq
    %v2190 = vshrl.u32 %v2189, 7
    %v2191 = vsub.s32 3, %v2190
    %v2192 = vrot.slane %v2171, %v2191
    %v2193 = vlaneseq
    %v2194 = vshrl.u32 %v2193, 7
    %v2195 = vsub.s32 4, %v2194
    %v2196 = vrot.slane %v2171, %v2195
    %v2197 = vlaneseq
    %v2198 = vshrl.u32 %v2197, 7
    %v2199 = vsub.s32 5, %v2198
    %v2200 = vrot.slane %v2171, %v2199
    %v2201 = vlaneseq
    %v2202 = vshrl.u32 %v2201, 7
    %v2203 = vsub.s32 6, %v2202
    %v2204 = vrot.slane %v2171, %v2203
    %v2205 = vlaneseq
    %v2206 = vshrl.u32 %v2205, 7
    %v2207 = vsub.s32 7, %v2206
    %v2208 = vrot.slane %v2171, %v2207
    %v2218 = vlaneseq
    %v2219 = vshrl.u32 %v2218, 7
    %v2220 = vsub.s32 0, %v2219
    %v2221 = vrot.slane %v2175, %v2220
    %v2222 = vlaneseq
    %v2223 = vshrl.u32 %v2222, 7
    %v2224 = vsub.s32 1, %v2223
    %v2225 = vrot.slane %v2175, %v2224
    %v2226 = vlaneseq
    %v2227 = vshrl.u32 %v2226, 7
    %v2228 = vsub.s32 2, %v2227
    %v2229 = vrot.slane %v2175, %v2228
    %v2230 = vlaneseq
    %v2231 = vshrl.u32 %v2230, 7
    %v2232 = vsub.s32 3, %v2231
    %v2233 = vrot.slane %v2175, %v2232
    %v2234 = vlaneseq
    %v2235 = vshrl.u32 %v2234, 7
    %v2236 = vsub.s32 4, %v2235
    %v2237 = vrot.slane %v2175, %v2236
    %v2238 = vlaneseq
    %v2239 = vshrl.u32 %v2238, 7
    %v2240 = vsub.s32 5, %v2239
    %v2241 = vrot.slane %v2175, %v2240
    %v2242 = vlaneseq
    %v2243 = vshrl.u32 %v2242, 7
    %v2244 = vsub.s32 6, %v2243
    %v2245 = vrot.slane %v2175, %v2244
    %v2246 = vlaneseq
    %v2247 = vshrl.u32 %v2246, 7
    %v2248 = vsub.s32 7, %v2247
    %v2249 = vrot.slane %v2175, %v2248
    %v2258 = vsel %vm283, %v2180, %v2221
    %v2259 = vsel %vm283, %v2184, %v2225
    %v2260 = vsel %vm283, %v2188, %v2229
    %v2261 = vsel %vm283, %v2192, %v2233
    %v2262 = vsel %vm283, %v2196, %v2237
    %v2263 = vsel %vm283, %v2200, %v2241
    %v2264 = vsel %vm283, %v2204, %v2245
    %v2265 = vsel %vm283, %v2208, %v2249
    %v2266 = vpack.c.bf16 %v2166, %v2166
    %v2267 = vpack.c.bf16 %v2167, %v2167
    %2268 = vmatprep.subr.bf16.mxu0 %v677
    %2269 = vmatpush1.bf16.msra.mxu0 %v676
    %2270 = vmatprep.subr.bf16.mxu0 %v685
    %2271 = vmatpush1.bf16.msra.mxu0 %v684
    %2272 = vmatprep.subr.bf16.mxu0 %v693
    %2273 = vmatpush1.bf16.msra.mxu0 %v692
    %2274 = vmatprep.subr.bf16.mxu0 %v701
    %2275 = vmatpush1.bf16.msra.mxu0 %v700
    %2276 = vmatprep.subr.bf16.mxu0 %v709
    %2277 = vmatpush1.bf16.msra.mxu0 %v708
    %2278 = vmatprep.subr.bf16.mxu0 %v717
    %2279 = vmatpush1.bf16.msra.mxu0 %v716
    %2280 = vmatprep.subr.bf16.mxu0 %v725
    %2281 = vmatpush1.bf16.msra.mxu0 %v724
    %2282 = vmatprep.subr.bf16.mxu0 %v733
    %2283 = vmatpush1.bf16.msra.mxu0 %v732
    %2284 = vmatprep.subr.bf16.mxu0 %v741
    %2285 = vmatpush1.bf16.msra.mxu0 %v740
    %2286 = vmatprep.subr.bf16.mxu0 %v749
    %2287 = vmatpush1.bf16.msra.mxu0 %v748
    %2288 = vmatprep.subr.bf16.mxu0 %v757
    %2289 = vmatpush1.bf16.msra.mxu0 %v756
    %2290 = vmatprep.subr.bf16.mxu0 %v765
    %2291 = vmatpush1.bf16.msra.mxu0 %v764
    %2292 = vmatprep.subr.bf16.mxu0 %v773
    %2293 = vmatpush1.bf16.msra.mxu0 %v772
    %2294 = vmatprep.subr.bf16.mxu0 %v781
    %2295 = vmatpush1.bf16.msra.mxu0 %v780
    %2296 = vmatprep.subr.bf16.mxu0 %v789
    %2297 = vmatpush1.bf16.msra.mxu0 %v788
    %2298 = vmatprep.subr.bf16.mxu0 %v797
    %2299 = vmatpush1.bf16.msra.mxu0 %v796
    %2300 = vmatprep.mubr.bf16.mxu0 %v2267
    %2301 = vmatmul.mubr.bf16.gmra.mrb[0].mxu0 %v2266
    %v2302 = vpop.f32.mrb[0].mxu0
    %v2303 = vadd.f32 0.0, %v2302
    %v2304 = vpop.f32.mrb[0].mxu0
    %v2305 = vadd.f32 0.0, %v2304
    %v2306 = vpop.f32.mrb[0].mxu0
    %v2307 = vpop.f32.mrb[0].mxu0
    %2308 = vdwg.mxu0
    %2309 = vmatprep.subr.bf16.mxu0 %v679
    %2310 = vmatpush1.bf16.msra.mxu0 %v678
    %2311 = vmatprep.subr.bf16.mxu0 %v687
    %2312 = vmatpush1.bf16.msra.mxu0 %v686
    %2313 = vmatprep.subr.bf16.mxu0 %v695
    %2314 = vmatpush1.bf16.msra.mxu0 %v694
    %2315 = vmatprep.subr.bf16.mxu0 %v703
    %2316 = vmatpush1.bf16.msra.mxu0 %v702
    %2317 = vmatprep.subr.bf16.mxu0 %v711
    %2318 = vmatpush1.bf16.msra.mxu0 %v710
    %2319 = vmatprep.subr.bf16.mxu0 %v719
    %2320 = vmatpush1.bf16.msra.mxu0 %v718
    %2321 = vmatprep.subr.bf16.mxu0 %v727
    %2322 = vmatpush1.bf16.msra.mxu0 %v726
    %2323 = vmatprep.subr.bf16.mxu0 %v735
    %2324 = vmatpush1.bf16.msra.mxu0 %v734
    %2325 = vmatprep.subr.bf16.mxu0 %v743
    %2326 = vmatpush1.bf16.msra.mxu0 %v742
    %2327 = vmatprep.subr.bf16.mxu0 %v751
    %2328 = vmatpush1.bf16.msra.mxu0 %v750
    %2329 = vmatprep.subr.bf16.mxu0 %v759
    %2330 = vmatpush1.bf16.msra.mxu0 %v758
    %2331 = vmatprep.subr.bf16.mxu0 %v767
    %2332 = vmatpush1.bf16.msra.mxu0 %v766
    %2333 = vmatprep.subr.bf16.mxu0 %v775
    %2334 = vmatpush1.bf16.msra.mxu0 %v774
    %2335 = vmatprep.subr.bf16.mxu0 %v783
    %2336 = vmatpush1.bf16.msra.mxu0 %v782
    %2337 = vmatprep.subr.bf16.mxu0 %v791
    %2338 = vmatpush1.bf16.msra.mxu0 %v790
    %2339 = vmatprep.subr.bf16.mxu0 %v799
    %2340 = vmatpush1.bf16.msra.mxu0 %v798
    %2341 = vmatprep.mubr.bf16.mxu0 %v2267
    %2342 = vmatmul.mubr.bf16.gmra.mrb[0].mxu0 %v2266
    %v2343 = vpop.f32.mrb[0].mxu0
    %v2344 = vadd.f32 0.0, %v2343
    %v2345 = vpop.f32.mrb[0].mxu0
    %v2346 = vadd.f32 0.0, %v2345
    %v2347 = vpop.f32.mrb[0].mxu0
    %v2348 = vpop.f32.mrb[0].mxu0
    %2349 = vdwg.mxu0
    %2350 = vmatprep.subr.bf16.mxu0 %v681
    %2351 = vmatpush1.bf16.msra.mxu0 %v680
    %2352 = vmatprep.subr.bf16.mxu0 %v689
    %2353 = vmatpush1.bf16.msra.mxu0 %v688
    %2354 = vmatprep.subr.bf16.mxu0 %v697
    %2355 = vmatpush1.bf16.msra.mxu0 %v696
    %2356 = vmatprep.subr.bf16.mxu0 %v705
    %2357 = vmatpush1.bf16.msra.mxu0 %v704
    %2358 = vmatprep.subr.bf16.mxu0 %v713
    %2359 = vmatpush1.bf16.msra.mxu0 %v712
    %2360 = vmatprep.subr.bf16.mxu0 %v721
    %2361 = vmatpush1.bf16.msra.mxu0 %v720
    %2362 = vmatprep.subr.bf16.mxu0 %v729
    %2363 = vmatpush1.bf16.msra.mxu0 %v728
    %2364 = vmatprep.subr.bf16.mxu0 %v737
    %2365 = vmatpush1.bf16.msra.mxu0 %v736
    %2366 = vmatprep.subr.bf16.mxu0 %v745
    %2367 = vmatpush1.bf16.msra.mxu0 %v744
    %2368 = vmatprep.subr.bf16.mxu0 %v753
    %2369 = vmatpush1.bf16.msra.mxu0 %v752
    %2370 = vmatprep.subr.bf16.mxu0 %v761
    %2371 = vmatpush1.bf16.msra.mxu0 %v760
    %2372 = vmatprep.subr.bf16.mxu0 %v769
    %2373 = vmatpush1.bf16.msra.mxu0 %v768
    %2374 = vmatprep.subr.bf16.mxu0 %v777
    %2375 = vmatpush1.bf16.msra.mxu0 %v776
    %2376 = vmatprep.subr.bf16.mxu0 %v785
    %2377 = vmatpush1.bf16.msra.mxu0 %v784
    %2378 = vmatprep.subr.bf16.mxu0 %v793
    %2379 = vmatpush1.bf16.msra.mxu0 %v792
    %2380 = vmatprep.subr.bf16.mxu0 %v801
    %2381 = vmatpush1.bf16.msra.mxu0 %v800
    %2382 = vmatprep.mubr.bf16.mxu0 %v2267
    %2383 = vmatmul.mubr.bf16.gmra.mrb[0].mxu0 %v2266
    %v2384 = vpop.f32.mrb[0].mxu0
    %v2385 = vadd.f32 0.0, %v2384
    %v2386 = vpop.f32.mrb[0].mxu0
    %v2387 = vadd.f32 0.0, %v2386
    %v2388 = vpop.f32.mrb[0].mxu0
    %v2389 = vpop.f32.mrb[0].mxu0
    %2390 = vdwg.mxu0
    %2391 = vmatprep.subr.bf16.mxu0 %v683
    %2392 = vmatpush1.bf16.msra.mxu0 %v682
    %2393 = vmatprep.subr.bf16.mxu0 %v691
    %2394 = vmatpush1.bf16.msra.mxu0 %v690
    %2395 = vmatprep.subr.bf16.mxu0 %v699
    %2396 = vmatpush1.bf16.msra.mxu0 %v698
    %2397 = vmatprep.subr.bf16.mxu0 %v707
    %2398 = vmatpush1.bf16.msra.mxu0 %v706
    %2399 = vmatprep.subr.bf16.mxu0 %v715
    %2400 = vmatpush1.bf16.msra.mxu0 %v714
    %2401 = vmatprep.subr.bf16.mxu0 %v723
    %2402 = vmatpush1.bf16.msra.mxu0 %v722
    %2403 = vmatprep.subr.bf16.mxu0 %v731
    %2404 = vmatpush1.bf16.msra.mxu0 %v730
    %2405 = vmatprep.subr.bf16.mxu0 %v739
    %2406 = vmatpush1.bf16.msra.mxu0 %v738
    %2407 = vmatprep.subr.bf16.mxu0 %v747
    %2408 = vmatpush1.bf16.msra.mxu0 %v746
    %2409 = vmatprep.subr.bf16.mxu0 %v755
    %2410 = vmatpush1.bf16.msra.mxu0 %v754
    %2411 = vmatprep.subr.bf16.mxu0 %v763
    %2412 = vmatpush1.bf16.msra.mxu0 %v762
    %2413 = vmatprep.subr.bf16.mxu0 %v771
    %2414 = vmatpush1.bf16.msra.mxu0 %v770
    %2415 = vmatprep.subr.bf16.mxu0 %v779
    %2416 = vmatpush1.bf16.msra.mxu0 %v778
    %2417 = vmatprep.subr.bf16.mxu0 %v787
    %2418 = vmatpush1.bf16.msra.mxu0 %v786
    %2419 = vmatprep.subr.bf16.mxu0 %v795
    %2420 = vmatpush1.bf16.msra.mxu0 %v794
    %2421 = vmatprep.subr.bf16.mxu0 %v803
    %2422 = vmatpush1.bf16.msra.mxu0 %v802
    %2423 = vmatprep.mubr.bf16.mxu0 %v2267
    %2424 = vmatmul.mubr.bf16.gmra.mrb[0].mxu0 %v2266
    %v2425 = vpop.f32.mrb[0].mxu0
    %v2426 = vadd.f32 0.0, %v2425
    %v2427 = vpop.f32.mrb[0].mxu0
    %v2428 = vadd.f32 0.0, %v2427
    %v2429 = vpop.f32.mrb[0].mxu0
    %v2430 = vpop.f32.mrb[0].mxu0
    %2431 = vdwg.mxu0
    %v2432 = vadd.f32 %v2258, %v2303
    %v2433 = vadd.f32 %v2259, %v2305
    %v2434 = vadd.f32 %v2260, %v2344
    %v2435 = vadd.f32 %v2261, %v2346
    %v2436 = vadd.f32 %v2262, %v2385
    %v2437 = vadd.f32 %v2263, %v2387
    %v2438 = vadd.f32 %v2264, %v2426
    %v2439 = vadd.f32 %v2265, %v2428
    %v2440 = vxor.u32 %v2432, 2147483648
    %v2441 = vxor.u32 %v2433, 2147483648
    %v2442 = vxor.u32 %v2434, 2147483648
    %v2443 = vxor.u32 %v2435, 2147483648
    %v2444 = vxor.u32 %v2436, 2147483648
    %v2445 = vxor.u32 %v2437, 2147483648
    %v2446 = vxor.u32 %v2438, 2147483648
    %v2447 = vxor.u32 %v2439, 2147483648
    %v2448 = vmul.f32 %v2440, 1.442695
    %v2449 = vpow.pop %v2448
    %v2450 = vmul.f32 %v2441, 1.442695
    %v2451 = vpow.pop %v2450
    %v2452 = vmul.f32 %v2442, 1.442695
    %v2453 = vpow.pop %v2452
    %v2454 = vmul.f32 %v2443, 1.442695
    %v2455 = vpow.pop %v2454
    %v2456 = vmul.f32 %v2444, 1.442695
    %v2457 = vpow.pop %v2456
    %v2458 = vmul.f32 %v2445, 1.442695
    %v2459 = vpow.pop %v2458
    %v2460 = vmul.f32 %v2446, 1.442695
    %v2461 = vpow.pop %v2460
    %v2462 = vmul.f32 %v2447, 1.442695
    %v2463 = vpow.pop %v2462
    %v2464 = vadd.f32 %v2449, 1.0
    %v2465 = vadd.f32 %v2451, 1.0
    %v2466 = vadd.f32 %v2453, 1.0
    %v2467 = vadd.f32 %v2455, 1.0
    %v2468 = vadd.f32 %v2457, 1.0
    %v2469 = vadd.f32 %v2459, 1.0
    %v2470 = vadd.f32 %v2461, 1.0
    %v2471 = vadd.f32 %v2463, 1.0
    %v2472 = vrcp.pop %v2464
    %v2473 = vmul.f32 1.0, %v2472
    %v2474 = vrcp.pop %v2465
    %v2475 = vmul.f32 1.0, %v2474
    %v2476 = vrcp.pop %v2466
    %v2477 = vmul.f32 1.0, %v2476
    %v2478 = vrcp.pop %v2467
    %v2479 = vmul.f32 1.0, %v2478
    %v2480 = vrcp.pop %v2468
    %v2481 = vmul.f32 1.0, %v2480
    %v2482 = vrcp.pop %v2469
    %v2483 = vmul.f32 1.0, %v2482
    %v2484 = vrcp.pop %v2470
    %v2485 = vmul.f32 1.0, %v2484
    %v2486 = vrcp.pop %v2471
    %v2487 = vmul.f32 1.0, %v2486
    %v2488 = vmul.f32 %v2481, 2.0
    %v2489 = vmul.f32 %v2483, 2.0
    %v2490 = vsub.f32 %v2488, 1.0
    %v2491 = vsub.f32 %v2489, 1.0
    %v2492 = vmul.f32 %v2477, %v2162
    %v2493 = vmul.f32 %v2479, %v2163
    %v2494 = vmul.f32 %v2473, %v2490
    %v2495 = vmul.f32 %v2475, %v2491
    %v2496 = vadd.f32 %v2492, %v2494
    %v2497 = vadd.f32 %v2493, %v2495
    %v2498 = vtanh.pop %v2496
    %v2499 = vtanh.pop %v2497
    %v2500 = vmul.f32 %v2485, %v2498
    %v2501 = vmul.f32 %v2487, %v2499
    %s2502 = sld [smem:[#allocation3 + $0x280]]
    %s2503 = smul.u32 %s2502, 8
    %s2504 = scalar_lea.vmem [#allocation7], %s2503
    %v2505 = vld [vmem:[%s2504] sm:$0xff]
    %s2506 = sld [smem:[#allocation3 + $0x281]]
    %s2507 = smul.u32 %s2506, 8
    %s2508 = scalar_lea.vmem [#allocation7], %s2507
    %v2509 = vld [vmem:[%s2508] sm:$0xff]
    %v2511 = vlaneseq
    %v2512 = vshrl.u32 %v2511, 7
    %v2513 = vsub.s32 0, %v2512
    %v2514 = vrot.slane %v2505, %v2513
    %v2515 = vlaneseq
    %v2516 = vshrl.u32 %v2515, 7
    %v2517 = vsub.s32 1, %v2516
    %v2518 = vrot.slane %v2505, %v2517
    %v2519 = vlaneseq
    %v2520 = vshrl.u32 %v2519, 7
    %v2521 = vsub.s32 2, %v2520
    %v2522 = vrot.slane %v2505, %v2521
    %v2523 = vlaneseq
    %v2524 = vshrl.u32 %v2523, 7
    %v2525 = vsub.s32 3, %v2524
    %v2526 = vrot.slane %v2505, %v2525
    %v2527 = vlaneseq
    %v2528 = vshrl.u32 %v2527, 7
    %v2529 = vsub.s32 4, %v2528
    %v2530 = vrot.slane %v2505, %v2529
    %v2531 = vlaneseq
    %v2532 = vshrl.u32 %v2531, 7
    %v2533 = vsub.s32 5, %v2532
    %v2534 = vrot.slane %v2505, %v2533
    %v2535 = vlaneseq
    %v2536 = vshrl.u32 %v2535, 7
    %v2537 = vsub.s32 6, %v2536
    %v2538 = vrot.slane %v2505, %v2537
    %v2539 = vlaneseq
    %v2540 = vshrl.u32 %v2539, 7
    %v2541 = vsub.s32 7, %v2540
    %v2542 = vrot.slane %v2505, %v2541
    %v2552 = vlaneseq
    %v2553 = vshrl.u32 %v2552, 7
    %v2554 = vsub.s32 0, %v2553
    %v2555 = vrot.slane %v2509, %v2554
    %v2556 = vlaneseq
    %v2557 = vshrl.u32 %v2556, 7
    %v2558 = vsub.s32 1, %v2557
    %v2559 = vrot.slane %v2509, %v2558
    %v2560 = vlaneseq
    %v2561 = vshrl.u32 %v2560, 7
    %v2562 = vsub.s32 2, %v2561
    %v2563 = vrot.slane %v2509, %v2562
    %v2564 = vlaneseq
    %v2565 = vshrl.u32 %v2564, 7
    %v2566 = vsub.s32 3, %v2565
    %v2567 = vrot.slane %v2509, %v2566
    %v2568 = vlaneseq
    %v2569 = vshrl.u32 %v2568, 7
    %v2570 = vsub.s32 4, %v2569
    %v2571 = vrot.slane %v2509, %v2570
    %v2572 = vlaneseq
    %v2573 = vshrl.u32 %v2572, 7
    %v2574 = vsub.s32 5, %v2573
    %v2575 = vrot.slane %v2509, %v2574
    %v2576 = vlaneseq
    %v2577 = vshrl.u32 %v2576, 7
    %v2578 = vsub.s32 6, %v2577
    %v2579 = vrot.slane %v2509, %v2578
    %v2580 = vlaneseq
    %v2581 = vshrl.u32 %v2580, 7
    %v2582 = vsub.s32 7, %v2581
    %v2583 = vrot.slane %v2509, %v2582
    %v2592 = vsel %vm283, %v2514, %v2555
    %v2593 = vsel %vm283, %v2518, %v2559
    %v2594 = vsel %vm283, %v2522, %v2563
    %v2595 = vsel %vm283, %v2526, %v2567
    %v2596 = vsel %vm283, %v2530, %v2571
    %v2597 = vsel %vm283, %v2534, %v2575
    %v2598 = vsel %vm283, %v2538, %v2579
    %v2599 = vsel %vm283, %v2542, %v2583
    %v2600 = vpack.c.bf16 %v2500, %v2500
    %v2601 = vpack.c.bf16 %v2501, %v2501
    %2602 = vmatprep.subr.bf16.mxu0 %v677
    %2603 = vmatpush1.bf16.msra.mxu0 %v676
    %2604 = vmatprep.subr.bf16.mxu0 %v685
    %2605 = vmatpush1.bf16.msra.mxu0 %v684
    %2606 = vmatprep.subr.bf16.mxu0 %v693
    %2607 = vmatpush1.bf16.msra.mxu0 %v692
    %2608 = vmatprep.subr.bf16.mxu0 %v701
    %2609 = vmatpush1.bf16.msra.mxu0 %v700
    %2610 = vmatprep.subr.bf16.mxu0 %v709
    %2611 = vmatpush1.bf16.msra.mxu0 %v708
    %2612 = vmatprep.subr.bf16.mxu0 %v717
    %2613 = vmatpush1.bf16.msra.mxu0 %v716
    %2614 = vmatprep.subr.bf16.mxu0 %v725
    %2615 = vmatpush1.bf16.msra.mxu0 %v724
    %2616 = vmatprep.subr.bf16.mxu0 %v733
    %2617 = vmatpush1.bf16.msra.mxu0 %v732
    %2618 = vmatprep.subr.bf16.mxu0 %v741
    %2619 = vmatpush1.bf16.msra.mxu0 %v740
    %2620 = vmatprep.subr.bf16.mxu0 %v749
    %2621 = vmatpush1.bf16.msra.mxu0 %v748
    %2622 = vmatprep.subr.bf16.mxu0 %v757
    %2623 = vmatpush1.bf16.msra.mxu0 %v756
    %2624 = vmatprep.subr.bf16.mxu0 %v765
    %2625 = vmatpush1.bf16.msra.mxu0 %v764
    %2626 = vmatprep.subr.bf16.mxu0 %v773
    %2627 = vmatpush1.bf16.msra.mxu0 %v772
    %2628 = vmatprep.subr.bf16.mxu0 %v781
    %2629 = vmatpush1.bf16.msra.mxu0 %v780
    %2630 = vmatprep.subr.bf16.mxu0 %v789
    %2631 = vmatpush1.bf16.msra.mxu0 %v788
    %2632 = vmatprep.subr.bf16.mxu0 %v797
    %2633 = vmatpush1.bf16.msra.mxu0 %v796
    %2634 = vmatprep.mubr.bf16.mxu0 %v2601
    %2635 = vmatmul.mubr.bf16.gmra.mrb[0].mxu0 %v2600
    %v2636 = vpop.f32.mrb[0].mxu0
    %v2637 = vadd.f32 0.0, %v2636
    %v2638 = vpop.f32.mrb[0].mxu0
    %v2639 = vadd.f32 0.0, %v2638
    %v2640 = vpop.f32.mrb[0].mxu0
    %v2641 = vpop.f32.mrb[0].mxu0
    %2642 = vdwg.mxu0
    %2643 = vmatprep.subr.bf16.mxu0 %v679
    %2644 = vmatpush1.bf16.msra.mxu0 %v678
    %2645 = vmatprep.subr.bf16.mxu0 %v687
    %2646 = vmatpush1.bf16.msra.mxu0 %v686
    %2647 = vmatprep.subr.bf16.mxu0 %v695
    %2648 = vmatpush1.bf16.msra.mxu0 %v694
    %2649 = vmatprep.subr.bf16.mxu0 %v703
    %2650 = vmatpush1.bf16.msra.mxu0 %v702
    %2651 = vmatprep.subr.bf16.mxu0 %v711
    %2652 = vmatpush1.bf16.msra.mxu0 %v710
    %2653 = vmatprep.subr.bf16.mxu0 %v719
    %2654 = vmatpush1.bf16.msra.mxu0 %v718
    %2655 = vmatprep.subr.bf16.mxu0 %v727
    %2656 = vmatpush1.bf16.msra.mxu0 %v726
    %2657 = vmatprep.subr.bf16.mxu0 %v735
    %2658 = vmatpush1.bf16.msra.mxu0 %v734
    %2659 = vmatprep.subr.bf16.mxu0 %v743
    %2660 = vmatpush1.bf16.msra.mxu0 %v742
    %2661 = vmatprep.subr.bf16.mxu0 %v751
    %2662 = vmatpush1.bf16.msra.mxu0 %v750
    %2663 = vmatprep.subr.bf16.mxu0 %v759
    %2664 = vmatpush1.bf16.msra.mxu0 %v758
    %2665 = vmatprep.subr.bf16.mxu0 %v767
    %2666 = vmatpush1.bf16.msra.mxu0 %v766
    %2667 = vmatprep.subr.bf16.mxu0 %v775
    %2668 = vmatpush1.bf16.msra.mxu0 %v774
    %2669 = vmatprep.subr.bf16.mxu0 %v783
    %2670 = vmatpush1.bf16.msra.mxu0 %v782
    %2671 = vmatprep.subr.bf16.mxu0 %v791
    %2672 = vmatpush1.bf16.msra.mxu0 %v790
    %2673 = vmatprep.subr.bf16.mxu0 %v799
    %2674 = vmatpush1.bf16.msra.mxu0 %v798
    %2675 = vmatprep.mubr.bf16.mxu0 %v2601
    %2676 = vmatmul.mubr.bf16.gmra.mrb[0].mxu0 %v2600
    %v2677 = vpop.f32.mrb[0].mxu0
    %v2678 = vadd.f32 0.0, %v2677
    %v2679 = vpop.f32.mrb[0].mxu0
    %v2680 = vadd.f32 0.0, %v2679
    %v2681 = vpop.f32.mrb[0].mxu0
    %v2682 = vpop.f32.mrb[0].mxu0
    %2683 = vdwg.mxu0
    %2684 = vmatprep.subr.bf16.mxu0 %v681
    %2685 = vmatpush1.bf16.msra.mxu0 %v680
    %2686 = vmatprep.subr.bf16.mxu0 %v689
    %2687 = vmatpush1.bf16.msra.mxu0 %v688
    %2688 = vmatprep.subr.bf16.mxu0 %v697
    %2689 = vmatpush1.bf16.msra.mxu0 %v696
    %2690 = vmatprep.subr.bf16.mxu0 %v705
    %2691 = vmatpush1.bf16.msra.mxu0 %v704
    %2692 = vmatprep.subr.bf16.mxu0 %v713
    %2693 = vmatpush1.bf16.msra.mxu0 %v712
    %2694 = vmatprep.subr.bf16.mxu0 %v721
    %2695 = vmatpush1.bf16.msra.mxu0 %v720
    %2696 = vmatprep.subr.bf16.mxu0 %v729
    %2697 = vmatpush1.bf16.msra.mxu0 %v728
    %2698 = vmatprep.subr.bf16.mxu0 %v737
    %2699 = vmatpush1.bf16.msra.mxu0 %v736
    %2700 = vmatprep.subr.bf16.mxu0 %v745
    %2701 = vmatpush1.bf16.msra.mxu0 %v744
    %2702 = vmatprep.subr.bf16.mxu0 %v753
    %2703 = vmatpush1.bf16.msra.mxu0 %v752
    %2704 = vmatprep.subr.bf16.mxu0 %v761
    %2705 = vmatpush1.bf16.msra.mxu0 %v760
    %2706 = vmatprep.subr.bf16.mxu0 %v769
    %2707 = vmatpush1.bf16.msra.mxu0 %v768
    %2708 = vmatprep.subr.bf16.mxu0 %v777
    %2709 = vmatpush1.bf16.msra.mxu0 %v776
    %2710 = vmatprep.subr.bf16.mxu0 %v785
    %2711 = vmatpush1.bf16.msra.mxu0 %v784
    %2712 = vmatprep.subr.bf16.mxu0 %v793
    %2713 = vmatpush1.bf16.msra.mxu0 %v792
    %2714 = vmatprep.subr.bf16.mxu0 %v801
    %2715 = vmatpush1.bf16.msra.mxu0 %v800
    %2716 = vmatprep.mubr.bf16.mxu0 %v2601
    %2717 = vmatmul.mubr.bf16.gmra.mrb[0].mxu0 %v2600
    %v2718 = vpop.f32.mrb[0].mxu0
    %v2719 = vadd.f32 0.0, %v2718
    %v2720 = vpop.f32.mrb[0].mxu0
    %v2721 = vadd.f32 0.0, %v2720
    %v2722 = vpop.f32.mrb[0].mxu0
    %v2723 = vpop.f32.mrb[0].mxu0
    %2724 = vdwg.mxu0
    %2725 = vmatprep.subr.bf16.mxu0 %v683
    %2726 = vmatpush1.bf16.msra.mxu0 %v682
    %2727 = vmatprep.subr.bf16.mxu0 %v691
    %2728 = vmatpush1.bf16.msra.mxu0 %v690
    %2729 = vmatprep.subr.bf16.mxu0 %v699
    %2730 = vmatpush1.bf16.msra.mxu0 %v698
    %2731 = vmatprep.subr.bf16.mxu0 %v707
    %2732 = vmatpush1.bf16.msra.mxu0 %v706
    %2733 = vmatprep.subr.bf16.mxu0 %v715
    %2734 = vmatpush1.bf16.msra.mxu0 %v714
    %2735 = vmatprep.subr.bf16.mxu0 %v723
    %2736 = vmatpush1.bf16.msra.mxu0 %v722
    %2737 = vmatprep.subr.bf16.mxu0 %v731
    %2738 = vmatpush1.bf16.msra.mxu0 %v730
    %2739 = vmatprep.subr.bf16.mxu0 %v739
    %2740 = vmatpush1.bf16.msra.mxu0 %v738
    %2741 = vmatprep.subr.bf16.mxu0 %v747
    %2742 = vmatpush1.bf16.msra.mxu0 %v746
    %2743 = vmatprep.subr.bf16.mxu0 %v755
    %2744 = vmatpush1.bf16.msra.mxu0 %v754
    %2745 = vmatprep.subr.bf16.mxu0 %v763
    %2746 = vmatpush1.bf16.msra.mxu0 %v762
    %2747 = vmatprep.subr.bf16.mxu0 %v771
    %2748 = vmatpush1.bf16.msra.mxu0 %v770
    %2749 = vmatprep.subr.bf16.mxu0 %v779
    %2750 = vmatpush1.bf16.msra.mxu0 %v778
    %2751 = vmatprep.subr.bf16.mxu0 %v787
    %2752 = vmatpush1.bf16.msra.mxu0 %v786
    %2753 = vmatprep.subr.bf16.mxu0 %v795
    %2754 = vmatpush1.bf16.msra.mxu0 %v794
    %2755 = vmatprep.subr.bf16.mxu0 %v803
    %2756 = vmatpush1.bf16.msra.mxu0 %v802
    %2757 = vmatprep.mubr.bf16.mxu0 %v2601
    %2758 = vmatmul.mubr.bf16.gmra.mrb[0].mxu0 %v2600
    %v2759 = vpop.f32.mrb[0].mxu0
    %v2760 = vadd.f32 0.0, %v2759
    %v2761 = vpop.f32.mrb[0].mxu0
    %v2762 = vadd.f32 0.0, %v2761
    %v2763 = vpop.f32.mrb[0].mxu0
    %v2764 = vpop.f32.mrb[0].mxu0
    %2765 = vdwg.mxu0
    %v2766 = vadd.f32 %v2592, %v2637
    %v2767 = vadd.f32 %v2593, %v2639
    %v2768 = vadd.f32 %v2594, %v2678
    %v2769 = vadd.f32 %v2595, %v2680
    %v2770 = vadd.f32 %v2596, %v2719
    %v2771 = vadd.f32 %v2597, %v2721
    %v2772 = vadd.f32 %v2598, %v2760
    %v2773 = vadd.f32 %v2599, %v2762
    %v2774 = vxor.u32 %v2766, 2147483648
    %v2775 = vxor.u32 %v2767, 2147483648
    %v2776 = vxor.u32 %v2768, 2147483648
    %v2777 = vxor.u32 %v2769, 2147483648
    %v2778 = vxor.u32 %v2770, 2147483648
    %v2779 = vxor.u32 %v2771, 2147483648
    %v2780 = vxor.u32 %v2772, 2147483648
    %v2781 = vxor.u32 %v2773, 2147483648
    %v2782 = vmul.f32 %v2774, 1.442695
    %v2783 = vpow.pop %v2782
    %v2784 = vmul.f32 %v2775, 1.442695
    %v2785 = vpow.pop %v2784
    %v2786 = vmul.f32 %v2776, 1.442695
    %v2787 = vpow.pop %v2786
    %v2788 = vmul.f32 %v2777, 1.442695
    %v2789 = vpow.pop %v2788
    %v2790 = vmul.f32 %v2778, 1.442695
    %v2791 = vpow.pop %v2790
    %v2792 = vmul.f32 %v2779, 1.442695
    %v2793 = vpow.pop %v2792
    %v2794 = vmul.f32 %v2780, 1.442695
    %v2795 = vpow.pop %v2794
    %v2796 = vmul.f32 %v2781, 1.442695
    %v2797 = vpow.pop %v2796
    %v2798 = vadd.f32 %v2783, 1.0
    %v2799 = vadd.f32 %v2785, 1.0
    %v2800 = vadd.f32 %v2787, 1.0
    %v2801 = vadd.f32 %v2789, 1.0
    %v2802 = vadd.f32 %v2791, 1.0
    %v2803 = vadd.f32 %v2793, 1.0
    %v2804 = vadd.f32 %v2795, 1.0
    %v2805 = vadd.f32 %v2797, 1.0
    %v2806 = vrcp.pop %v2798
    %v2807 = vmul.f32 1.0, %v2806
    %v2808 = vrcp.pop %v2799
    %v2809 = vmul.f32 1.0, %v2808
    %v2810 = vrcp.pop %v2800
    %v2811 = vmul.f32 1.0, %v2810
    %v2812 = vrcp.pop %v2801
    %v2813 = vmul.f32 1.0, %v2812
    %v2814 = vrcp.pop %v2802
    %v2815 = vmul.f32 1.0, %v2814
    %v2816 = vrcp.pop %v2803
    %v2817 = vmul.f32 1.0, %v2816
    %v2818 = vrcp.pop %v2804
    %v2819 = vmul.f32 1.0, %v2818
    %v2820 = vrcp.pop %v2805
    %v2821 = vmul.f32 1.0, %v2820
    %v2822 = vmul.f32 %v2815, 2.0
    %v2823 = vmul.f32 %v2817, 2.0
    %v2824 = vsub.f32 %v2822, 1.0
    %v2825 = vsub.f32 %v2823, 1.0
    %v2826 = vmul.f32 %v2811, %v2496
    %v2827 = vmul.f32 %v2813, %v2497
    %v2828 = vmul.f32 %v2807, %v2824
    %v2829 = vmul.f32 %v2809, %v2825
    %v2830 = vadd.f32 %v2826, %v2828
    %v2831 = vadd.f32 %v2827, %v2829
    %v2832 = vtanh.pop %v2830
    %v2833 = vtanh.pop %v2831
    %v2834 = vmul.f32 %v2819, %v2832
    %v2835 = vmul.f32 %v2821, %v2833
    %s2836 = sld [smem:[#allocation3 + $0x300]]
    %s2837 = smul.u32 %s2836, 8
    %s2838 = scalar_lea.vmem [#allocation7], %s2837
    %v2839 = vld [vmem:[%s2838] sm:$0xff]
    %s2840 = sld [smem:[#allocation3 + $0x301]]
    %s2841 = smul.u32 %s2840, 8
    %s2842 = scalar_lea.vmem [#allocation7], %s2841
    %v2843 = vld [vmem:[%s2842] sm:$0xff]
    %v2845 = vlaneseq
    %v2846 = vshrl.u32 %v2845, 7
    %v2847 = vsub.s32 0, %v2846
    %v2848 = vrot.slane %v2839, %v2847
    %v2849 = vlaneseq
    %v2850 = vshrl.u32 %v2849, 7
    %v2851 = vsub.s32 1, %v2850
    %v2852 = vrot.slane %v2839, %v2851
    %v2853 = vlaneseq
    %v2854 = vshrl.u32 %v2853, 7
    %v2855 = vsub.s32 2, %v2854
    %v2856 = vrot.slane %v2839, %v2855
    %v2857 = vlaneseq
    %v2858 = vshrl.u32 %v2857, 7
    %v2859 = vsub.s32 3, %v2858
    %v2860 = vrot.slane %v2839, %v2859
    %v2861 = vlaneseq
    %v2862 = vshrl.u32 %v2861, 7
    %v2863 = vsub.s32 4, %v2862
    %v2864 = vrot.slane %v2839, %v2863
    %v2865 = vlaneseq
    %v2866 = vshrl.u32 %v2865, 7
    %v2867 = vsub.s32 5, %v2866
    %v2868 = vrot.slane %v2839, %v2867
    %v2869 = vlaneseq
    %v2870 = vshrl.u32 %v2869, 7
    %v2871 = vsub.s32 6, %v2870
    %v2872 = vrot.slane %v2839, %v2871
    %v2873 = vlaneseq
    %v2874 = vshrl.u32 %v2873, 7
    %v2875 = vsub.s32 7, %v2874
    %v2876 = vrot.slane %v2839, %v2875
    %v2886 = vlaneseq
    %v2887 = vshrl.u32 %v2886, 7
    %v2888 = vsub.s32 0, %v2887
    %v2889 = vrot.slane %v2843, %v2888
    %v2890 = vlaneseq
    %v2891 = vshrl.u32 %v2890, 7
    %v2892 = vsub.s32 1, %v2891
    %v2893 = vrot.slane %v2843, %v2892
    %v2894 = vlaneseq
    %v2895 = vshrl.u32 %v2894, 7
    %v2896 = vsub.s32 2, %v2895
    %v2897 = vrot.slane %v2843, %v2896
    %v2898 = vlaneseq
    %v2899 = vshrl.u32 %v2898, 7
    %v2900 = vsub.s32 3, %v2899
    %v2901 = vrot.slane %v2843, %v2900
    %v2902 = vlaneseq
    %v2903 = vshrl.u32 %v2902, 7
    %v2904 = vsub.s32 4, %v2903
    %v2905 = vrot.slane %v2843, %v2904
    %v2906 = vlaneseq
    %v2907 = vshrl.u32 %v2906, 7
    %v2908 = vsub.s32 5, %v2907
    %v2909 = vrot.slane %v2843, %v2908
    %v2910 = vlaneseq
    %v2911 = vshrl.u32 %v2910, 7
    %v2912 = vsub.s32 6, %v2911
    %v2913 = vrot.slane %v2843, %v2912
    %v2914 = vlaneseq
    %v2915 = vshrl.u32 %v2914, 7
    %v2916 = vsub.s32 7, %v2915
    %v2917 = vrot.slane %v2843, %v2916
    %v2926 = vsel %vm283, %v2848, %v2889
    %v2927 = vsel %vm283, %v2852, %v2893
    %v2928 = vsel %vm283, %v2856, %v2897
    %v2929 = vsel %vm283, %v2860, %v2901
    %v2930 = vsel %vm283, %v2864, %v2905
    %v2931 = vsel %vm283, %v2868, %v2909
    %v2932 = vsel %vm283, %v2872, %v2913
    %v2933 = vsel %vm283, %v2876, %v2917
    %v2934 = vpack.c.bf16 %v2834, %v2834
    %v2935 = vpack.c.bf16 %v2835, %v2835
    %2936 = vmatprep.subr.bf16.mxu0 %v677
    %2937 = vmatpush1.bf16.msra.mxu0 %v676
    %2938 = vmatprep.subr.bf16.mxu0 %v685
    %2939 = vmatpush1.bf16.msra.mxu0 %v684
    %2940 = vmatprep.subr.bf16.mxu0 %v693
    %2941 = vmatpush1.bf16.msra.mxu0 %v692
    %2942 = vmatprep.subr.bf16.mxu0 %v701
    %2943 = vmatpush1.bf16.msra.mxu0 %v700
    %2944 = vmatprep.subr.bf16.mxu0 %v709
    %2945 = vmatpush1.bf16.msra.mxu0 %v708
    %2946 = vmatprep.subr.bf16.mxu0 %v717
    %2947 = vmatpush1.bf16.msra.mxu0 %v716
    %2948 = vmatprep.subr.bf16.mxu0 %v725
    %2949 = vmatpush1.bf16.msra.mxu0 %v724
    %2950 = vmatprep.subr.bf16.mxu0 %v733
    %2951 = vmatpush1.bf16.msra.mxu0 %v732
    %2952 = vmatprep.subr.bf16.mxu0 %v741
    %2953 = vmatpush1.bf16.msra.mxu0 %v740
    %2954 = vmatprep.subr.bf16.mxu0 %v749
    %2955 = vmatpush1.bf16.msra.mxu0 %v748
    %2956 = vmatprep.subr.bf16.mxu0 %v757
    %2957 = vmatpush1.bf16.msra.mxu0 %v756
    %2958 = vmatprep.subr.bf16.mxu0 %v765
    %2959 = vmatpush1.bf16.msra.mxu0 %v764
    %2960 = vmatprep.subr.bf16.mxu0 %v773
    %2961 = vmatpush1.bf16.msra.mxu0 %v772
    %2962 = vmatprep.subr.bf16.mxu0 %v781
    %2963 = vmatpush1.bf16.msra.mxu0 %v780
    %2964 = vmatprep.subr.bf16.mxu0 %v789
    %2965 = vmatpush1.bf16.msra.mxu0 %v788
    %2966 = vmatprep.subr.bf16.mxu0 %v797
    %2967 = vmatpush1.bf16.msra.mxu0 %v796
    %2968 = vmatprep.mubr.bf16.mxu0 %v2935
    %2969 = vmatmul.mubr.bf16.gmra.mrb[0].mxu0 %v2934
    %v2970 = vpop.f32.mrb[0].mxu0
    %v2971 = vadd.f32 0.0, %v2970
    %v2972 = vpop.f32.mrb[0].mxu0
    %v2973 = vadd.f32 0.0, %v2972
    %v2974 = vpop.f32.mrb[0].mxu0
    %v2975 = vpop.f32.mrb[0].mxu0
    %2976 = vdwg.mxu0
    %2977 = vmatprep.subr.bf16.mxu0 %v679
    %2978 = vmatpush1.bf16.msra.mxu0 %v678
    %2979 = vmatprep.subr.bf16.mxu0 %v687
    %2980 = vmatpush1.bf16.msra.mxu0 %v686
    %2981 = vmatprep.subr.bf16.mxu0 %v695
    %2982 = vmatpush1.bf16.msra.mxu0 %v694
    %2983 = vmatprep.subr.bf16.mxu0 %v703
    %2984 = vmatpush1.bf16.msra.mxu0 %v702
    %2985 = vmatprep.subr.bf16.mxu0 %v711
    %2986 = vmatpush1.bf16.msra.mxu0 %v710
    %2987 = vmatprep.subr.bf16.mxu0 %v719
    %2988 = vmatpush1.bf16.msra.mxu0 %v718
    %2989 = vmatprep.subr.bf16.mxu0 %v727
    %2990 = vmatpush1.bf16.msra.mxu0 %v726
    %2991 = vmatprep.subr.bf16.mxu0 %v735
    %2992 = vmatpush1.bf16.msra.mxu0 %v734
    %2993 = vmatprep.subr.bf16.mxu0 %v743
    %2994 = vmatpush1.bf16.msra.mxu0 %v742
    %2995 = vmatprep.subr.bf16.mxu0 %v751
    %2996 = vmatpush1.bf16.msra.mxu0 %v750
    %2997 = vmatprep.subr.bf16.mxu0 %v759
    %2998 = vmatpush1.bf16.msra.mxu0 %v758
    %2999 = vmatprep.subr.bf16.mxu0 %v767
    %3000 = vmatpush1.bf16.msra.mxu0 %v766
    %3001 = vmatprep.subr.bf16.mxu0 %v775
    %3002 = vmatpush1.bf16.msra.mxu0 %v774
    %3003 = vmatprep.subr.bf16.mxu0 %v783
    %3004 = vmatpush1.bf16.msra.mxu0 %v782
    %3005 = vmatprep.subr.bf16.mxu0 %v791
    %3006 = vmatpush1.bf16.msra.mxu0 %v790
    %3007 = vmatprep.subr.bf16.mxu0 %v799
    %3008 = vmatpush1.bf16.msra.mxu0 %v798
    %3009 = vmatprep.mubr.bf16.mxu0 %v2935
    %3010 = vmatmul.mubr.bf16.gmra.mrb[0].mxu0 %v2934
    %v3011 = vpop.f32.mrb[0].mxu0
    %v3012 = vadd.f32 0.0, %v3011
    %v3013 = vpop.f32.mrb[0].mxu0
    %v3014 = vadd.f32 0.0, %v3013
    %v3015 = vpop.f32.mrb[0].mxu0
    %v3016 = vpop.f32.mrb[0].mxu0
    %3017 = vdwg.mxu0
    %3018 = vmatprep.subr.bf16.mxu0 %v681
    %3019 = vmatpush1.bf16.msra.mxu0 %v680
    %3020 = vmatprep.subr.bf16.mxu0 %v689
    %3021 = vmatpush1.bf16.msra.mxu0 %v688
    %3022 = vmatprep.subr.bf16.mxu0 %v697
    %3023 = vmatpush1.bf16.msra.mxu0 %v696
    %3024 = vmatprep.subr.bf16.mxu0 %v705
    %3025 = vmatpush1.bf16.msra.mxu0 %v704
    %3026 = vmatprep.subr.bf16.mxu0 %v713
    %3027 = vmatpush1.bf16.msra.mxu0 %v712
    %3028 = vmatprep.subr.bf16.mxu0 %v721
    %3029 = vmatpush1.bf16.msra.mxu0 %v720
    %3030 = vmatprep.subr.bf16.mxu0 %v729
    %3031 = vmatpush1.bf16.msra.mxu0 %v728
    %3032 = vmatprep.subr.bf16.mxu0 %v737
    %3033 = vmatpush1.bf16.msra.mxu0 %v736
    %3034 = vmatprep.subr.bf16.mxu0 %v745
    %3035 = vmatpush1.bf16.msra.mxu0 %v744
    %3036 = vmatprep.subr.bf16.mxu0 %v753
    %3037 = vmatpush1.bf16.msra.mxu0 %v752
    %3038 = vmatprep.subr.bf16.mxu0 %v761
    %3039 = vmatpush1.bf16.msra.mxu0 %v760
    %3040 = vmatprep.subr.bf16.mxu0 %v769
    %3041 = vmatpush1.bf16.msra.mxu0 %v768
    %3042 = vmatprep.subr.bf16.mxu0 %v777
    %3043 = vmatpush1.bf16.msra.mxu0 %v776
    %3044 = vmatprep.subr.bf16.mxu0 %v785
    %3045 = vmatpush1.bf16.msra.mxu0 %v784
    %3046 = vmatprep.subr.bf16.mxu0 %v793
    %3047 = vmatpush1.bf16.msra.mxu0 %v792
    %3048 = vmatprep.subr.bf16.mxu0 %v801
    %3049 = vmatpush1.bf16.msra.mxu0 %v800
    %3050 = vmatprep.mubr.bf16.mxu0 %v2935
    %3051 = vmatmul.mubr.bf16.gmra.mrb[0].mxu0 %v2934
    %v3052 = vpop.f32.mrb[0].mxu0
    %v3053 = vadd.f32 0.0, %v3052
    %v3054 = vpop.f32.mrb[0].mxu0
    %v3055 = vadd.f32 0.0, %v3054
    %v3056 = vpop.f32.mrb[0].mxu0
    %v3057 = vpop.f32.mrb[0].mxu0
    %3058 = vdwg.mxu0
    %3059 = vmatprep.subr.bf16.mxu0 %v683
    %3060 = vmatpush1.bf16.msra.mxu0 %v682
    %3061 = vmatprep.subr.bf16.mxu0 %v691
    %3062 = vmatpush1.bf16.msra.mxu0 %v690
    %3063 = vmatprep.subr.bf16.mxu0 %v699
    %3064 = vmatpush1.bf16.msra.mxu0 %v698
    %3065 = vmatprep.subr.bf16.mxu0 %v707
    %3066 = vmatpush1.bf16.msra.mxu0 %v706
    %3067 = vmatprep.subr.bf16.mxu0 %v715
    %3068 = vmatpush1.bf16.msra.mxu0 %v714
    %3069 = vmatprep.subr.bf16.mxu0 %v723
    %3070 = vmatpush1.bf16.msra.mxu0 %v722
    %3071 = vmatprep.subr.bf16.mxu0 %v731
    %3072 = vmatpush1.bf16.msra.mxu0 %v730
    %3073 = vmatprep.subr.bf16.mxu0 %v739
    %3074 = vmatpush1.bf16.msra.mxu0 %v738
    %3075 = vmatprep.subr.bf16.mxu0 %v747
    %3076 = vmatpush1.bf16.msra.mxu0 %v746
    %3077 = vmatprep.subr.bf16.mxu0 %v755
    %3078 = vmatpush1.bf16.msra.mxu0 %v754
    %3079 = vmatprep.subr.bf16.mxu0 %v763
    %3080 = vmatpush1.bf16.msra.mxu0 %v762
    %3081 = vmatprep.subr.bf16.mxu0 %v771
    %3082 = vmatpush1.bf16.msra.mxu0 %v770
    %3083 = vmatprep.subr.bf16.mxu0 %v779
    %3084 = vmatpush1.bf16.msra.mxu0 %v778
    %3085 = vmatprep.subr.bf16.mxu0 %v787
    %3086 = vmatpush1.bf16.msra.mxu0 %v786
    %3087 = vmatprep.subr.bf16.mxu0 %v795
    %3088 = vmatpush1.bf16.msra.mxu0 %v794
    %3089 = vmatprep.subr.bf16.mxu0 %v803
    %3090 = vmatpush1.bf16.msra.mxu0 %v802
    %3091 = vmatprep.mubr.bf16.mxu0 %v2935
    %3092 = vmatmul.mubr.bf16.gmra.mrb[0].mxu0 %v2934
    %v3093 = vpop.f32.mrb[0].mxu0
    %v3094 = vadd.f32 0.0, %v3093
    %v3095 = vpop.f32.mrb[0].mxu0
    %v3096 = vadd.f32 0.0, %v3095
    %v3097 = vpop.f32.mrb[0].mxu0
    %v3098 = vpop.f32.mrb[0].mxu0
    %3099 = vdwg.mxu0
    %v3100 = vadd.f32 %v2926, %v2971
    %v3101 = vadd.f32 %v2927, %v2973
    %v3102 = vadd.f32 %v2928, %v3012
    %v3103 = vadd.f32 %v2929, %v3014
    %v3104 = vadd.f32 %v2930, %v3053
    %v3105 = vadd.f32 %v2931, %v3055
    %v3106 = vadd.f32 %v2932, %v3094
    %v3107 = vadd.f32 %v2933, %v3096
    %v3108 = vxor.u32 %v3100, 2147483648
    %v3109 = vxor.u32 %v3101, 2147483648
    %v3110 = vxor.u32 %v3102, 2147483648
    %v3111 = vxor.u32 %v3103, 2147483648
    %v3112 = vxor.u32 %v3104, 2147483648
    %v3113 = vxor.u32 %v3105, 2147483648
    %v3114 = vxor.u32 %v3106, 2147483648
    %v3115 = vxor.u32 %v3107, 2147483648
    %v3116 = vmul.f32 %v3108, 1.442695
    %v3117 = vpow.pop %v3116
    %v3118 = vmul.f32 %v3109, 1.442695
    %v3119 = vpow.pop %v3118
    %v3120 = vmul.f32 %v3110, 1.442695
    %v3121 = vpow.pop %v3120
    %v3122 = vmul.f32 %v3111, 1.442695
    %v3123 = vpow.pop %v3122
    %v3124 = vmul.f32 %v3112, 1.442695
    %v3125 = vpow.pop %v3124
    %v3126 = vmul.f32 %v3113, 1.442695
    %v3127 = vpow.pop %v3126
    %v3128 = vmul.f32 %v3114, 1.442695
    %v3129 = vpow.pop %v3128
    %v3130 = vmul.f32 %v3115, 1.442695
    %v3131 = vpow.pop %v3130
    %v3132 = vadd.f32 %v3117, 1.0
    %v3133 = vadd.f32 %v3119, 1.0
    %v3134 = vadd.f32 %v3121, 1.0
    %v3135 = vadd.f32 %v3123, 1.0
    %v3136 = vadd.f32 %v3125, 1.0
    %v3137 = vadd.f32 %v3127, 1.0
    %v3138 = vadd.f32 %v3129, 1.0
    %v3139 = vadd.f32 %v3131, 1.0
    %v3140 = vrcp.pop %v3132
    %v3141 = vmul.f32 1.0, %v3140
    %v3142 = vrcp.pop %v3133
    %v3143 = vmul.f32 1.0, %v3142
    %v3144 = vrcp.pop %v3134
    %v3145 = vmul.f32 1.0, %v3144
    %v3146 = vrcp.pop %v3135
    %v3147 = vmul.f32 1.0, %v3146
    %v3148 = vrcp.pop %v3136
    %v3149 = vmul.f32 1.0, %v3148
    %v3150 = vrcp.pop %v3137
    %v3151 = vmul.f32 1.0, %v3150
    %v3152 = vrcp.pop %v3138
    %v3153 = vmul.f32 1.0, %v3152
    %v3154 = vrcp.pop %v3139
    %v3155 = vmul.f32 1.0, %v3154
    %v3156 = vmul.f32 %v3149, 2.0
    %v3157 = vmul.f32 %v3151, 2.0
    %v3158 = vsub.f32 %v3156, 1.0
    %v3159 = vsub.f32 %v3157, 1.0
    %v3160 = vmul.f32 %v3145, %v2830
    %v3161 = vmul.f32 %v3147, %v2831
    %v3162 = vmul.f32 %v3141, %v3158
    %v3163 = vmul.f32 %v3143, %v3159
    %v3164 = vadd.f32 %v3160, %v3162
    %v3165 = vadd.f32 %v3161, %v3163
    %v3166 = vtanh.pop %v3164
    %v3167 = vtanh.pop %v3165
    %v3168 = vmul.f32 %v3153, %v3166
    %v3169 = vmul.f32 %v3155, %v3167
    %s3170 = sld [smem:[#allocation3 + $0x380]]
    %s3171 = smul.u32 %s3170, 8
    %s3172 = scalar_lea.vmem [#allocation7], %s3171
    %v3173 = vld [vmem:[%s3172] sm:$0xff]
    %s3174 = sld [smem:[#allocation3 + $0x381]]
    %s3175 = smul.u32 %s3174, 8
    %s3176 = scalar_lea.vmem [#allocation7], %s3175
    %v3177 = vld [vmem:[%s3176] sm:$0xff]
    %v3179 = vlaneseq
    %v3180 = vshrl.u32 %v3179, 7
    %v3181 = vsub.s32 0, %v3180
    %v3182 = vrot.slane %v3173, %v3181
    %v3183 = vlaneseq
    %v3184 = vshrl.u32 %v3183, 7
    %v3185 = vsub.s32 1, %v3184
    %v3186 = vrot.slane %v3173, %v3185
    %v3187 = vlaneseq
    %v3188 = vshrl.u32 %v3187, 7
    %v3189 = vsub.s32 2, %v3188
    %v3190 = vrot.slane %v3173, %v3189
    %v3191 = vlaneseq
    %v3192 = vshrl.u32 %v3191, 7
    %v3193 = vsub.s32 3, %v3192
    %v3194 = vrot.slane %v3173, %v3193
    %v3195 = vlaneseq
    %v3196 = vshrl.u32 %v3195, 7
    %v3197 = vsub.s32 4, %v3196
    %v3198 = vrot.slane %v3173, %v3197
    %v3199 = vlaneseq
    %v3200 = vshrl.u32 %v3199, 7
    %v3201 = vsub.s32 5, %v3200
    %v3202 = vrot.slane %v3173, %v3201
    %v3203 = vlaneseq
    %v3204 = vshrl.u32 %v3203, 7
    %v3205 = vsub.s32 6, %v3204
    %v3206 = vrot.slane %v3173, %v3205
    %v3207 = vlaneseq
    %v3208 = vshrl.u32 %v3207, 7
    %v3209 = vsub.s32 7, %v3208
    %v3210 = vrot.slane %v3173, %v3209
    %v3220 = vlaneseq
    %v3221 = vshrl.u32 %v3220, 7
    %v3222 = vsub.s32 0, %v3221
    %v3223 = vrot.slane %v3177, %v3222
    %v3224 = vlaneseq
    %v3225 = vshrl.u32 %v3224, 7
    %v3226 = vsub.s32 1, %v3225
    %v3227 = vrot.slane %v3177, %v3226
    %v3228 = vlaneseq
    %v3229 = vshrl.u32 %v3228, 7
    %v3230 = vsub.s32 2, %v3229
    %v3231 = vrot.slane %v3177, %v3230
    %v3232 = vlaneseq
    %v3233 = vshrl.u32 %v3232, 7
    %v3234 = vsub.s32 3, %v3233
    %v3235 = vrot.slane %v3177, %v3234
    %v3236 = vlaneseq
    %v3237 = vshrl.u32 %v3236, 7
    %v3238 = vsub.s32 4, %v3237
    %v3239 = vrot.slane %v3177, %v3238
    %v3240 = vlaneseq
    %v3241 = vshrl.u32 %v3240, 7
    %v3242 = vsub.s32 5, %v3241
    %v3243 = vrot.slane %v3177, %v3242
    %v3244 = vlaneseq
    %v3245 = vshrl.u32 %v3244, 7
    %v3246 = vsub.s32 6, %v3245
    %v3247 = vrot.slane %v3177, %v3246
    %v3248 = vlaneseq
    %v3249 = vshrl.u32 %v3248, 7
    %v3250 = vsub.s32 7, %v3249
    %v3251 = vrot.slane %v3177, %v3250
    %v3260 = vsel %vm283, %v3182, %v3223
    %v3261 = vsel %vm283, %v3186, %v3227
    %v3262 = vsel %vm283, %v3190, %v3231
    %v3263 = vsel %vm283, %v3194, %v3235
    %v3264 = vsel %vm283, %v3198, %v3239
    %v3265 = vsel %vm283, %v3202, %v3243
    %v3266 = vsel %vm283, %v3206, %v3247
    %v3267 = vsel %vm283, %v3210, %v3251
    %v3268 = vpack.c.bf16 %v3168, %v3168
    %v3269 = vpack.c.bf16 %v3169, %v3169
    %3270 = vmatprep.subr.bf16.mxu0 %v677
    %3271 = vmatpush1.bf16.msra.mxu0 %v676
    %3272 = vmatprep.subr.bf16.mxu0 %v685
    %3273 = vmatpush1.bf16.msra.mxu0 %v684
    %3274 = vmatprep.subr.bf16.mxu0 %v693
    %3275 = vmatpush1.bf16.msra.mxu0 %v692
    %3276 = vmatprep.subr.bf16.mxu0 %v701
    %3277 = vmatpush1.bf16.msra.mxu0 %v700
    %3278 = vmatprep.subr.bf16.mxu0 %v709
    %3279 = vmatpush1.bf16.msra.mxu0 %v708
    %3280 = vmatprep.subr.bf16.mxu0 %v717
    %3281 = vmatpush1.bf16.msra.mxu0 %v716
    %3282 = vmatprep.subr.bf16.mxu0 %v725
    %3283 = vmatpush1.bf16.msra.mxu0 %v724
    %3284 = vmatprep.subr.bf16.mxu0 %v733
    %3285 = vmatpush1.bf16.msra.mxu0 %v732
    %3286 = vmatprep.subr.bf16.mxu0 %v741
    %3287 = vmatpush1.bf16.msra.mxu0 %v740
    %3288 = vmatprep.subr.bf16.mxu0 %v749
    %3289 = vmatpush1.bf16.msra.mxu0 %v748
    %3290 = vmatprep.subr.bf16.mxu0 %v757
    %3291 = vmatpush1.bf16.msra.mxu0 %v756
    %3292 = vmatprep.subr.bf16.mxu0 %v765
    %3293 = vmatpush1.bf16.msra.mxu0 %v764
    %3294 = vmatprep.subr.bf16.mxu0 %v773
    %3295 = vmatpush1.bf16.msra.mxu0 %v772
    %3296 = vmatprep.subr.bf16.mxu0 %v781
    %3297 = vmatpush1.bf16.msra.mxu0 %v780
    %3298 = vmatprep.subr.bf16.mxu0 %v789
    %3299 = vmatpush1.bf16.msra.mxu0 %v788
    %3300 = vmatprep.subr.bf16.mxu0 %v797
    %3301 = vmatpush1.bf16.msra.mxu0 %v796
    %3302 = vmatprep.mubr.bf16.mxu0 %v3269
    %3303 = vmatmul.mubr.bf16.gmra.mrb[0].mxu0 %v3268
    %v3304 = vpop.f32.mrb[0].mxu0
    %v3305 = vadd.f32 0.0, %v3304
    %v3306 = vpop.f32.mrb[0].mxu0
    %v3307 = vadd.f32 0.0, %v3306
    %v3308 = vpop.f32.mrb[0].mxu0
    %v3309 = vpop.f32.mrb[0].mxu0
    %3310 = vdwg.mxu0
    %3311 = vmatprep.subr.bf16.mxu0 %v679
    %3312 = vmatpush1.bf16.msra.mxu0 %v678
    %3313 = vmatprep.subr.bf16.mxu0 %v687
    %3314 = vmatpush1.bf16.msra.mxu0 %v686
    %3315 = vmatprep.subr.bf16.mxu0 %v695
    %3316 = vmatpush1.bf16.msra.mxu0 %v694
    %3317 = vmatprep.subr.bf16.mxu0 %v703
    %3318 = vmatpush1.bf16.msra.mxu0 %v702
    %3319 = vmatprep.subr.bf16.mxu0 %v711
    %3320 = vmatpush1.bf16.msra.mxu0 %v710
    %3321 = vmatprep.subr.bf16.mxu0 %v719
    %3322 = vmatpush1.bf16.msra.mxu0 %v718
    %3323 = vmatprep.subr.bf16.mxu0 %v727
    %3324 = vmatpush1.bf16.msra.mxu0 %v726
    %3325 = vmatprep.subr.bf16.mxu0 %v735
    %3326 = vmatpush1.bf16.msra.mxu0 %v734
    %3327 = vmatprep.subr.bf16.mxu0 %v743
    %3328 = vmatpush1.bf16.msra.mxu0 %v742
    %3329 = vmatprep.subr.bf16.mxu0 %v751
    %3330 = vmatpush1.bf16.msra.mxu0 %v750
    %3331 = vmatprep.subr.bf16.mxu0 %v759
    %3332 = vmatpush1.bf16.msra.mxu0 %v758
    %3333 = vmatprep.subr.bf16.mxu0 %v767
    %3334 = vmatpush1.bf16.msra.mxu0 %v766
    %3335 = vmatprep.subr.bf16.mxu0 %v775
    %3336 = vmatpush1.bf16.msra.mxu0 %v774
    %3337 = vmatprep.subr.bf16.mxu0 %v783
    %3338 = vmatpush1.bf16.msra.mxu0 %v782
    %3339 = vmatprep.subr.bf16.mxu0 %v791
    %3340 = vmatpush1.bf16.msra.mxu0 %v790
    %3341 = vmatprep.subr.bf16.mxu0 %v799
    %3342 = vmatpush1.bf16.msra.mxu0 %v798
    %3343 = vmatprep.mubr.bf16.mxu0 %v3269
    %3344 = vmatmul.mubr.bf16.gmra.mrb[0].mxu0 %v3268
    %v3345 = vpop.f32.mrb[0].mxu0
    %v3346 = vadd.f32 0.0, %v3345
    %v3347 = vpop.f32.mrb[0].mxu0
    %v3348 = vadd.f32 0.0, %v3347
    %v3349 = vpop.f32.mrb[0].mxu0
    %v3350 = vpop.f32.mrb[0].mxu0
    %3351 = vdwg.mxu0
    %3352 = vmatprep.subr.bf16.mxu0 %v681
    %3353 = vmatpush1.bf16.msra.mxu0 %v680
    %3354 = vmatprep.subr.bf16.mxu0 %v689
    %3355 = vmatpush1.bf16.msra.mxu0 %v688
    %3356 = vmatprep.subr.bf16.mxu0 %v697
    %3357 = vmatpush1.bf16.msra.mxu0 %v696
    %3358 = vmatprep.subr.bf16.mxu0 %v705
    %3359 = vmatpush1.bf16.msra.mxu0 %v704
    %3360 = vmatprep.subr.bf16.mxu0 %v713
    %3361 = vmatpush1.bf16.msra.mxu0 %v712
    %3362 = vmatprep.subr.bf16.mxu0 %v721
    %3363 = vmatpush1.bf16.msra.mxu0 %v720
    %3364 = vmatprep.subr.bf16.mxu0 %v729
    %3365 = vmatpush1.bf16.msra.mxu0 %v728
    %3366 = vmatprep.subr.bf16.mxu0 %v737
    %3367 = vmatpush1.bf16.msra.mxu0 %v736
    %3368 = vmatprep.subr.bf16.mxu0 %v745
    %3369 = vmatpush1.bf16.msra.mxu0 %v744
    %3370 = vmatprep.subr.bf16.mxu0 %v753
    %3371 = vmatpush1.bf16.msra.mxu0 %v752
    %3372 = vmatprep.subr.bf16.mxu0 %v761
    %3373 = vmatpush1.bf16.msra.mxu0 %v760
    %3374 = vmatprep.subr.bf16.mxu0 %v769
    %3375 = vmatpush1.bf16.msra.mxu0 %v768
    %3376 = vmatprep.subr.bf16.mxu0 %v777
    %3377 = vmatpush1.bf16.msra.mxu0 %v776
    %3378 = vmatprep.subr.bf16.mxu0 %v785
    %3379 = vmatpush1.bf16.msra.mxu0 %v784
    %3380 = vmatprep.subr.bf16.mxu0 %v793
    %3381 = vmatpush1.bf16.msra.mxu0 %v792
    %3382 = vmatprep.subr.bf16.mxu0 %v801
    %3383 = vmatpush1.bf16.msra.mxu0 %v800
    %3384 = vmatprep.mubr.bf16.mxu0 %v3269
    %3385 = vmatmul.mubr.bf16.gmra.mrb[0].mxu0 %v3268
    %v3386 = vpop.f32.mrb[0].mxu0
    %v3387 = vadd.f32 0.0, %v3386
    %v3388 = vpop.f32.mrb[0].mxu0
    %v3389 = vadd.f32 0.0, %v3388
    %v3390 = vpop.f32.mrb[0].mxu0
    %v3391 = vpop.f32.mrb[0].mxu0
    %3392 = vdwg.mxu0
    %3393 = vmatprep.subr.bf16.mxu0 %v683
    %3394 = vmatpush1.bf16.msra.mxu0 %v682
    %3395 = vmatprep.subr.bf16.mxu0 %v691
    %3396 = vmatpush1.bf16.msra.mxu0 %v690
    %3397 = vmatprep.subr.bf16.mxu0 %v699
    %3398 = vmatpush1.bf16.msra.mxu0 %v698
    %3399 = vmatprep.subr.bf16.mxu0 %v707
    %3400 = vmatpush1.bf16.msra.mxu0 %v706
    %3401 = vmatprep.subr.bf16.mxu0 %v715
    %3402 = vmatpush1.bf16.msra.mxu0 %v714
    %3403 = vmatprep.subr.bf16.mxu0 %v723
    %3404 = vmatpush1.bf16.msra.mxu0 %v722
    %3405 = vmatprep.subr.bf16.mxu0 %v731
    %3406 = vmatpush1.bf16.msra.mxu0 %v730
    %3407 = vmatprep.subr.bf16.mxu0 %v739
    %3408 = vmatpush1.bf16.msra.mxu0 %v738
    %3409 = vmatprep.subr.bf16.mxu0 %v747
    %3410 = vmatpush1.bf16.msra.mxu0 %v746
    %3411 = vmatprep.subr.bf16.mxu0 %v755
    %3412 = vmatpush1.bf16.msra.mxu0 %v754
    %3413 = vmatprep.subr.bf16.mxu0 %v763
    %3414 = vmatpush1.bf16.msra.mxu0 %v762
    %3415 = vmatprep.subr.bf16.mxu0 %v771
    %3416 = vmatpush1.bf16.msra.mxu0 %v770
    %3417 = vmatprep.subr.bf16.mxu0 %v779
    %3418 = vmatpush1.bf16.msra.mxu0 %v778
    %3419 = vmatprep.subr.bf16.mxu0 %v787
    %3420 = vmatpush1.bf16.msra.mxu0 %v786
    %3421 = vmatprep.subr.bf16.mxu0 %v795
    %3422 = vmatpush1.bf16.msra.mxu0 %v794
    %3423 = vmatprep.subr.bf16.mxu0 %v803
    %3424 = vmatpush1.bf16.msra.mxu0 %v802
    %3425 = vmatprep.mubr.bf16.mxu0 %v3269
    %3426 = vmatmul.mubr.bf16.gmra.mrb[0].mxu0 %v3268
    %v3427 = vpop.f32.mrb[0].mxu0
    %v3428 = vadd.f32 0.0, %v3427
    %v3429 = vpop.f32.mrb[0].mxu0
    %v3430 = vadd.f32 0.0, %v3429
    %v3431 = vpop.f32.mrb[0].mxu0
    %v3432 = vpop.f32.mrb[0].mxu0
    %3433 = vdwg.mxu0
    %v3434 = vadd.f32 %v3260, %v3305
    %v3435 = vadd.f32 %v3261, %v3307
    %v3436 = vadd.f32 %v3262, %v3346
    %v3437 = vadd.f32 %v3263, %v3348
    %v3438 = vadd.f32 %v3264, %v3387
    %v3439 = vadd.f32 %v3265, %v3389
    %v3440 = vadd.f32 %v3266, %v3428
    %v3441 = vadd.f32 %v3267, %v3430
    %v3442 = vxor.u32 %v3434, 2147483648
    %v3443 = vxor.u32 %v3435, 2147483648
    %v3444 = vxor.u32 %v3436, 2147483648
    %v3445 = vxor.u32 %v3437, 2147483648
    %v3446 = vxor.u32 %v3438, 2147483648
    %v3447 = vxor.u32 %v3439, 2147483648
    %v3448 = vxor.u32 %v3440, 2147483648
    %v3449 = vxor.u32 %v3441, 2147483648
    %v3450 = vmul.f32 %v3442, 1.442695
    %v3451 = vpow.pop %v3450
    %v3452 = vmul.f32 %v3443, 1.442695
    %v3453 = vpow.pop %v3452
    %v3454 = vmul.f32 %v3444, 1.442695
    %v3455 = vpow.pop %v3454
    %v3456 = vmul.f32 %v3445, 1.442695
    %v3457 = vpow.pop %v3456
    %v3458 = vmul.f32 %v3446, 1.442695
    %v3459 = vpow.pop %v3458
    %v3460 = vmul.f32 %v3447, 1.442695
    %v3461 = vpow.pop %v3460
    %v3462 = vmul.f32 %v3448, 1.442695
    %v3463 = vpow.pop %v3462
    %v3464 = vmul.f32 %v3449, 1.442695
    %v3465 = vpow.pop %v3464
    %v3466 = vadd.f32 %v3451, 1.0
    %v3467 = vadd.f32 %v3453, 1.0
    %v3468 = vadd.f32 %v3455, 1.0
    %v3469 = vadd.f32 %v3457, 1.0
    %v3470 = vadd.f32 %v3459, 1.0
    %v3471 = vadd.f32 %v3461, 1.0
    %v3472 = vadd.f32 %v3463, 1.0
    %v3473 = vadd.f32 %v3465, 1.0
    %v3474 = vrcp.pop %v3466
    %v3475 = vmul.f32 1.0, %v3474
    %v3476 = vrcp.pop %v3467
    %v3477 = vmul.f32 1.0, %v3476
    %v3478 = vrcp.pop %v3468
    %v3479 = vmul.f32 1.0, %v3478
    %v3480 = vrcp.pop %v3469
    %v3481 = vmul.f32 1.0, %v3480
    %v3482 = vrcp.pop %v3470
    %v3483 = vmul.f32 1.0, %v3482
    %v3484 = vrcp.pop %v3471
    %v3485 = vmul.f32 1.0, %v3484
    %v3486 = vrcp.pop %v3472
    %v3487 = vmul.f32 1.0, %v3486
    %v3488 = vrcp.pop %v3473
    %v3489 = vmul.f32 1.0, %v3488
    %v3490 = vmul.f32 %v3483, 2.0
    %v3491 = vmul.f32 %v3485, 2.0
    %v3492 = vsub.f32 %v3490, 1.0
    %v3493 = vsub.f32 %v3491, 1.0
    %v3494 = vmul.f32 %v3479, %v3164
    %v3495 = vmul.f32 %v3481, %v3165
    %v3496 = vmul.f32 %v3475, %v3492
    %v3497 = vmul.f32 %v3477, %v3493
    %v3498 = vadd.f32 %v3494, %v3496
    %v3499 = vadd.f32 %v3495, %v3497
    %v3500 = vtanh.pop %v3498
    %v3501 = vtanh.pop %v3499
    %v3502 = vmul.f32 %v3487, %v3500
    %v3503 = vmul.f32 %v3489, %v3501
    %v3504 = vld [vmem:[%s3] sm:$0x3]
    %v3506 = vlaneseq
    %v3507 = vshrl.u32 %v3506, 7
    %v3508 = vsub.s32 0, %v3507
    %v3509 = vrot.slane %v3504, %v3508
    %v3510 = vlaneseq
    %v3511 = vshrl.u32 %v3510, 7
    %v3512 = vsub.s32 1, %v3511
    %v3513 = vrot.slane %v3504, %v3512
    %v3516 = vmul.f32 %v3502, %v3509
    %v3517 = vmul.f32 %v3503, %v3513
    %vm3518 = vcmask 1041408
    %v3519 = vsel %vm3518, %v3516, 0.0
    %v3520 = vsel %vm3518, %v3517, 0.0
    %v3521 = vadd.f32 %v3519, %v3520
    %3522 = vadd.xlane.f32.xlu0 %v3521
    %v3523 = vpop.xlane.xlu0 %3522
    %v3524 = vld [vmem:[#allocation2] sm:$0x1]
    %v3526 = vlaneseq
    %v3527 = vshrl.u32 %v3526, 7
    %v3528 = vsub.s32 0, %v3527
    %v3529 = vrot.slane %v3524, %v3528
    %v3531 = vadd.f32 %v3523, %v3529
    %3533 = vset.pattern.permute.xlu0 0
    %3534 = vperm.xlu0 %3533, %v3531
    %v3535 = vpop.permute.xlu0 %3534
    %3537 = vst [vmem:[#allocation10] sm:$0x3] %v3535
    // Predicated region
    $region34: #{tpu_custom_call.1} parent=1 // pred_check
      _
    $region35: #{tpu_custom_call.1} parent=1 // pred_check_branch
      %3539 = sbr.rel (0) target = $region37
    $region36: #{tpu_custom_call.1} parent=1 // pred_region
      %s3541 = ssub.s32 32, 32
      %3542 = vsyncadd [#allocation5], %s3541
      %s3544 = sshll.u32 [#allocation10], 4
      %s3545 = int_to_ptr.vmem [resolvable:$true] %s3544
      %3547 = dma.vmem_to_hbm [thread:$0]  %s3545, 32, %s5, [#allocation5]
    $region37: #{tpu_custom_call.1} parent=1 // pred_fallthru
      _
    // Predicated region
    $region38: #{tpu_custom_call.1} parent=1 // pred_check
      _
    $region39: #{tpu_custom_call.1} parent=1 // pred_check_branch
      %3549 = sbr.rel (0) target = $region41
    $region40: #{tpu_custom_call.1} parent=1 // pred_region
      %3550 = dma.done [#allocation5], 32
    $region41: #{tpu_custom_call.1} parent=1 // pred_fallthru
      _
    %3551 = vsyncpa [#allocation4], 1
    %3552 = vsyncpa [#allocation9], 1
    %3553 = vsyncpa [#allocation5], 1
    %3554 = vsyncpa [#allocation6], 1

</llo_original>
